<compile_context>
chip_gen: v7x
topology: tpu7x:2x2x1
jax: 0.10.0
libtpu: 0.0.40
codegen_flags: <defaults>
</compile_context>

<pallas_src>
import functools
import math

import jax
import jax.numpy as jnp
from jax import lax
from jax.experimental import pallas as pl
from jax.experimental.pallas import tpu as pltpu

D_MODEL = 128
N_HEAD = 2
HEAD_DIM = D_MODEL // N_HEAD
LN_EPS = 1e-5


def _layer_norm(x, gamma, beta):
    mu = jnp.mean(x, axis=-1, keepdims=True)
    var = jnp.mean((x - mu) ** 2, axis=-1, keepdims=True)
    return (x - mu) * lax.rsqrt(var + LN_EPS) * gamma + beta


# ----------------------------------------------------------------------------
# Single fused kernel.  Rows of the in-kernel sequence tensor are ordered
# branch-major: row = s*B + b, so per-branch projection writes and per-branch
# classifier reads are contiguous static slices (no strided access).
# ----------------------------------------------------------------------------
def _fused_kernel(xaug_ref, waug_ref, bproj_ref,
                  wqkv_ref, bqkv_ref,
                  wo_ref, bo_ref, ln1g_ref, ln1b_ref,
                  w1_ref, b1_ref, w2_ref, b2_ref, ln2g_ref, ln2b_ref,
                  wcr_ref, bc_ref, out_ref, *, batch, seq):
    B, S, D = batch, seq, D_MODEL
    R = S * B

    # ---- all projection branches in ONE wide matmul (K fuses x and metadata) ----
    feats_wide = jnp.dot(xaug_ref[...], waug_ref[...],
                         preferred_element_type=jnp.float32) + bproj_ref[...]
    feats_wide = jnp.maximum(feats_wide, 0.0)                    # (B, S*128)
    # branch-major rows via lane-aligned 128-wide slices
    feats = jnp.concatenate(
        [feats_wide[:, s * D:(s + 1) * D] for s in range(S)], axis=0)  # (R, 128)

    # ---- fused QKV over all B*S rows ----
    qkv = jnp.dot(feats, wqkv_ref[...],
                  preferred_element_type=jnp.float32) + bqkv_ref[...]  # (R, 384)
    q = qkv[:, 0:D]
    k = qkv[:, D:2 * D]
    v = qkv[:, 2 * D:3 * D]

    # block-diagonal batch mask: rows i, j may attend iff same batch (row % B).
    ri = lax.broadcasted_iota(jnp.int32, (R, R), 0)
    ci = lax.broadcasted_iota(jnp.int32, (R, R), 1)
    same_batch = (ri % B) == (ci % B)

    lane = lax.broadcasted_iota(jnp.int32, (1, D), 1)
    scale = 1.0 / math.sqrt(HEAD_DIM)

    ctx = jnp.zeros((R, D), jnp.float32)
    for h in range(N_HEAD):
        # per-head lane mask keeps data lane-resident (no 64-lane slices / concat)
        mh = jnp.where((lane >= h * HEAD_DIM) & (lane < (h + 1) * HEAD_DIM),
                       1.0, 0.0)                                 # (1, 128)
        qh = q * mh
        scores = jnp.dot(qh, k.T, preferred_element_type=jnp.float32) * scale
        scores = jnp.where(same_batch, scores, -1e30)
        m = jnp.max(scores, axis=-1, keepdims=True)
        p = jnp.exp(scores - m)
        denom = jnp.sum(p, axis=-1, keepdims=True)
        attn = p * pl.reciprocal(denom, approx=True)
        ctx = ctx + jnp.dot(attn, v * mh, preferred_element_type=jnp.float32)

    attn_out = jnp.dot(ctx, wo_ref[...],
                       preferred_element_type=jnp.float32) + bo_ref[...]
    h1 = _layer_norm(feats + attn_out, ln1g_ref[...], ln1b_ref[...])
    ff = jnp.maximum(
        jnp.dot(h1, w1_ref[...], preferred_element_type=jnp.float32) + b1_ref[...],
        0.0)
    ff = jnp.dot(ff, w2_ref[...], preferred_element_type=jnp.float32) + b2_ref[...]
    h2 = _layer_norm(h1 + ff, ln2g_ref[...], ln2b_ref[...])      # (R, 128)

    # ---- Flatten + Linear: logits[b] = sum_s h2[row s*B+b] @ wc[s] + bc ----
    acc = jnp.dot(h2[0:B, :], wcr_ref[0], preferred_element_type=jnp.float32)
    for s in range(1, S):
        acc = acc + jnp.dot(h2[s * B:(s + 1) * B, :], wcr_ref[s],
                            preferred_element_type=jnp.float32)
    out_ref[...] = acc + bc_ref[...]


def second_edition_forward(x, metadata, params, num_class):
    B = x.shape[0]
    x_flat = x.reshape(B, -1).astype(jnp.float32)
    x_aug = jnp.concatenate([x_flat, metadata.astype(jnp.float32)], axis=1)
    S = params["wx"].shape[0]
    K = x_aug.shape[1]

    # one wide projection weight: waug_wide[:, s*128:(s+1)*128] = [wx[s]; wm[s]]
    waug = jnp.concatenate([params["wx"], params["wm"]], axis=1)        # (S, K, 128)
    waug_wide = jnp.transpose(waug, (1, 0, 2)).reshape(K, S * D_MODEL)  # (K, S*128)
    bproj_wide = params["bproj"].reshape(1, S * D_MODEL)                # (1, S*128)

    # fused QKV weights / biases (lane-aligned 128-wide slices in-kernel)
    wqkv = jnp.concatenate([params["wq"], params["wk"], params["wv"]], axis=1)
    bqkv = jnp.concatenate([params["bq"], params["bk"], params["bv"]], axis=1)

    wcr = params["wc"].reshape(S, D_MODEL, num_class)                   # (S, 128, C)

    vmem = pl.BlockSpec(memory_space=pltpu.MemorySpace.VMEM)
    args = (x_aug, waug_wide, bproj_wide,
            wqkv, bqkv,
            params["wo"], params["bo"], params["ln1_g"], params["ln1_b"],
            params["w1"], params["b1"], params["w2"], params["b2"],
            params["ln2_g"], params["ln2_b"],
            wcr, params["bc"])
    return pl.pallas_call(
        functools.partial(_fused_kernel, batch=B, seq=S),
        out_shape=jax.ShapeDtypeStruct((B, num_class), jnp.float32),
        in_specs=[vmem] * len(args),
        out_specs=vmem,
    )(*args)


# ----------------------------------------------------------------------------
# Pure-JAX reference (same math, no Pallas) for a sanity check.
# ----------------------------------------------------------------------------
def _dotp(a, b):
    return jnp.dot(a, b, precision=lax.Precision.HIGHEST)


def reference_forward(x, metadata, p, num_class):
    x_flat = x.reshape(x.shape[0], -1)
    feats = []
    for i in range(p["wx"].shape[0]):
        f = jnp.maximum(_dotp(x_flat, p["wx"][i]) + _dotp(metadata, p["wm"][i])
                        + p["bproj"][i], 0.0)
        feats.append(f[:, None, :])
    feats = jnp.concatenate(feats, axis=1)                         # (B, S, 128)
    B, S, D = feats.shape
    q = _dotp(feats, p["wq"]) + p["bq"]
    k = _dotp(feats, p["wk"]) + p["bk"]
    v = _dotp(feats, p["wv"]) + p["bv"]
    qh = q.reshape(B, S, N_HEAD, HEAD_DIM)
    kh = k.reshape(B, S, N_HEAD, HEAD_DIM)
    vh = v.reshape(B, S, N_HEAD, HEAD_DIM)
    scores = jnp.einsum("bshd,bthd->bhst", qh, kh,
                        precision=lax.Precision.HIGHEST) / math.sqrt(HEAD_DIM)
    attn = jax.nn.softmax(scores, axis=-1)
    o = jnp.einsum("bhst,bthd->bshd", attn, vh,
                   precision=lax.Precision.HIGHEST).reshape(B, S, D)
    o = _dotp(o, p["wo"]) + p["bo"]
    h1 = _layer_norm(feats + o, p["ln1_g"], p["ln1_b"])
    ff = jnp.maximum(_dotp(h1, p["w1"]) + p["b1"], 0.0)
    ff = _dotp(ff, p["w2"]) + p["b2"]
    h2 = _layer_norm(h1 + ff, p["ln2_g"], p["ln2_b"])
    return _dotp(h2.reshape(B, S * D), p["wc"]) + p["bc"]


def init_params(key, num_branch, d_in, d_meta, num_class):
    ks = jax.random.split(key, 16)
    n = lambda k, shape, s: (s * jax.random.normal(k, shape, jnp.float32))
    return {
        "wx": n(ks[0], (num_branch, d_in, D_MODEL), 0.02),
        "wm": n(ks[1], (num_branch, d_meta, D_MODEL), 0.05),
        "bproj": n(ks[2], (num_branch, D_MODEL), 0.05),
        "wq": n(ks[3], (D_MODEL, D_MODEL), 0.05), "bq": n(ks[4], (1, D_MODEL), 0.02),
        "wk": n(ks[5], (D_MODEL, D_MODEL), 0.05), "bk": n(ks[6], (1, D_MODEL), 0.02),
        "wv": n(ks[7], (D_MODEL, D_MODEL), 0.05), "bv": n(ks[8], (1, D_MODEL), 0.02),
        "wo": n(ks[9], (D_MODEL, D_MODEL), 0.05), "bo": n(ks[10], (1, D_MODEL), 0.02),
        "ln1_g": jnp.ones((1, D_MODEL), jnp.float32),
        "ln1_b": jnp.zeros((1, D_MODEL), jnp.float32),
        "w1": n(ks[11], (D_MODEL, D_MODEL), 0.05), "b1": n(ks[12], (1, D_MODEL), 0.02),
        "w2": n(ks[13], (D_MODEL, D_MODEL), 0.05), "b2": n(ks[14], (1, D_MODEL), 0.02),
        "ln2_g": jnp.ones((1, D_MODEL), jnp.float32),
        "ln2_b": jnp.zeros((1, D_MODEL), jnp.float32),
        "wc": n(ks[15], (num_branch * D_MODEL, num_class), 0.05),
        "bc": jnp.zeros((1, num_class), jnp.float32),
    }


if __name__ == "__main__":
    B, C, H, W = 2, 4, 16, 16
    D_META = 8
    NUM_BRANCH = 4
    NUM_CLASS = 5

    key = jax.random.PRNGKey(0)
    kx, km, kp = jax.random.split(key, 3)
    x = jax.random.normal(kx, (B, C, H, W), jnp.float32)        # NCHW, like PyTorch
    metadata = jax.random.normal(km, (B, D_META), jnp.float32)
    params = init_params(kp, NUM_BRANCH, C * H * W, D_META, NUM_CLASS)

    logits = second_edition_forward(x, metadata, params, NUM_CLASS)
    logits = jax.block_until_ready(logits)

    ref = reference_forward(x, metadata, params, NUM_CLASS)
    assert logits.shape == (B, NUM_CLASS)
    assert bool(jnp.all(jnp.isfinite(logits)))
    max_err = float(jnp.max(jnp.abs(logits - ref)))
    assert max_err < 5e-2, f"mismatch vs reference: {max_err}"

    print("KERNEL_OK")
</pallas_src>

<mosaic_0001>
module attributes {stable_mosaic.version = 11 : i64} {
  func.func @_fused_kernel(%arg0: memref<2x1032xf32, #tpu.memory_space<vmem>>, %arg1: memref<1032x512xf32, #tpu.memory_space<vmem>>, %arg2: memref<1x512xf32, #tpu.memory_space<vmem>>, %arg3: memref<128x384xf32, #tpu.memory_space<vmem>>, %arg4: memref<1x384xf32, #tpu.memory_space<vmem>>, %arg5: memref<128x128xf32, #tpu.memory_space<vmem>>, %arg6: memref<1x128xf32, #tpu.memory_space<vmem>>, %arg7: memref<1x128xf32, #tpu.memory_space<vmem>>, %arg8: memref<1x128xf32, #tpu.memory_space<vmem>>, %arg9: memref<128x128xf32, #tpu.memory_space<vmem>>, %arg10: memref<1x128xf32, #tpu.memory_space<vmem>>, %arg11: memref<128x128xf32, #tpu.memory_space<vmem>>, %arg12: memref<1x128xf32, #tpu.memory_space<vmem>>, %arg13: memref<1x128xf32, #tpu.memory_space<vmem>>, %arg14: memref<1x128xf32, #tpu.memory_space<vmem>>, %arg15: memref<4x128x5xf32, #tpu.memory_space<vmem>>, %arg16: memref<1x5xf32, #tpu.memory_space<vmem>>, %arg17: memref<2x5xf32, #tpu.memory_space<vmem>>) attributes {dimension_semantics = [], scalar_prefetch = 0 : i64, scratch_operands = 0 : i64, tpu.core_type = #tpu.core_type<tc>} {
    %c0 = arith.constant 0 : index
    %c0_0 = arith.constant 0 : index
    %0 = vector.load %arg0[%c0, %c0_0] : memref<2x1032xf32, #tpu.memory_space<vmem>>, vector<2x1032xf32>
    %c0_1 = arith.constant 0 : index
    %c0_2 = arith.constant 0 : index
    %1 = vector.load %arg1[%c0_1, %c0_2] : memref<1032x512xf32, #tpu.memory_space<vmem>>, vector<1032x512xf32>
    %cst = arith.constant dense<0.000000e+00> : vector<2x512xf32>
    %2 = tpu.matmul %0, %1, %cst {dimension_numbers = #tpu.dot_dimension_numbers<[1], [0], [0], [1], [0, 0, 1, 1], [], []>} : vector<2x1032xf32>, vector<1032x512xf32>, vector<2x512xf32> -> vector<2x512xf32>
    %c0_3 = arith.constant 0 : index
    %c0_4 = arith.constant 0 : index
    %3 = vector.load %arg2[%c0_3, %c0_4] : memref<1x512xf32, #tpu.memory_space<vmem>>, vector<1x512xf32>
    %4 = vector.broadcast %3 : vector<1x512xf32> to vector<2x512xf32>
    %5 = arith.addf %2, %4 : vector<2x512xf32>
    %cst_5 = arith.constant 0.000000e+00 : f32
    %6 = vector.broadcast %cst_5 : f32 to vector<2x512xf32>
    %7 = arith.maximumf %5, %6 : vector<2x512xf32>
    %8 = vector.extract_strided_slice %7 {offsets = [0, 0], sizes = [2, 128], strides = [1, 1]} : vector<2x512xf32> to vector<2x128xf32>
    %9 = vector.extract_strided_slice %7 {offsets = [0, 128], sizes = [2, 128], strides = [1, 1]} : vector<2x512xf32> to vector<2x128xf32>
    %10 = vector.extract_strided_slice %7 {offsets = [0, 256], sizes = [2, 128], strides = [1, 1]} : vector<2x512xf32> to vector<2x128xf32>
    %11 = vector.extract_strided_slice %7 {offsets = [0, 384], sizes = [2, 128], strides = [1, 1]} : vector<2x512xf32> to vector<2x128xf32>
    %12 = tpu.concatenate %8, %9, %10, %11 in 0 : vector<2x128xf32>, vector<2x128xf32>, vector<2x128xf32>, vector<2x128xf32> -> vector<8x128xf32>
    %c0_6 = arith.constant 0 : index
    %c0_7 = arith.constant 0 : index
    %13 = vector.load %arg3[%c0_6, %c0_7] : memref<128x384xf32, #tpu.memory_space<vmem>>, vector<128x384xf32>
    %cst_8 = arith.constant dense<0.000000e+00> : vector<8x384xf32>
    %14 = tpu.matmul %12, %13, %cst_8 {dimension_numbers = #tpu.dot_dimension_numbers<[1], [0], [0], [1], [0, 0, 1, 1], [], []>} : vector<8x128xf32>, vector<128x384xf32>, vector<8x384xf32> -> vector<8x384xf32>
    %c0_9 = arith.constant 0 : index
    %c0_10 = arith.constant 0 : index
    %15 = vector.load %arg4[%c0_9, %c0_10] : memref<1x384xf32, #tpu.memory_space<vmem>>, vector<1x384xf32>
    %16 = vector.broadcast %15 : vector<1x384xf32> to vector<8x384xf32>
    %17 = arith.addf %14, %16 : vector<8x384xf32>
    %18 = vector.extract_strided_slice %17 {offsets = [0, 0], sizes = [8, 128], strides = [1, 1]} : vector<8x384xf32> to vector<8x128xf32>
    %19 = vector.extract_strided_slice %17 {offsets = [0, 128], sizes = [8, 128], strides = [1, 1]} : vector<8x384xf32> to vector<8x128xf32>
    %20 = vector.extract_strided_slice %17 {offsets = [0, 256], sizes = [8, 128], strides = [1, 1]} : vector<8x384xf32> to vector<8x128xf32>
    %21 = tpu.iota {dimensions = array<i32: 0>} : vector<8x8xi32>
    %22 = tpu.iota {dimensions = array<i32: 1>} : vector<8x8xi32>
    %c2_i32 = arith.constant 2 : i32
    %c0_i32 = arith.constant 0 : i32
    %23 = arith.cmpi eq, %c2_i32, %c0_i32 : i32
    %c1_i32 = arith.constant 1 : i32
    %24 = arith.select %23, %c1_i32, %c2_i32 : i32
    %25 = vector.broadcast %24 : i32 to vector<8x8xi32>
    %26 = arith.remsi %21, %25 : vector<8x8xi32>
    %c0_i32_11 = arith.constant 0 : i32
    %27 = vector.broadcast %c0_i32_11 : i32 to vector<8x8xi32>
    %28 = arith.cmpi ne, %26, %27 : vector<8x8xi32>
    %c0_i32_12 = arith.constant 0 : i32
    %29 = vector.broadcast %c0_i32_12 : i32 to vector<8x8xi32>
    %30 = arith.cmpi slt, %26, %29 : vector<8x8xi32>
    %c0_i32_13 = arith.constant 0 : i32
    %31 = arith.cmpi slt, %24, %c0_i32_13 : i32
    %32 = vector.broadcast %31 : i1 to vector<8x8xi1>
    %33 = vector.broadcast %32 : vector<8x8xi1> to vector<8x8xi1>
    %34 = arith.xori %30, %33 : vector<8x8xi1>
    %35 = arith.andi %34, %28 : vector<8x8xi1>
    %36 = vector.broadcast %24 : i32 to vector<8x8xi32>
    %37 = arith.addi %26, %36 : vector<8x8xi32>
    %38 = arith.select %35, %37, %26 : vector<8x8xi1>, vector<8x8xi32>
    %c2_i32_14 = arith.constant 2 : i32
    %c0_i32_15 = arith.constant 0 : i32
    %39 = arith.cmpi eq, %c2_i32_14, %c0_i32_15 : i32
    %c1_i32_16 = arith.constant 1 : i32
    %40 = arith.select %39, %c1_i32_16, %c2_i32_14 : i32
    %41 = vector.broadcast %40 : i32 to vector<8x8xi32>
    %42 = arith.remsi %22, %41 : vector<8x8xi32>
    %c0_i32_17 = arith.constant 0 : i32
    %43 = vector.broadcast %c0_i32_17 : i32 to vector<8x8xi32>
    %44 = arith.cmpi ne, %42, %43 : vector<8x8xi32>
    %c0_i32_18 = arith.constant 0 : i32
    %45 = vector.broadcast %c0_i32_18 : i32 to vector<8x8xi32>
    %46 = arith.cmpi slt, %42, %45 : vector<8x8xi32>
    %c0_i32_19 = arith.constant 0 : i32
    %47 = arith.cmpi slt, %40, %c0_i32_19 : i32
    %48 = vector.broadcast %47 : i1 to vector<8x8xi1>
    %49 = vector.broadcast %48 : vector<8x8xi1> to vector<8x8xi1>
    %50 = arith.xori %46, %49 : vector<8x8xi1>
    %51 = arith.andi %50, %44 : vector<8x8xi1>
    %52 = vector.broadcast %40 : i32 to vector<8x8xi32>
    %53 = arith.addi %42, %52 : vector<8x8xi32>
    %54 = arith.select %51, %53, %42 : vector<8x8xi1>, vector<8x8xi32>
    %55 = arith.cmpi eq, %38, %54 : vector<8x8xi32>
    %56 = tpu.iota {dimensions = array<i32: 1>} : vector<1x128xi32>
    %cst_20 = arith.constant 0.000000e+00 : f32
    %57 = vector.broadcast %cst_20 : f32 to vector<8x128xf32>
    %c0_i32_21 = arith.constant 0 : i32
    %58 = vector.broadcast %c0_i32_21 : i32 to vector<1x128xi32>
    %59 = arith.cmpi sge, %56, %58 : vector<1x128xi32>
    %c64_i32 = arith.constant 64 : i32
    %60 = vector.broadcast %c64_i32 : i32 to vector<1x128xi32>
    %61 = arith.cmpi slt, %56, %60 : vector<1x128xi32>
    %62 = arith.andi %59, %61 : vector<1x128xi1>
    %cst_22 = arith.constant 1.000000e+00 : f32
    %cst_23 = arith.constant 0.000000e+00 : f32
    %63 = vector.broadcast %cst_22 : f32 to vector<1x128xf32>
    %64 = vector.broadcast %cst_23 : f32 to vector<1x128xf32>
    %65 = arith.select %62, %63, %64 : vector<1x128xi1>, vector<1x128xf32>
    %66 = vector.broadcast %65 : vector<1x128xf32> to vector<8x128xf32>
    %67 = arith.mulf %18, %66 : vector<8x128xf32>
    %68 = tpu.transpose %19, [1, 0] : vector<8x128xf32> -> vector<128x8xf32>
    %cst_24 = arith.constant dense<0.000000e+00> : vector<8x8xf32>
    %69 = tpu.matmul %67, %68, %cst_24 {dimension_numbers = #tpu.dot_dimension_numbers<[1], [0], [0], [1], [0, 0, 1, 1], [], []>} : vector<8x128xf32>, vector<128x8xf32>, vector<8x8xf32> -> vector<8x8xf32>
    %cst_25 = arith.constant 1.250000e-01 : f32
    %70 = vector.broadcast %cst_25 : f32 to vector<8x8xf32>
    %71 = arith.mulf %69, %70 : vector<8x8xf32>
    %cst_26 = arith.constant -1.000000e+30 : f32
    %72 = vector.broadcast %cst_26 : f32 to vector<8x8xf32>
    %73 = arith.select %55, %71, %72 : vector<8x8xi1>, vector<8x8xf32>
    %cst_27 = arith.constant dense<0xFF800000> : vector<8xf32>
    %74 = vector.multi_reduction <maximumf>, %73, %cst_27 [1] : vector<8x8xf32> to vector<8xf32>
    %75 = vector.shape_cast %74 : vector<8xf32> to vector<8x1xf32>
    %76 = vector.broadcast %75 : vector<8x1xf32> to vector<8x8xf32>
    %77 = arith.subf %73, %76 : vector<8x8xf32>
    %78 = math.exp %77 : vector<8x8xf32>
    %cst_28 = arith.constant dense<0.000000e+00> : vector<8xf32>
    %79 = vector.multi_reduction <add>, %78, %cst_28 [1] : vector<8x8xf32> to vector<8xf32>
    %80 = vector.shape_cast %79 : vector<8xf32> to vector<8x1xf32>
    %81 = tpu.reciprocal %80 {approx = true} : vector<8x1xf32> -> vector<8x1xf32>
    %82 = vector.broadcast %81 : vector<8x1xf32> to vector<8x8xf32>
    %83 = arith.mulf %78, %82 : vector<8x8xf32>
    %84 = vector.broadcast %65 : vector<1x128xf32> to vector<8x128xf32>
    %85 = arith.mulf %20, %84 : vector<8x128xf32>
    %cst_29 = arith.constant dense<0.000000e+00> : vector<8x128xf32>
    %86 = tpu.matmul %83, %85, %cst_29 {dimension_numbers = #tpu.dot_dimension_numbers<[1], [0], [0], [1], [0, 0, 1, 1], [], []>} : vector<8x8xf32>, vector<8x128xf32>, vector<8x128xf32> -> vector<8x128xf32>
    %87 = arith.addf %57, %86 : vector<8x128xf32>
    %c64_i32_30 = arith.constant 64 : i32
    %88 = vector.broadcast %c64_i32_30 : i32 to vector<1x128xi32>
    %89 = arith.cmpi sge, %56, %88 : vector<1x128xi32>
    %c128_i32 = arith.constant 128 : i32
    %90 = vector.broadcast %c128_i32 : i32 to vector<1x128xi32>
    %91 = arith.cmpi slt, %56, %90 : vector<1x128xi32>
    %92 = arith.andi %89, %91 : vector<1x128xi1>
    %cst_31 = arith.constant 1.000000e+00 : f32
    %cst_32 = arith.constant 0.000000e+00 : f32
    %93 = vector.broadcast %cst_31 : f32 to vector<1x128xf32>
    %94 = vector.broadcast %cst_32 : f32 to vector<1x128xf32>
    %95 = arith.select %92, %93, %94 : vector<1x128xi1>, vector<1x128xf32>
    %96 = vector.broadcast %95 : vector<1x128xf32> to vector<8x128xf32>
    %97 = arith.mulf %18, %96 : vector<8x128xf32>
    %98 = tpu.transpose %19, [1, 0] : vector<8x128xf32> -> vector<128x8xf32>
    %cst_33 = arith.constant dense<0.000000e+00> : vector<8x8xf32>
    %99 = tpu.matmul %97, %98, %cst_33 {dimension_numbers = #tpu.dot_dimension_numbers<[1], [0], [0], [1], [0, 0, 1, 1], [], []>} : vector<8x128xf32>, vector<128x8xf32>, vector<8x8xf32> -> vector<8x8xf32>
    %cst_34 = arith.constant 1.250000e-01 : f32
    %100 = vector.broadcast %cst_34 : f32 to vector<8x8xf32>
    %101 = arith.mulf %99, %100 : vector<8x8xf32>
    %cst_35 = arith.constant -1.000000e+30 : f32
    %102 = vector.broadcast %cst_35 : f32 to vector<8x8xf32>
    %103 = arith.select %55, %101, %102 : vector<8x8xi1>, vector<8x8xf32>
    %cst_36 = arith.constant dense<0xFF800000> : vector<8xf32>
    %104 = vector.multi_reduction <maximumf>, %103, %cst_36 [1] : vector<8x8xf32> to vector<8xf32>
    %105 = vector.shape_cast %104 : vector<8xf32> to vector<8x1xf32>
    %106 = vector.broadcast %105 : vector<8x1xf32> to vector<8x8xf32>
    %107 = arith.subf %103, %106 : vector<8x8xf32>
    %108 = math.exp %107 : vector<8x8xf32>
    %cst_37 = arith.constant dense<0.000000e+00> : vector<8xf32>
    %109 = vector.multi_reduction <add>, %108, %cst_37 [1] : vector<8x8xf32> to vector<8xf32>
    %110 = vector.shape_cast %109 : vector<8xf32> to vector<8x1xf32>
    %111 = tpu.reciprocal %110 {approx = true} : vector<8x1xf32> -> vector<8x1xf32>
    %112 = vector.broadcast %111 : vector<8x1xf32> to vector<8x8xf32>
    %113 = arith.mulf %108, %112 : vector<8x8xf32>
    %114 = vector.broadcast %95 : vector<1x128xf32> to vector<8x128xf32>
    %115 = arith.mulf %20, %114 : vector<8x128xf32>
    %cst_38 = arith.constant dense<0.000000e+00> : vector<8x128xf32>
    %116 = tpu.matmul %113, %115, %cst_38 {dimension_numbers = #tpu.dot_dimension_numbers<[1], [0], [0], [1], [0, 0, 1, 1], [], []>} : vector<8x8xf32>, vector<8x128xf32>, vector<8x128xf32> -> vector<8x128xf32>
    %117 = arith.addf %87, %116 : vector<8x128xf32>
    %c0_39 = arith.constant 0 : index
    %c0_40 = arith.constant 0 : index
    %118 = vector.load %arg5[%c0_39, %c0_40] : memref<128x128xf32, #tpu.memory_space<vmem>>, vector<128x128xf32>
    %cst_41 = arith.constant dense<0.000000e+00> : vector<8x128xf32>
    %119 = tpu.matmul %117, %118, %cst_41 {dimension_numbers = #tpu.dot_dimension_numbers<[1], [0], [0], [1], [0, 0, 1, 1], [], []>} : vector<8x128xf32>, vector<128x128xf32>, vector<8x128xf32> -> vector<8x128xf32>
    %c0_42 = arith.constant 0 : index
    %c0_43 = arith.constant 0 : index
    %120 = vector.load %arg6[%c0_42, %c0_43] : memref<1x128xf32, #tpu.memory_space<vmem>>, vector<1x128xf32>
    %121 = vector.broadcast %120 : vector<1x128xf32> to vector<8x128xf32>
    %122 = arith.addf %119, %121 : vector<8x128xf32>
    %123 = arith.addf %12, %122 : vector<8x128xf32>
    %c0_44 = arith.constant 0 : index
    %c0_45 = arith.constant 0 : index
    %124 = vector.load %arg7[%c0_44, %c0_45] : memref<1x128xf32, #tpu.memory_space<vmem>>, vector<1x128xf32>
    %c0_46 = arith.constant 0 : index
    %c0_47 = arith.constant 0 : index
    %125 = vector.load %arg8[%c0_46, %c0_47] : memref<1x128xf32, #tpu.memory_space<vmem>>, vector<1x128xf32>
    %cst_48 = arith.constant dense<0.000000e+00> : vector<8xf32>
    %126 = vector.multi_reduction <add>, %123, %cst_48 [1] : vector<8x128xf32> to vector<8xf32>
    %127 = vector.shape_cast %126 : vector<8xf32> to vector<8x1xf32>
    %cst_49 = arith.constant 1.280000e+02 : f32
    %128 = vector.broadcast %cst_49 : f32 to vector<8x1xf32>
    %129 = arith.divf %127, %128 : vector<8x1xf32>
    %130 = vector.broadcast %129 : vector<8x1xf32> to vector<8x128xf32>
    %131 = arith.subf %123, %130 : vector<8x128xf32>
    %132 = arith.mulf %131, %131 : vector<8x128xf32>
    %cst_50 = arith.constant dense<0.000000e+00> : vector<8xf32>
    %133 = vector.multi_reduction <add>, %132, %cst_50 [1] : vector<8x128xf32> to vector<8xf32>
    %134 = vector.shape_cast %133 : vector<8xf32> to vector<8x1xf32>
    %cst_51 = arith.constant 1.280000e+02 : f32
    %135 = vector.broadcast %cst_51 : f32 to vector<8x1xf32>
    %136 = arith.divf %134, %135 : vector<8x1xf32>
    %137 = vector.broadcast %129 : vector<8x1xf32> to vector<8x128xf32>
    %138 = arith.subf %123, %137 : vector<8x128xf32>
    %cst_52 = arith.constant 9.99999974E-6 : f32
    %139 = vector.broadcast %cst_52 : f32 to vector<8x1xf32>
    %140 = arith.addf %136, %139 : vector<8x1xf32>
    %141 = math.rsqrt %140 : vector<8x1xf32>
    %142 = vector.broadcast %141 : vector<8x1xf32> to vector<8x128xf32>
    %143 = arith.mulf %138, %142 : vector<8x128xf32>
    %144 = vector.broadcast %124 : vector<1x128xf32> to vector<8x128xf32>
    %145 = arith.mulf %143, %144 : vector<8x128xf32>
    %146 = vector.broadcast %125 : vector<1x128xf32> to vector<8x128xf32>
    %147 = arith.addf %145, %146 : vector<8x128xf32>
    %c0_53 = arith.constant 0 : index
    %c0_54 = arith.constant 0 : index
    %148 = vector.load %arg9[%c0_53, %c0_54] : memref<128x128xf32, #tpu.memory_space<vmem>>, vector<128x128xf32>
    %cst_55 = arith.constant dense<0.000000e+00> : vector<8x128xf32>
    %149 = tpu.matmul %147, %148, %cst_55 {dimension_numbers = #tpu.dot_dimension_numbers<[1], [0], [0], [1], [0, 0, 1, 1], [], []>} : vector<8x128xf32>, vector<128x128xf32>, vector<8x128xf32> -> vector<8x128xf32>
    %c0_56 = arith.constant 0 : index
    %c0_57 = arith.constant 0 : index
    %150 = vector.load %arg10[%c0_56, %c0_57] : memref<1x128xf32, #tpu.memory_space<vmem>>, vector<1x128xf32>
    %151 = vector.broadcast %150 : vector<1x128xf32> to vector<8x128xf32>
    %152 = arith.addf %149, %151 : vector<8x128xf32>
    %cst_58 = arith.constant 0.000000e+00 : f32
    %153 = vector.broadcast %cst_58 : f32 to vector<8x128xf32>
    %154 = arith.maximumf %152, %153 : vector<8x128xf32>
    %c0_59 = arith.constant 0 : index
    %c0_60 = arith.constant 0 : index
    %155 = vector.load %arg11[%c0_59, %c0_60] : memref<128x128xf32, #tpu.memory_space<vmem>>, vector<128x128xf32>
    %cst_61 = arith.constant dense<0.000000e+00> : vector<8x128xf32>
    %156 = tpu.matmul %154, %155, %cst_61 {dimension_numbers = #tpu.dot_dimension_numbers<[1], [0], [0], [1], [0, 0, 1, 1], [], []>} : vector<8x128xf32>, vector<128x128xf32>, vector<8x128xf32> -> vector<8x128xf32>
    %c0_62 = arith.constant 0 : index
    %c0_63 = arith.constant 0 : index
    %157 = vector.load %arg12[%c0_62, %c0_63] : memref<1x128xf32, #tpu.memory_space<vmem>>, vector<1x128xf32>
    %158 = vector.broadcast %157 : vector<1x128xf32> to vector<8x128xf32>
    %159 = arith.addf %156, %158 : vector<8x128xf32>
    %160 = arith.addf %147, %159 : vector<8x128xf32>
    %c0_64 = arith.constant 0 : index
    %c0_65 = arith.constant 0 : index
    %161 = vector.load %arg13[%c0_64, %c0_65] : memref<1x128xf32, #tpu.memory_space<vmem>>, vector<1x128xf32>
    %c0_66 = arith.constant 0 : index
    %c0_67 = arith.constant 0 : index
    %162 = vector.load %arg14[%c0_66, %c0_67] : memref<1x128xf32, #tpu.memory_space<vmem>>, vector<1x128xf32>
    %cst_68 = arith.constant dense<0.000000e+00> : vector<8xf32>
    %163 = vector.multi_reduction <add>, %160, %cst_68 [1] : vector<8x128xf32> to vector<8xf32>
    %164 = vector.shape_cast %163 : vector<8xf32> to vector<8x1xf32>
    %cst_69 = arith.constant 1.280000e+02 : f32
    %165 = vector.broadcast %cst_69 : f32 to vector<8x1xf32>
    %166 = arith.divf %164, %165 : vector<8x1xf32>
    %167 = vector.broadcast %166 : vector<8x1xf32> to vector<8x128xf32>
    %168 = arith.subf %160, %167 : vector<8x128xf32>
    %169 = arith.mulf %168, %168 : vector<8x128xf32>
    %cst_70 = arith.constant dense<0.000000e+00> : vector<8xf32>
    %170 = vector.multi_reduction <add>, %169, %cst_70 [1] : vector<8x128xf32> to vector<8xf32>
    %171 = vector.shape_cast %170 : vector<8xf32> to vector<8x1xf32>
    %cst_71 = arith.constant 1.280000e+02 : f32
    %172 = vector.broadcast %cst_71 : f32 to vector<8x1xf32>
    %173 = arith.divf %171, %172 : vector<8x1xf32>
    %174 = vector.broadcast %166 : vector<8x1xf32> to vector<8x128xf32>
    %175 = arith.subf %160, %174 : vector<8x128xf32>
    %cst_72 = arith.constant 9.99999974E-6 : f32
    %176 = vector.broadcast %cst_72 : f32 to vector<8x1xf32>
    %177 = arith.addf %173, %176 : vector<8x1xf32>
    %178 = math.rsqrt %177 : vector<8x1xf32>
    %179 = vector.broadcast %178 : vector<8x1xf32> to vector<8x128xf32>
    %180 = arith.mulf %175, %179 : vector<8x128xf32>
    %181 = vector.broadcast %161 : vector<1x128xf32> to vector<8x128xf32>
    %182 = arith.mulf %180, %181 : vector<8x128xf32>
    %183 = vector.broadcast %162 : vector<1x128xf32> to vector<8x128xf32>
    %184 = arith.addf %182, %183 : vector<8x128xf32>
    %185 = vector.extract_strided_slice %184 {offsets = [0, 0], sizes = [2, 128], strides = [1, 1]} : vector<8x128xf32> to vector<2x128xf32>
    %c0_73 = arith.constant 0 : index
    %c0_74 = arith.constant 0 : index
    %c0_75 = arith.constant 0 : index
    %186 = vector.load %arg15[%c0_73, %c0_74, %c0_75] : memref<4x128x5xf32, #tpu.memory_space<vmem>>, vector<1x128x5xf32>
    %187 = vector.shape_cast %186 : vector<1x128x5xf32> to vector<128x5xf32>
    %cst_76 = arith.constant dense<0.000000e+00> : vector<2x5xf32>
    %188 = tpu.matmul %185, %187, %cst_76 {dimension_numbers = #tpu.dot_dimension_numbers<[1], [0], [0], [1], [0, 0, 1, 1], [], []>} : vector<2x128xf32>, vector<128x5xf32>, vector<2x5xf32> -> vector<2x5xf32>
    %189 = vector.extract_strided_slice %184 {offsets = [2, 0], sizes = [2, 128], strides = [1, 1]} : vector<8x128xf32> to vector<2x128xf32>
    %c1 = arith.constant 1 : index
    %c0_77 = arith.constant 0 : index
    %c0_78 = arith.constant 0 : index
    %190 = vector.load %arg15[%c1, %c0_77, %c0_78] : memref<4x128x5xf32, #tpu.memory_space<vmem>>, vector<1x128x5xf32>
    %191 = vector.shape_cast %190 : vector<1x128x5xf32> to vector<128x5xf32>
    %cst_79 = arith.constant dense<0.000000e+00> : vector<2x5xf32>
    %192 = tpu.matmul %189, %191, %cst_79 {dimension_numbers = #tpu.dot_dimension_numbers<[1], [0], [0], [1], [0, 0, 1, 1], [], []>} : vector<2x128xf32>, vector<128x5xf32>, vector<2x5xf32> -> vector<2x5xf32>
    %193 = arith.addf %188, %192 : vector<2x5xf32>
    %194 = vector.extract_strided_slice %184 {offsets = [4, 0], sizes = [2, 128], strides = [1, 1]} : vector<8x128xf32> to vector<2x128xf32>
    %c2 = arith.constant 2 : index
    %c0_80 = arith.constant 0 : index
    %c0_81 = arith.constant 0 : index
    %195 = vector.load %arg15[%c2, %c0_80, %c0_81] : memref<4x128x5xf32, #tpu.memory_space<vmem>>, vector<1x128x5xf32>
    %196 = vector.shape_cast %195 : vector<1x128x5xf32> to vector<128x5xf32>
    %cst_82 = arith.constant dense<0.000000e+00> : vector<2x5xf32>
    %197 = tpu.matmul %194, %196, %cst_82 {dimension_numbers = #tpu.dot_dimension_numbers<[1], [0], [0], [1], [0, 0, 1, 1], [], []>} : vector<2x128xf32>, vector<128x5xf32>, vector<2x5xf32> -> vector<2x5xf32>
    %198 = arith.addf %193, %197 : vector<2x5xf32>
    %199 = vector.extract_strided_slice %184 {offsets = [6, 0], sizes = [2, 128], strides = [1, 1]} : vector<8x128xf32> to vector<2x128xf32>
    %c3 = arith.constant 3 : index
    %c0_83 = arith.constant 0 : index
    %c0_84 = arith.constant 0 : index
    %200 = vector.load %arg15[%c3, %c0_83, %c0_84] : memref<4x128x5xf32, #tpu.memory_space<vmem>>, vector<1x128x5xf32>
    %201 = vector.shape_cast %200 : vector<1x128x5xf32> to vector<128x5xf32>
    %cst_85 = arith.constant dense<0.000000e+00> : vector<2x5xf32>
    %202 = tpu.matmul %199, %201, %cst_85 {dimension_numbers = #tpu.dot_dimension_numbers<[1], [0], [0], [1], [0, 0, 1, 1], [], []>} : vector<2x128xf32>, vector<128x5xf32>, vector<2x5xf32> -> vector<2x5xf32>
    %203 = arith.addf %198, %202 : vector<2x5xf32>
    %c0_86 = arith.constant 0 : index
    %c0_87 = arith.constant 0 : index
    %204 = vector.load %arg16[%c0_86, %c0_87] : memref<1x5xf32, #tpu.memory_space<vmem>>, vector<1x5xf32>
    %205 = vector.broadcast %204 : vector<1x5xf32> to vector<2x5xf32>
    %206 = arith.addf %203, %205 : vector<2x5xf32>
    %c0_88 = arith.constant 0 : index
    %c0_89 = arith.constant 0 : index
    %207 = vector.load %arg17[%c0_88, %c0_89] : memref<2x5xf32, #tpu.memory_space<vmem>>, vector<2x5xf32>
    tpu.vector_store %arg17[%c0_88, %c0_89], %206 {strides = array<i32>} : memref<2x5xf32, #tpu.memory_space<vmem>>, vector<2x5xf32>,
    return
  }
}

</mosaic_0001>

<llo_original>
// kernel: tpu_custom_call.1
$region0: #{tpu_custom_call.1}
  #allocation0 [shape = 'u32[]', space=smem, size = 0x4, offset = 0x4, fixed_abs, tag = 'smem constant byte address 0x4 - core index']
  #allocation1 [shape = 'u32[144,128]{1,0:T(1,128)}', space=vmem, size = 0x12000, scoped, tag = 'internal scratch']
  %s0 = inlined_call_operand.hbm [shape: f32[2,1032], index: 0, kind: input, shape index: {}]
  %s1 = inlined_call_operand.hbm [shape: f32[1032,512], index: 1, kind: input, shape index: {}]
  %s2 = inlined_call_operand.hbm [shape: f32[1,512], index: 2, kind: input, shape index: {}]
  %s3 = inlined_call_operand.hbm [shape: f32[128,384], index: 3, kind: input, shape index: {}]
  %s4 = inlined_call_operand.hbm [shape: f32[1,384], index: 4, kind: input, shape index: {}]
  %s5 = inlined_call_operand.hbm [shape: f32[128,128], index: 5, kind: input, shape index: {}]
  %s6 = inlined_call_operand.hbm [shape: f32[1,128], index: 6, kind: input, shape index: {}]
  %s7 = inlined_call_operand.hbm [shape: f32[1,128], index: 7, kind: input, shape index: {}]
  %s8 = inlined_call_operand.hbm [shape: f32[1,128], index: 8, kind: input, shape index: {}]
  %s9 = inlined_call_operand.hbm [shape: f32[128,128], index: 9, kind: input, shape index: {}]
  %s10 = inlined_call_operand.hbm [shape: f32[1,128], index: 10, kind: input, shape index: {}]
  %s11 = inlined_call_operand.hbm [shape: f32[128,128], index: 11, kind: input, shape index: {}]
  %s12 = inlined_call_operand.hbm [shape: f32[1,128], index: 12, kind: input, shape index: {}]
  %s13 = inlined_call_operand.hbm [shape: f32[1,128], index: 13, kind: input, shape index: {}]
  %s14 = inlined_call_operand.hbm [shape: f32[1,128], index: 14, kind: input, shape index: {}]
  %s15 = inlined_call_operand.vmem [shape: f32[4,128,5], index: 15, kind: input, shape index: {}]
  %s16 = inlined_call_operand.hbm [shape: f32[1,5], index: 16, kind: input, shape index: {}]
  %s17 = inlined_call_operand.hbm [shape: f32[2,5], index: 17, kind: output, shape index: {}]
  %s18 = sld [smem:[#allocation0]]
  $region142: #{tpu_custom_call.1} parent=0
    _
  %s20 = ssub.s32 1, %s18
  %s21 = scalar_select 0, %s20, %s18
  $region1: #{tpu_custom_call.1} parent=0
    #allocation2 [shape = 'u8[9216]{0}', space=vmem, size = 0x2400, scoped, tag = 'input window, operand 0, single buffered']
    #allocation3 [shape = 's32[1]{0}', space=sflag, size = 0x4, scoped, tag = 'scoped memory for tpu_custom_call.1']
    #allocation4 [shape = 's32[1]{0}', space=sflag, size = 0x4, scoped, tag = 'scoped memory for tpu_custom_call.1']
    #allocation5 [shape = 'u8[2113536]{0}', space=vmem, size = 0x204000, scoped, tag = 'input window, operand 1, single buffered']
    #allocation6 [shape = 's32[1]{0}', space=sflag, size = 0x4, scoped, tag = 'scoped memory for tpu_custom_call.1']
    #allocation7 [shape = 'u8[2048]{0}', space=vmem, size = 0x800, scoped, tag = 'input window, operand 2, single buffered']
    #allocation8 [shape = 'u8[196608]{0}', space=vmem, size = 0x30000, scoped, tag = 'input window, operand 3, single buffered']
    #allocation9 [shape = 's32[1]{0}', space=sflag, size = 0x4, scoped, tag = 'scoped memory for tpu_custom_call.1']
    #allocation10 [shape = 'u8[1536]{0}', space=vmem, size = 0x800, scoped, tag = 'input window, operand 4, single buffered']
    #allocation11 [shape = 'u8[65536]{0}', space=vmem, size = 0x10000, scoped, tag = 'input window, operand 5, single buffered']
    #allocation12 [shape = 's32[1]{0}', space=sflag, size = 0x4, scoped, tag = 'scoped memory for tpu_custom_call.1']
    #allocation13 [shape = 'u8[512]{0}', space=vmem, size = 0x400, scoped, tag = 'input window, operand 6, single buffered']
    #allocation14 [shape = 'u8[512]{0}', space=vmem, size = 0x400, scoped, tag = 'input window, operand 7, single buffered']
    #allocation15 [shape = 's32[1]{0}', space=sflag, size = 0x4, scoped, tag = 'scoped memory for tpu_custom_call.1']
    #allocation16 [shape = 'u8[512]{0}', space=vmem, size = 0x400, scoped, tag = 'input window, operand 8, single buffered']
    #allocation17 [shape = 'u8[65536]{0}', space=vmem, size = 0x10000, scoped, tag = 'input window, operand 9, single buffered']
    #allocation18 [shape = 's32[1]{0}', space=sflag, size = 0x4, scoped, tag = 'scoped memory for tpu_custom_call.1']
    #allocation19 [shape = 'u8[512]{0}', space=vmem, size = 0x400, scoped, tag = 'input window, operand 10, single buffered']
    #allocation20 [shape = 'u8[65536]{0}', space=vmem, size = 0x10000, scoped, tag = 'input window, operand 11, single buffered']
    #allocation21 [shape = 's32[1]{0}', space=sflag, size = 0x4, scoped, tag = 'scoped memory for tpu_custom_call.1']
    #allocation22 [shape = 'u8[512]{0}', space=vmem, size = 0x400, scoped, tag = 'input window, operand 12, single buffered']
    #allocation23 [shape = 'u8[512]{0}', space=vmem, size = 0x400, scoped, tag = 'input window, operand 13, single buffered']
    #allocation24 [shape = 's32[1]{0}', space=sflag, size = 0x4, scoped, tag = 'scoped memory for tpu_custom_call.1']
    #allocation25 [shape = 'u8[512]{0}', space=vmem, size = 0x400, scoped, tag = 'input window, operand 14, single buffered']
    #allocation26 [shape = 'u8[512]{0}', space=vmem, size = 0x400, scoped, tag = 'input window, operand 16, single buffered']
    #allocation27 [shape = 's32[1]{0}', space=sflag, size = 0x4, scoped, tag = 'scoped memory for tpu_custom_call.1']
    #allocation28 [shape = 'u8[1024]{0}', space=vmem, size = 0x400, scoped, tag = 'output window, operand 0, single buffered']
    %22 = vsyncpa [#allocation3], 0
    %23 = vsyncpa [#allocation6], 0
    %24 = vsyncpa [#allocation9], 0
    %25 = vsyncpa [#allocation12], 0
    %26 = vsyncpa [#allocation15], 0
    %27 = vsyncpa [#allocation18], 0
    %28 = vsyncpa [#allocation21], 0
    %29 = vsyncpa [#allocation24], 0
    %30 = vsyncpa [#allocation27], 0
    %31 = vsyncpa [#allocation4], 0
    // Predicated region
    $region2: #{tpu_custom_call.1} parent=1 // pred_check
      _
    $region3: #{tpu_custom_call.1} parent=1 // pred_check_branch
      %33 = sbr.rel (0) target = $region5
    $region4: #{tpu_custom_call.1} parent=1 // pred_region
      %s35 = ssub.s32 288, 288
      %36 = vsyncadd [#allocation3], %s35
      %s38 = sshll.u32 [#allocation2], 4
      %s39 = int_to_ptr.vmem [resolvable:$true] %s38
      %41 = dma.hbm_to_vmem [thread:$0]  %s0, 288, %s39, [#allocation3]
    $region5: #{tpu_custom_call.1} parent=1 // pred_fallthru
      _
    // Predicated region
    $region6: #{tpu_custom_call.1} parent=1 // pred_check
      _
    $region7: #{tpu_custom_call.1} parent=1 // pred_check_branch
      %43 = sbr.rel (0) target = $region9
    $region8: #{tpu_custom_call.1} parent=1 // pred_region
      %s45 = ssub.s32 66048, 66048
      %46 = vsyncadd [#allocation6], %s45
      %s47 = sshll.u32 [#allocation5], 4
      %s48 = int_to_ptr.vmem [resolvable:$true] %s47
      %53 = dma.hbm_to_vmem [thread:$0]  %s1, 66048, %s48, [#allocation6], 512, 512, 32
    $region9: #{tpu_custom_call.1} parent=1 // pred_fallthru
      _
    // Predicated region
    $region10: #{tpu_custom_call.1} parent=1 // pred_check
      _
    $region11: #{tpu_custom_call.1} parent=1 // pred_check_branch
      %55 = sbr.rel (0) target = $region13
    $region12: #{tpu_custom_call.1} parent=1 // pred_region
      %s57 = ssub.s32 64, 64
      %58 = vsyncadd [#allocation6], %s57
      %s60 = sshll.u32 [#allocation7], 4
      %s61 = int_to_ptr.vmem [resolvable:$true] %s60
      %63 = dma.hbm_to_vmem [thread:$0]  %s2, 64, %s61, [#allocation6]
    $region13: #{tpu_custom_call.1} parent=1 // pred_fallthru
      _
    // Predicated region
    $region14: #{tpu_custom_call.1} parent=1 // pred_check
      _
    $region15: #{tpu_custom_call.1} parent=1 // pred_check_branch
      %65 = sbr.rel (0) target = $region17
    $region16: #{tpu_custom_call.1} parent=1 // pred_region
      %s67 = ssub.s32 6144, 6144
      %68 = vsyncadd [#allocation9], %s67
      %s69 = sshll.u32 [#allocation8], 4
      %s70 = int_to_ptr.vmem [resolvable:$true] %s69
      %75 = dma.hbm_to_vmem [thread:$0]  %s3, 6144, %s70, [#allocation9], 384, 384, 24
    $region17: #{tpu_custom_call.1} parent=1 // pred_fallthru
      _
    // Predicated region
    $region18: #{tpu_custom_call.1} parent=1 // pred_check
      _
    $region19: #{tpu_custom_call.1} parent=1 // pred_check_branch
      %77 = sbr.rel (0) target = $region21
    $region20: #{tpu_custom_call.1} parent=1 // pred_region
      %s79 = ssub.s32 48, 48
      %80 = vsyncadd [#allocation9], %s79
      %s82 = sshll.u32 [#allocation10], 4
      %s83 = int_to_ptr.vmem [resolvable:$true] %s82
      %85 = dma.hbm_to_vmem [thread:$0]  %s4, 48, %s83, [#allocation9]
    $region21: #{tpu_custom_call.1} parent=1 // pred_fallthru
      _
    // Predicated region
    $region22: #{tpu_custom_call.1} parent=1 // pred_check
      _
    $region23: #{tpu_custom_call.1} parent=1 // pred_check_branch
      %87 = sbr.rel (0) target = $region25
    $region24: #{tpu_custom_call.1} parent=1 // pred_region
      %s89 = ssub.s32 2048, 2048
      %90 = vsyncadd [#allocation12], %s89
      %s91 = sshll.u32 [#allocation11], 4
      %s92 = int_to_ptr.vmem [resolvable:$true] %s91
      %97 = dma.hbm_to_vmem [thread:$0]  %s5, 2048, %s92, [#allocation12], 128, 128, 8
    $region25: #{tpu_custom_call.1} parent=1 // pred_fallthru
      _
    // Predicated region
    $region26: #{tpu_custom_call.1} parent=1 // pred_check
      _
    $region27: #{tpu_custom_call.1} parent=1 // pred_check_branch
      %99 = sbr.rel (0) target = $region29
    $region28: #{tpu_custom_call.1} parent=1 // pred_region
      %s101 = ssub.s32 16, 16
      %102 = vsyncadd [#allocation12], %s101
      %s104 = sshll.u32 [#allocation13], 4
      %s105 = int_to_ptr.vmem [resolvable:$true] %s104
      %107 = dma.hbm_to_vmem [thread:$0]  %s6, 16, %s105, [#allocation12]
    $region29: #{tpu_custom_call.1} parent=1 // pred_fallthru
      _
    // Predicated region
    $region30: #{tpu_custom_call.1} parent=1 // pred_check
      _
    $region31: #{tpu_custom_call.1} parent=1 // pred_check_branch
      %109 = sbr.rel (0) target = $region33
    $region32: #{tpu_custom_call.1} parent=1 // pred_region
      %s111 = ssub.s32 16, 16
      %112 = vsyncadd [#allocation15], %s111
      %s114 = sshll.u32 [#allocation14], 4
      %s115 = int_to_ptr.vmem [resolvable:$true] %s114
      %117 = dma.hbm_to_vmem [thread:$0]  %s7, 16, %s115, [#allocation15]
    $region33: #{tpu_custom_call.1} parent=1 // pred_fallthru
      _
    // Predicated region
    $region34: #{tpu_custom_call.1} parent=1 // pred_check
      _
    $region35: #{tpu_custom_call.1} parent=1 // pred_check_branch
      %119 = sbr.rel (0) target = $region37
    $region36: #{tpu_custom_call.1} parent=1 // pred_region
      %s121 = ssub.s32 16, 16
      %122 = vsyncadd [#allocation15], %s121
      %s124 = sshll.u32 [#allocation16], 4
      %s125 = int_to_ptr.vmem [resolvable:$true] %s124
      %127 = dma.hbm_to_vmem [thread:$0]  %s8, 16, %s125, [#allocation15]
    $region37: #{tpu_custom_call.1} parent=1 // pred_fallthru
      _
    // Predicated region
    $region38: #{tpu_custom_call.1} parent=1 // pred_check
      _
    $region39: #{tpu_custom_call.1} parent=1 // pred_check_branch
      %129 = sbr.rel (0) target = $region41
    $region40: #{tpu_custom_call.1} parent=1 // pred_region
      %s131 = ssub.s32 2048, 2048
      %132 = vsyncadd [#allocation18], %s131
      %s133 = sshll.u32 [#allocation17], 4
      %s134 = int_to_ptr.vmem [resolvable:$true] %s133
      %139 = dma.hbm_to_vmem [thread:$0]  %s9, 2048, %s134, [#allocation18], 128, 128, 8
    $region41: #{tpu_custom_call.1} parent=1 // pred_fallthru
      _
    // Predicated region
    $region42: #{tpu_custom_call.1} parent=1 // pred_check
      _
    $region43: #{tpu_custom_call.1} parent=1 // pred_check_branch
      %141 = sbr.rel (0) target = $region45
    $region44: #{tpu_custom_call.1} parent=1 // pred_region
      %s143 = ssub.s32 16, 16
      %144 = vsyncadd [#allocation18], %s143
      %s146 = sshll.u32 [#allocation19], 4
      %s147 = int_to_ptr.vmem [resolvable:$true] %s146
      %149 = dma.hbm_to_vmem [thread:$0]  %s10, 16, %s147, [#allocation18]
    $region45: #{tpu_custom_call.1} parent=1 // pred_fallthru
      _
    // Predicated region
    $region46: #{tpu_custom_call.1} parent=1 // pred_check
      _
    $region47: #{tpu_custom_call.1} parent=1 // pred_check_branch
      %151 = sbr.rel (0) target = $region49
    $region48: #{tpu_custom_call.1} parent=1 // pred_region
      %s153 = ssub.s32 2048, 2048
      %154 = vsyncadd [#allocation21], %s153
      %s155 = sshll.u32 [#allocation20], 4
      %s156 = int_to_ptr.vmem [resolvable:$true] %s155
      %161 = dma.hbm_to_vmem [thread:$0]  %s11, 2048, %s156, [#allocation21], 128, 128, 8
    $region49: #{tpu_custom_call.1} parent=1 // pred_fallthru
      _
    // Predicated region
    $region50: #{tpu_custom_call.1} parent=1 // pred_check
      _
    $region51: #{tpu_custom_call.1} parent=1 // pred_check_branch
      %163 = sbr.rel (0) target = $region53
    $region52: #{tpu_custom_call.1} parent=1 // pred_region
      %s165 = ssub.s32 16, 16
      %166 = vsyncadd [#allocation21], %s165
      %s168 = sshll.u32 [#allocation22], 4
      %s169 = int_to_ptr.vmem [resolvable:$true] %s168
      %171 = dma.hbm_to_vmem [thread:$0]  %s12, 16, %s169, [#allocation21]
    $region53: #{tpu_custom_call.1} parent=1 // pred_fallthru
      _
    // Predicated region
    $region54: #{tpu_custom_call.1} parent=1 // pred_check
      _
    $region55: #{tpu_custom_call.1} parent=1 // pred_check_branch
      %173 = sbr.rel (0) target = $region57
    $region56: #{tpu_custom_call.1} parent=1 // pred_region
      %s175 = ssub.s32 16, 16
      %176 = vsyncadd [#allocation24], %s175
      %s178 = sshll.u32 [#allocation23], 4
      %s179 = int_to_ptr.vmem [resolvable:$true] %s178
      %181 = dma.hbm_to_vmem [thread:$0]  %s13, 16, %s179, [#allocation24]
    $region57: #{tpu_custom_call.1} parent=1 // pred_fallthru
      _
    // Predicated region
    $region58: #{tpu_custom_call.1} parent=1 // pred_check
      _
    $region59: #{tpu_custom_call.1} parent=1 // pred_check_branch
      %183 = sbr.rel (0) target = $region61
    $region60: #{tpu_custom_call.1} parent=1 // pred_region
      %s185 = ssub.s32 16, 16
      %186 = vsyncadd [#allocation24], %s185
      %s188 = sshll.u32 [#allocation25], 4
      %s189 = int_to_ptr.vmem [resolvable:$true] %s188
      %191 = dma.hbm_to_vmem [thread:$0]  %s14, 16, %s189, [#allocation24]
    $region61: #{tpu_custom_call.1} parent=1 // pred_fallthru
      _
    // Predicated region
    $region62: #{tpu_custom_call.1} parent=1 // pred_check
      _
    $region63: #{tpu_custom_call.1} parent=1 // pred_check_branch
      %193 = sbr.rel (0) target = $region65
    $region64: #{tpu_custom_call.1} parent=1 // pred_region
      _
    $region65: #{tpu_custom_call.1} parent=1 // pred_fallthru
      _
    // Predicated region
    $region66: #{tpu_custom_call.1} parent=1 // pred_check
      _
    $region67: #{tpu_custom_call.1} parent=1 // pred_check_branch
      %195 = sbr.rel (0) target = $region69
    $region68: #{tpu_custom_call.1} parent=1 // pred_region
      %s197 = ssub.s32 16, 16
      %198 = vsyncadd [#allocation27], %s197
      %s200 = sshll.u32 [#allocation26], 4
      %s201 = int_to_ptr.vmem [resolvable:$true] %s200
      %203 = dma.hbm_to_vmem [thread:$0]  %s16, 16, %s201, [#allocation27]
    $region69: #{tpu_custom_call.1} parent=1 // pred_fallthru
      _
    // Predicated region
    $region70: #{tpu_custom_call.1} parent=1 // pred_check
      _
    $region71: #{tpu_custom_call.1} parent=1 // pred_check_branch
      %205 = sbr.rel (0) target = $region73
    $region72: #{tpu_custom_call.1} parent=1 // pred_region
      %206 = dma.done [#allocation3], 288
    $region73: #{tpu_custom_call.1} parent=1 // pred_fallthru
      _
    // Predicated region
    $region74: #{tpu_custom_call.1} parent=1 // pred_check
      _
    $region75: #{tpu_custom_call.1} parent=1 // pred_check_branch
      %208 = sbr.rel (0) target = $region77
    $region76: #{tpu_custom_call.1} parent=1 // pred_region
      %209 = dma.done [#allocation6], 66048
    $region77: #{tpu_custom_call.1} parent=1 // pred_fallthru
      _
    // Predicated region
    $region78: #{tpu_custom_call.1} parent=1 // pred_check
      _
    $region79: #{tpu_custom_call.1} parent=1 // pred_check_branch
      %211 = sbr.rel (0) target = $region81
    $region80: #{tpu_custom_call.1} parent=1 // pred_region
      %212 = dma.done [#allocation6], 64
    $region81: #{tpu_custom_call.1} parent=1 // pred_fallthru
      _
    // Predicated region
    $region82: #{tpu_custom_call.1} parent=1 // pred_check
      _
    $region83: #{tpu_custom_call.1} parent=1 // pred_check_branch
      %214 = sbr.rel (0) target = $region85
    $region84: #{tpu_custom_call.1} parent=1 // pred_region
      %215 = dma.done [#allocation9], 6144
    $region85: #{tpu_custom_call.1} parent=1 // pred_fallthru
      _
    // Predicated region
    $region86: #{tpu_custom_call.1} parent=1 // pred_check
      _
    $region87: #{tpu_custom_call.1} parent=1 // pred_check_branch
      %217 = sbr.rel (0) target = $region89
    $region88: #{tpu_custom_call.1} parent=1 // pred_region
      %218 = dma.done [#allocation9], 48
    $region89: #{tpu_custom_call.1} parent=1 // pred_fallthru
      _
    // Predicated region
    $region90: #{tpu_custom_call.1} parent=1 // pred_check
      _
    $region91: #{tpu_custom_call.1} parent=1 // pred_check_branch
      %220 = sbr.rel (0) target = $region93
    $region92: #{tpu_custom_call.1} parent=1 // pred_region
      %221 = dma.done [#allocation12], 2048
    $region93: #{tpu_custom_call.1} parent=1 // pred_fallthru
      _
    // Predicated region
    $region94: #{tpu_custom_call.1} parent=1 // pred_check
      _
    $region95: #{tpu_custom_call.1} parent=1 // pred_check_branch
      %223 = sbr.rel (0) target = $region97
    $region96: #{tpu_custom_call.1} parent=1 // pred_region
      %224 = dma.done [#allocation12], 16
    $region97: #{tpu_custom_call.1} parent=1 // pred_fallthru
      _
    // Predicated region
    $region98: #{tpu_custom_call.1} parent=1 // pred_check
      _
    $region99: #{tpu_custom_call.1} parent=1 // pred_check_branch
      %226 = sbr.rel (0) target = $region101
    $region100: #{tpu_custom_call.1} parent=1 // pred_region
      %227 = dma.done [#allocation15], 16
    $region101: #{tpu_custom_call.1} parent=1 // pred_fallthru
      _
    // Predicated region
    $region102: #{tpu_custom_call.1} parent=1 // pred_check
      _
    $region103: #{tpu_custom_call.1} parent=1 // pred_check_branch
      %229 = sbr.rel (0) target = $region105
    $region104: #{tpu_custom_call.1} parent=1 // pred_region
      %230 = dma.done [#allocation15], 16
    $region105: #{tpu_custom_call.1} parent=1 // pred_fallthru
      _
    // Predicated region
    $region106: #{tpu_custom_call.1} parent=1 // pred_check
      _
    $region107: #{tpu_custom_call.1} parent=1 // pred_check_branch
      %232 = sbr.rel (0) target = $region109
    $region108: #{tpu_custom_call.1} parent=1 // pred_region
      %233 = dma.done [#allocation18], 2048
    $region109: #{tpu_custom_call.1} parent=1 // pred_fallthru
      _
    // Predicated region
    $region110: #{tpu_custom_call.1} parent=1 // pred_check
      _
    $region111: #{tpu_custom_call.1} parent=1 // pred_check_branch
      %235 = sbr.rel (0) target = $region113
    $region112: #{tpu_custom_call.1} parent=1 // pred_region
      %236 = dma.done [#allocation18], 16
    $region113: #{tpu_custom_call.1} parent=1 // pred_fallthru
      _
    // Predicated region
    $region114: #{tpu_custom_call.1} parent=1 // pred_check
      _
    $region115: #{tpu_custom_call.1} parent=1 // pred_check_branch
      %238 = sbr.rel (0) target = $region117
    $region116: #{tpu_custom_call.1} parent=1 // pred_region
      %239 = dma.done [#allocation21], 2048
    $region117: #{tpu_custom_call.1} parent=1 // pred_fallthru
      _
    // Predicated region
    $region118: #{tpu_custom_call.1} parent=1 // pred_check
      _
    $region119: #{tpu_custom_call.1} parent=1 // pred_check_branch
      %241 = sbr.rel (0) target = $region121
    $region120: #{tpu_custom_call.1} parent=1 // pred_region
      %242 = dma.done [#allocation21], 16
    $region121: #{tpu_custom_call.1} parent=1 // pred_fallthru
      _
    // Predicated region
    $region122: #{tpu_custom_call.1} parent=1 // pred_check
      _
    $region123: #{tpu_custom_call.1} parent=1 // pred_check_branch
      %244 = sbr.rel (0) target = $region125
    $region124: #{tpu_custom_call.1} parent=1 // pred_region
      %245 = dma.done [#allocation24], 16
    $region125: #{tpu_custom_call.1} parent=1 // pred_fallthru
      _
    // Predicated region
    $region126: #{tpu_custom_call.1} parent=1 // pred_check
      _
    $region127: #{tpu_custom_call.1} parent=1 // pred_check_branch
      %247 = sbr.rel (0) target = $region129
    $region128: #{tpu_custom_call.1} parent=1 // pred_region
      %248 = dma.done [#allocation24], 16
    $region129: #{tpu_custom_call.1} parent=1 // pred_fallthru
      _
    // Predicated region
    $region130: #{tpu_custom_call.1} parent=1 // pred_check
      _
    $region131: #{tpu_custom_call.1} parent=1 // pred_check_branch
      %250 = sbr.rel (0) target = $region133
    $region132: #{tpu_custom_call.1} parent=1 // pred_region
      %251 = dma.done [#allocation27], 16
    $region133: #{tpu_custom_call.1} parent=1 // pred_fallthru
      _
    %v252 = vld [vmem:[#allocation2] sm:$0xff]
    %v253 = vld [vmem:[#allocation2 + $0x8] sm:$0xff]
    %v254 = vld [vmem:[#allocation2 + $0x10] sm:$0x3]
    %v255 = vld [vmem:[#allocation5] sm:$0xff]
    %v256 = vld [vmem:[#allocation5 + $0x8] sm:$0xff]
    %v257 = vld [vmem:[#allocation5 + $0x10] sm:$0xff]
    %v258 = vld [vmem:[#allocation5 + $0x18] sm:$0xff]
    %v259 = vld [vmem:[#allocation5 + $0x20] sm:$0xff]
    %v260 = vld [vmem:[#allocation5 + $0x28] sm:$0xff]
    %v261 = vld [vmem:[#allocation5 + $0x30] sm:$0xff]
    %v262 = vld [vmem:[#allocation5 + $0x38] sm:$0xff]
    %v263 = vld [vmem:[#allocation5 + $0x40] sm:$0xff]
    %v264 = vld [vmem:[#allocation5 + $0x48] sm:$0xff]
    %v265 = vld [vmem:[#allocation5 + $0x50] sm:$0xff]
    %v266 = vld [vmem:[#allocation5 + $0x58] sm:$0xff]
    %v267 = vld [vmem:[#allocation5 + $0x60] sm:$0xff]
    %v268 = vld [vmem:[#allocation5 + $0x68] sm:$0xff]
    %v269 = vld [vmem:[#allocation5 + $0x70] sm:$0xff]
    %v270 = vld [vmem:[#allocation5 + $0x78] sm:$0xff]
    %v271 = vld [vmem:[#allocation5 + $0x80] sm:$0xff]
    %v272 = vld [vmem:[#allocation5 + $0x88] sm:$0xff]
    %v273 = vld [vmem:[#allocation5 + $0x90] sm:$0xff]
    %v274 = vld [vmem:[#allocation5 + $0x98] sm:$0xff]
    %v275 = vld [vmem:[#allocation5 + $0xa0] sm:$0xff]
    %v276 = vld [vmem:[#allocation5 + $0xa8] sm:$0xff]
    %v277 = vld [vmem:[#allocation5 + $0xb0] sm:$0xff]
    %v278 = vld [vmem:[#allocation5 + $0xb8] sm:$0xff]
    %v279 = vld [vmem:[#allocation5 + $0xc0] sm:$0xff]
    %v280 = vld [vmem:[#allocation5 + $0xc8] sm:$0xff]
    %v281 = vld [vmem:[#allocation5 + $0xd0] sm:$0xff]
    %v282 = vld [vmem:[#allocation5 + $0xd8] sm:$0xff]
    %v283 = vld [vmem:[#allocation5 + $0xe0] sm:$0xff]
    %v284 = vld [vmem:[#allocation5 + $0xe8] sm:$0xff]
    %v285 = vld [vmem:[#allocation5 + $0xf0] sm:$0xff]
    %v286 = vld [vmem:[#allocation5 + $0xf8] sm:$0xff]
    %v287 = vld [vmem:[#allocation5 + $0x100] sm:$0xff]
    %v288 = vld [vmem:[#allocation5 + $0x108] sm:$0xff]
    %v289 = vld [vmem:[#allocation5 + $0x110] sm:$0xff]
    %v290 = vld [vmem:[#allocation5 + $0x118] sm:$0xff]
    %v291 = vld [vmem:[#allocation5 + $0x120] sm:$0xff]
    %v292 = vld [vmem:[#allocation5 + $0x128] sm:$0xff]
    %v293 = vld [vmem:[#allocation5 + $0x130] sm:$0xff]
    %v294 = vld [vmem:[#allocation5 + $0x138] sm:$0xff]
    %v295 = vld [vmem:[#allocation5 + $0x140] sm:$0xff]
    %v296 = vld [vmem:[#allocation5 + $0x148] sm:$0xff]
    %v297 = vld [vmem:[#allocation5 + $0x150] sm:$0xff]
    %v298 = vld [vmem:[#allocation5 + $0x158] sm:$0xff]
    %v299 = vld [vmem:[#allocation5 + $0x160] sm:$0xff]
    %v300 = vld [vmem:[#allocation5 + $0x168] sm:$0xff]
    %v301 = vld [vmem:[#allocation5 + $0x170] sm:$0xff]
    %v302 = vld [vmem:[#allocation5 + $0x178] sm:$0xff]
    %v303 = vld [vmem:[#allocation5 + $0x180] sm:$0xff]
    %v304 = vld [vmem:[#allocation5 + $0x188] sm:$0xff]
    %v305 = vld [vmem:[#allocation5 + $0x190] sm:$0xff]
    %v306 = vld [vmem:[#allocation5 + $0x198] sm:$0xff]
    %v307 = vld [vmem:[#allocation5 + $0x1a0] sm:$0xff]
    %v308 = vld [vmem:[#allocation5 + $0x1a8] sm:$0xff]
    %v309 = vld [vmem:[#allocation5 + $0x1b0] sm:$0xff]
    %v310 = vld [vmem:[#allocation5 + $0x1b8] sm:$0xff]
    %v311 = vld [vmem:[#allocation5 + $0x1c0] sm:$0xff]
    %v312 = vld [vmem:[#allocation5 + $0x1c8] sm:$0xff]
    %v313 = vld [vmem:[#allocation5 + $0x1d0] sm:$0xff]
    %v314 = vld [vmem:[#allocation5 + $0x1d8] sm:$0xff]
    %v315 = vld [vmem:[#allocation5 + $0x1e0] sm:$0xff]
    %v316 = vld [vmem:[#allocation5 + $0x1e8] sm:$0xff]
    %v317 = vld [vmem:[#allocation5 + $0x1f0] sm:$0xff]
    %v318 = vld [vmem:[#allocation5 + $0x1f8] sm:$0xff]
    %v319 = vld [vmem:[#allocation5 + $0x200] sm:$0xff]
    %v320 = vld [vmem:[#allocation5 + $0x208] sm:$0xff]
    %v321 = vld [vmem:[#allocation5 + $0x210] sm:$0xff]
    %v322 = vld [vmem:[#allocation5 + $0x218] sm:$0xff]
    %v323 = vld [vmem:[#allocation5 + $0x220] sm:$0xff]
    %v324 = vld [vmem:[#allocation5 + $0x228] sm:$0xff]
    %v325 = vld [vmem:[#allocation5 + $0x230] sm:$0xff]
    %v326 = vld [vmem:[#allocation5 + $0x238] sm:$0xff]
    %v327 = vld [vmem:[#allocation5 + $0x240] sm:$0xff]
    %v328 = vld [vmem:[#allocation5 + $0x248] sm:$0xff]
    %v329 = vld [vmem:[#allocation5 + $0x250] sm:$0xff]
    %v330 = vld [vmem:[#allocation5 + $0x258] sm:$0xff]
    %v331 = vld [vmem:[#allocation5 + $0x260] sm:$0xff]
    %v332 = vld [vmem:[#allocation5 + $0x268] sm:$0xff]
    %v333 = vld [vmem:[#allocation5 + $0x270] sm:$0xff]
    %v334 = vld [vmem:[#allocation5 + $0x278] sm:$0xff]
    %v335 = vld [vmem:[#allocation5 + $0x280] sm:$0xff]
    %v336 = vld [vmem:[#allocation5 + $0x288] sm:$0xff]
    %v337 = vld [vmem:[#allocation5 + $0x290] sm:$0xff]
    %v338 = vld [vmem:[#allocation5 + $0x298] sm:$0xff]
    %v339 = vld [vmem:[#allocation5 + $0x2a0] sm:$0xff]
    %v340 = vld [vmem:[#allocation5 + $0x2a8] sm:$0xff]
    %v341 = vld [vmem:[#allocation5 + $0x2b0] sm:$0xff]
    %v342 = vld [vmem:[#allocation5 + $0x2b8] sm:$0xff]
    %v343 = vld [vmem:[#allocation5 + $0x2c0] sm:$0xff]
    %v344 = vld [vmem:[#allocation5 + $0x2c8] sm:$0xff]
    %v345 = vld [vmem:[#allocation5 + $0x2d0] sm:$0xff]
    %v346 = vld [vmem:[#allocation5 + $0x2d8] sm:$0xff]
    %v347 = vld [vmem:[#allocation5 + $0x2e0] sm:$0xff]
    %v348 = vld [vmem:[#allocation5 + $0x2e8] sm:$0xff]
    %v349 = vld [vmem:[#allocation5 + $0x2f0] sm:$0xff]
    %v350 = vld [vmem:[#allocation5 + $0x2f8] sm:$0xff]
    %v351 = vld [vmem:[#allocation5 + $0x300] sm:$0xff]
    %v352 = vld [vmem:[#allocation5 + $0x308] sm:$0xff]
    %v353 = vld [vmem:[#allocation5 + $0x310] sm:$0xff]
    %v354 = vld [vmem:[#allocation5 + $0x318] sm:$0xff]
    %v355 = vld [vmem:[#allocation5 + $0x320] sm:$0xff]
    %v356 = vld [vmem:[#allocation5 + $0x328] sm:$0xff]
    %v357 = vld [vmem:[#allocation5 + $0x330] sm:$0xff]
    %v358 = vld [vmem:[#allocation5 + $0x338] sm:$0xff]
    %v359 = vld [vmem:[#allocation5 + $0x340] sm:$0xff]
    %v360 = vld [vmem:[#allocation5 + $0x348] sm:$0xff]
    %v361 = vld [vmem:[#allocation5 + $0x350] sm:$0xff]
    %v362 = vld [vmem:[#allocation5 + $0x358] sm:$0xff]
    %v363 = vld [vmem:[#allocation5 + $0x360] sm:$0xff]
    %v364 = vld [vmem:[#allocation5 + $0x368] sm:$0xff]
    %v365 = vld [vmem:[#allocation5 + $0x370] sm:$0xff]
    %v366 = vld [vmem:[#allocation5 + $0x378] sm:$0xff]
    %v367 = vld [vmem:[#allocation5 + $0x380] sm:$0xff]
    %v368 = vld [vmem:[#allocation5 + $0x388] sm:$0xff]
    %v369 = vld [vmem:[#allocation5 + $0x390] sm:$0xff]
    %v370 = vld [vmem:[#allocation5 + $0x398] sm:$0xff]
    %v371 = vld [vmem:[#allocation5 + $0x3a0] sm:$0xff]
    %v372 = vld [vmem:[#allocation5 + $0x3a8] sm:$0xff]
    %v373 = vld [vmem:[#allocation5 + $0x3b0] sm:$0xff]
    %v374 = vld [vmem:[#allocation5 + $0x3b8] sm:$0xff]
    %v375 = vld [vmem:[#allocation5 + $0x3c0] sm:$0xff]
    %v376 = vld [vmem:[#allocation5 + $0x3c8] sm:$0xff]
    %v377 = vld [vmem:[#allocation5 + $0x3d0] sm:$0xff]
    %v378 = vld [vmem:[#allocation5 + $0x3d8] sm:$0xff]
    %v379 = vld [vmem:[#allocation5 + $0x3e0] sm:$0xff]
    %v380 = vld [vmem:[#allocation5 + $0x3e8] sm:$0xff]
    %v381 = vld [vmem:[#allocation5 + $0x3f0] sm:$0xff]
    %v382 = vld [vmem:[#allocation5 + $0x3f8] sm:$0xff]
    %v383 = vld [vmem:[#allocation5 + $0x400] sm:$0xff]
    %v384 = vld [vmem:[#allocation5 + $0x408] sm:$0xff]
    %v385 = vld [vmem:[#allocation5 + $0x410] sm:$0xff]
    %v386 = vld [vmem:[#allocation5 + $0x418] sm:$0xff]
    %v387 = vld [vmem:[#allocation5 + $0x420] sm:$0xff]
    %v388 = vld [vmem:[#allocation5 + $0x428] sm:$0xff]
    %v389 = vld [vmem:[#allocation5 + $0x430] sm:$0xff]
    %v390 = vld [vmem:[#allocation5 + $0x438] sm:$0xff]
    %v391 = vld [vmem:[#allocation5 + $0x440] sm:$0xff]
    %v392 = vld [vmem:[#allocation5 + $0x448] sm:$0xff]
    %v393 = vld [vmem:[#allocation5 + $0x450] sm:$0xff]
    %v394 = vld [vmem:[#allocation5 + $0x458] sm:$0xff]
    %v395 = vld [vmem:[#allocation5 + $0x460] sm:$0xff]
    %v396 = vld [vmem:[#allocation5 + $0x468] sm:$0xff]
    %v397 = vld [vmem:[#allocation5 + $0x470] sm:$0xff]
    %v398 = vld [vmem:[#allocation5 + $0x478] sm:$0xff]
    %v399 = vld [vmem:[#allocation5 + $0x480] sm:$0xff]
    %v400 = vld [vmem:[#allocation5 + $0x488] sm:$0xff]
    %v401 = vld [vmem:[#allocation5 + $0x490] sm:$0xff]
    %v402 = vld [vmem:[#allocation5 + $0x498] sm:$0xff]
    %v403 = vld [vmem:[#allocation5 + $0x4a0] sm:$0xff]
    %v404 = vld [vmem:[#allocation5 + $0x4a8] sm:$0xff]
    %v405 = vld [vmem:[#allocation5 + $0x4b0] sm:$0xff]
    %v406 = vld [vmem:[#allocation5 + $0x4b8] sm:$0xff]
    %v407 = vld [vmem:[#allocation5 + $0x4c0] sm:$0xff]
    %v408 = vld [vmem:[#allocation5 + $0x4c8] sm:$0xff]
    %v409 = vld [vmem:[#allocation5 + $0x4d0] sm:$0xff]
    %v410 = vld [vmem:[#allocation5 + $0x4d8] sm:$0xff]
    %v411 = vld [vmem:[#allocation5 + $0x4e0] sm:$0xff]
    %v412 = vld [vmem:[#allocation5 + $0x4e8] sm:$0xff]
    %v413 = vld [vmem:[#allocation5 + $0x4f0] sm:$0xff]
    %v414 = vld [vmem:[#allocation5 + $0x4f8] sm:$0xff]
    %v415 = vld [vmem:[#allocation5 + $0x500] sm:$0xff]
    %v416 = vld [vmem:[#allocation5 + $0x508] sm:$0xff]
    %v417 = vld [vmem:[#allocation5 + $0x510] sm:$0xff]
    %v418 = vld [vmem:[#allocation5 + $0x518] sm:$0xff]
    %v419 = vld [vmem:[#allocation5 + $0x520] sm:$0xff]
    %v420 = vld [vmem:[#allocation5 + $0x528] sm:$0xff]
    %v421 = vld [vmem:[#allocation5 + $0x530] sm:$0xff]
    %v422 = vld [vmem:[#allocation5 + $0x538] sm:$0xff]
    %v423 = vld [vmem:[#allocation5 + $0x540] sm:$0xff]
    %v424 = vld [vmem:[#allocation5 + $0x548] sm:$0xff]
    %v425 = vld [vmem:[#allocation5 + $0x550] sm:$0xff]
    %v426 = vld [vmem:[#allocation5 + $0x558] sm:$0xff]
    %v427 = vld [vmem:[#allocation5 + $0x560] sm:$0xff]
    %v428 = vld [vmem:[#allocation5 + $0x568] sm:$0xff]
    %v429 = vld [vmem:[#allocation5 + $0x570] sm:$0xff]
    %v430 = vld [vmem:[#allocation5 + $0x578] sm:$0xff]
    %v431 = vld [vmem:[#allocation5 + $0x580] sm:$0xff]
    %v432 = vld [vmem:[#allocation5 + $0x588] sm:$0xff]
    %v433 = vld [vmem:[#allocation5 + $0x590] sm:$0xff]
    %v434 = vld [vmem:[#allocation5 + $0x598] sm:$0xff]
    %v435 = vld [vmem:[#allocation5 + $0x5a0] sm:$0xff]
    %v436 = vld [vmem:[#allocation5 + $0x5a8] sm:$0xff]
    %v437 = vld [vmem:[#allocation5 + $0x5b0] sm:$0xff]
    %v438 = vld [vmem:[#allocation5 + $0x5b8] sm:$0xff]
    %v439 = vld [vmem:[#allocation5 + $0x5c0] sm:$0xff]
    %v440 = vld [vmem:[#allocation5 + $0x5c8] sm:$0xff]
    %v441 = vld [vmem:[#allocation5 + $0x5d0] sm:$0xff]
    %v442 = vld [vmem:[#allocation5 + $0x5d8] sm:$0xff]
    %v443 = vld [vmem:[#allocation5 + $0x5e0] sm:$0xff]
    %v444 = vld [vmem:[#allocation5 + $0x5e8] sm:$0xff]
    %v445 = vld [vmem:[#allocation5 + $0x5f0] sm:$0xff]
    %v446 = vld [vmem:[#allocation5 + $0x5f8] sm:$0xff]
    %v447 = vld [vmem:[#allocation5 + $0x600] sm:$0xff]
    %v448 = vld [vmem:[#allocation5 + $0x608] sm:$0xff]
    %v449 = vld [vmem:[#allocation5 + $0x610] sm:$0xff]
    %v450 = vld [vmem:[#allocation5 + $0x618] sm:$0xff]
    %v451 = vld [vmem:[#allocation5 + $0x620] sm:$0xff]
    %v452 = vld [vmem:[#allocation5 + $0x628] sm:$0xff]
    %v453 = vld [vmem:[#allocation5 + $0x630] sm:$0xff]
    %v454 = vld [vmem:[#allocation5 + $0x638] sm:$0xff]
    %v455 = vld [vmem:[#allocation5 + $0x640] sm:$0xff]
    %v456 = vld [vmem:[#allocation5 + $0x648] sm:$0xff]
    %v457 = vld [vmem:[#allocation5 + $0x650] sm:$0xff]
    %v458 = vld [vmem:[#allocation5 + $0x658] sm:$0xff]
    %v459 = vld [vmem:[#allocation5 + $0x660] sm:$0xff]
    %v460 = vld [vmem:[#allocation5 + $0x668] sm:$0xff]
    %v461 = vld [vmem:[#allocation5 + $0x670] sm:$0xff]
    %v462 = vld [vmem:[#allocation5 + $0x678] sm:$0xff]
    %v463 = vld [vmem:[#allocation5 + $0x680] sm:$0xff]
    %v464 = vld [vmem:[#allocation5 + $0x688] sm:$0xff]
    %v465 = vld [vmem:[#allocation5 + $0x690] sm:$0xff]
    %v466 = vld [vmem:[#allocation5 + $0x698] sm:$0xff]
    %v467 = vld [vmem:[#allocation5 + $0x6a0] sm:$0xff]
    %v468 = vld [vmem:[#allocation5 + $0x6a8] sm:$0xff]
    %v469 = vld [vmem:[#allocation5 + $0x6b0] sm:$0xff]
    %v470 = vld [vmem:[#allocation5 + $0x6b8] sm:$0xff]
    %v471 = vld [vmem:[#allocation5 + $0x6c0] sm:$0xff]
    %v472 = vld [vmem:[#allocation5 + $0x6c8] sm:$0xff]
    %v473 = vld [vmem:[#allocation5 + $0x6d0] sm:$0xff]
    %v474 = vld [vmem:[#allocation5 + $0x6d8] sm:$0xff]
    %v475 = vld [vmem:[#allocation5 + $0x6e0] sm:$0xff]
    %v476 = vld [vmem:[#allocation5 + $0x6e8] sm:$0xff]
    %v477 = vld [vmem:[#allocation5 + $0x6f0] sm:$0xff]
    %v478 = vld [vmem:[#allocation5 + $0x6f8] sm:$0xff]
    %v479 = vld [vmem:[#allocation5 + $0x700] sm:$0xff]
    %v480 = vld [vmem:[#allocation5 + $0x708] sm:$0xff]
    %v481 = vld [vmem:[#allocation5 + $0x710] sm:$0xff]
    %v482 = vld [vmem:[#allocation5 + $0x718] sm:$0xff]
    %v483 = vld [vmem:[#allocation5 + $0x720] sm:$0xff]
    %v484 = vld [vmem:[#allocation5 + $0x728] sm:$0xff]
    %v485 = vld [vmem:[#allocation5 + $0x730] sm:$0xff]
    %v486 = vld [vmem:[#allocation5 + $0x738] sm:$0xff]
    %v487 = vld [vmem:[#allocation5 + $0x740] sm:$0xff]
    %v488 = vld [vmem:[#allocation5 + $0x748] sm:$0xff]
    %v489 = vld [vmem:[#allocation5 + $0x750] sm:$0xff]
    %v490 = vld [vmem:[#allocation5 + $0x758] sm:$0xff]
    %v491 = vld [vmem:[#allocation5 + $0x760] sm:$0xff]
    %v492 = vld [vmem:[#allocation5 + $0x768] sm:$0xff]
    %v493 = vld [vmem:[#allocation5 + $0x770] sm:$0xff]
    %v494 = vld [vmem:[#allocation5 + $0x778] sm:$0xff]
    %v495 = vld [vmem:[#allocation5 + $0x780] sm:$0xff]
    %v496 = vld [vmem:[#allocation5 + $0x788] sm:$0xff]
    %v497 = vld [vmem:[#allocation5 + $0x790] sm:$0xff]
    %v498 = vld [vmem:[#allocation5 + $0x798] sm:$0xff]
    %v499 = vld [vmem:[#allocation5 + $0x7a0] sm:$0xff]
    %v500 = vld [vmem:[#allocation5 + $0x7a8] sm:$0xff]
    %v501 = vld [vmem:[#allocation5 + $0x7b0] sm:$0xff]
    %v502 = vld [vmem:[#allocation5 + $0x7b8] sm:$0xff]
    %v503 = vld [vmem:[#allocation5 + $0x7c0] sm:$0xff]
    %v504 = vld [vmem:[#allocation5 + $0x7c8] sm:$0xff]
    %v505 = vld [vmem:[#allocation5 + $0x7d0] sm:$0xff]
    %v506 = vld [vmem:[#allocation5 + $0x7d8] sm:$0xff]
    %v507 = vld [vmem:[#allocation5 + $0x7e0] sm:$0xff]
    %v508 = vld [vmem:[#allocation5 + $0x7e8] sm:$0xff]
    %v509 = vld [vmem:[#allocation5 + $0x7f0] sm:$0xff]
    %v510 = vld [vmem:[#allocation5 + $0x7f8] sm:$0xff]
    %v511 = vld [vmem:[#allocation5 + $0x800] sm:$0xff]
    %v512 = vld [vmem:[#allocation5 + $0x808] sm:$0xff]
    %v513 = vld [vmem:[#allocation5 + $0x810] sm:$0xff]
    %v514 = vld [vmem:[#allocation5 + $0x818] sm:$0xff]
    %v515 = vld [vmem:[#allocation5 + $0x820] sm:$0xff]
    %v516 = vld [vmem:[#allocation5 + $0x828] sm:$0xff]
    %v517 = vld [vmem:[#allocation5 + $0x830] sm:$0xff]
    %v518 = vld [vmem:[#allocation5 + $0x838] sm:$0xff]
    %v519 = vld [vmem:[#allocation5 + $0x840] sm:$0xff]
    %v520 = vld [vmem:[#allocation5 + $0x848] sm:$0xff]
    %v521 = vld [vmem:[#allocation5 + $0x850] sm:$0xff]
    %v522 = vld [vmem:[#allocation5 + $0x858] sm:$0xff]
    %v523 = vld [vmem:[#allocation5 + $0x860] sm:$0xff]
    %v524 = vld [vmem:[#allocation5 + $0x868] sm:$0xff]
    %v525 = vld [vmem:[#allocation5 + $0x870] sm:$0xff]
    %v526 = vld [vmem:[#allocation5 + $0x878] sm:$0xff]
    %v527 = vld [vmem:[#allocation5 + $0x880] sm:$0xff]
    %v528 = vld [vmem:[#allocation5 + $0x888] sm:$0xff]
    %v529 = vld [vmem:[#allocation5 + $0x890] sm:$0xff]
    %v530 = vld [vmem:[#allocation5 + $0x898] sm:$0xff]
    %v531 = vld [vmem:[#allocation5 + $0x8a0] sm:$0xff]
    %v532 = vld [vmem:[#allocation5 + $0x8a8] sm:$0xff]
    %v533 = vld [vmem:[#allocation5 + $0x8b0] sm:$0xff]
    %v534 = vld [vmem:[#allocation5 + $0x8b8] sm:$0xff]
    %v535 = vld [vmem:[#allocation5 + $0x8c0] sm:$0xff]
    %v536 = vld [vmem:[#allocation5 + $0x8c8] sm:$0xff]
    %v537 = vld [vmem:[#allocation5 + $0x8d0] sm:$0xff]
    %v538 = vld [vmem:[#allocation5 + $0x8d8] sm:$0xff]
    %v539 = vld [vmem:[#allocation5 + $0x8e0] sm:$0xff]
    %v540 = vld [vmem:[#allocation5 + $0x8e8] sm:$0xff]
    %v541 = vld [vmem:[#allocation5 + $0x8f0] sm:$0xff]
    %v542 = vld [vmem:[#allocation5 + $0x8f8] sm:$0xff]
    %v543 = vld [vmem:[#allocation5 + $0x900] sm:$0xff]
    %v544 = vld [vmem:[#allocation5 + $0x908] sm:$0xff]
    %v545 = vld [vmem:[#allocation5 + $0x910] sm:$0xff]
    %v546 = vld [vmem:[#allocation5 + $0x918] sm:$0xff]
    %v547 = vld [vmem:[#allocation5 + $0x920] sm:$0xff]
    %v548 = vld [vmem:[#allocation5 + $0x928] sm:$0xff]
    %v549 = vld [vmem:[#allocation5 + $0x930] sm:$0xff]
    %v550 = vld [vmem:[#allocation5 + $0x938] sm:$0xff]
    %v551 = vld [vmem:[#allocation5 + $0x940] sm:$0xff]
    %v552 = vld [vmem:[#allocation5 + $0x948] sm:$0xff]
    %v553 = vld [vmem:[#allocation5 + $0x950] sm:$0xff]
    %v554 = vld [vmem:[#allocation5 + $0x958] sm:$0xff]
    %v555 = vld [vmem:[#allocation5 + $0x960] sm:$0xff]
    %v556 = vld [vmem:[#allocation5 + $0x968] sm:$0xff]
    %v557 = vld [vmem:[#allocation5 + $0x970] sm:$0xff]
    %v558 = vld [vmem:[#allocation5 + $0x978] sm:$0xff]
    %v559 = vld [vmem:[#allocation5 + $0x980] sm:$0xff]
    %v560 = vld [vmem:[#allocation5 + $0x988] sm:$0xff]
    %v561 = vld [vmem:[#allocation5 + $0x990] sm:$0xff]
    %v562 = vld [vmem:[#allocation5 + $0x998] sm:$0xff]
    %v563 = vld [vmem:[#allocation5 + $0x9a0] sm:$0xff]
    %v564 = vld [vmem:[#allocation5 + $0x9a8] sm:$0xff]
    %v565 = vld [vmem:[#allocation5 + $0x9b0] sm:$0xff]
    %v566 = vld [vmem:[#allocation5 + $0x9b8] sm:$0xff]
    %v567 = vld [vmem:[#allocation5 + $0x9c0] sm:$0xff]
    %v568 = vld [vmem:[#allocation5 + $0x9c8] sm:$0xff]
    %v569 = vld [vmem:[#allocation5 + $0x9d0] sm:$0xff]
    %v570 = vld [vmem:[#allocation5 + $0x9d8] sm:$0xff]
    %v571 = vld [vmem:[#allocation5 + $0x9e0] sm:$0xff]
    %v572 = vld [vmem:[#allocation5 + $0x9e8] sm:$0xff]
    %v573 = vld [vmem:[#allocation5 + $0x9f0] sm:$0xff]
    %v574 = vld [vmem:[#allocation5 + $0x9f8] sm:$0xff]
    %v575 = vld [vmem:[#allocation5 + $0xa00] sm:$0xff]
    %v576 = vld [vmem:[#allocation5 + $0xa08] sm:$0xff]
    %v577 = vld [vmem:[#allocation5 + $0xa10] sm:$0xff]
    %v578 = vld [vmem:[#allocation5 + $0xa18] sm:$0xff]
    %v579 = vld [vmem:[#allocation5 + $0xa20] sm:$0xff]
    %v580 = vld [vmem:[#allocation5 + $0xa28] sm:$0xff]
    %v581 = vld [vmem:[#allocation5 + $0xa30] sm:$0xff]
    %v582 = vld [vmem:[#allocation5 + $0xa38] sm:$0xff]
    %v583 = vld [vmem:[#allocation5 + $0xa40] sm:$0xff]
    %v584 = vld [vmem:[#allocation5 + $0xa48] sm:$0xff]
    %v585 = vld [vmem:[#allocation5 + $0xa50] sm:$0xff]
    %v586 = vld [vmem:[#allocation5 + $0xa58] sm:$0xff]
    %v587 = vld [vmem:[#allocation5 + $0xa60] sm:$0xff]
    %v588 = vld [vmem:[#allocation5 + $0xa68] sm:$0xff]
    %v589 = vld [vmem:[#allocation5 + $0xa70] sm:$0xff]
    %v590 = vld [vmem:[#allocation5 + $0xa78] sm:$0xff]
    %v591 = vld [vmem:[#allocation5 + $0xa80] sm:$0xff]
    %v592 = vld [vmem:[#allocation5 + $0xa88] sm:$0xff]
    %v593 = vld [vmem:[#allocation5 + $0xa90] sm:$0xff]
    %v594 = vld [vmem:[#allocation5 + $0xa98] sm:$0xff]
    %v595 = vld [vmem:[#allocation5 + $0xaa0] sm:$0xff]
    %v596 = vld [vmem:[#allocation5 + $0xaa8] sm:$0xff]
    %v597 = vld [vmem:[#allocation5 + $0xab0] sm:$0xff]
    %v598 = vld [vmem:[#allocation5 + $0xab8] sm:$0xff]
    %v599 = vld [vmem:[#allocation5 + $0xac0] sm:$0xff]
    %v600 = vld [vmem:[#allocation5 + $0xac8] sm:$0xff]
    %v601 = vld [vmem:[#allocation5 + $0xad0] sm:$0xff]
    %v602 = vld [vmem:[#allocation5 + $0xad8] sm:$0xff]
    %v603 = vld [vmem:[#allocation5 + $0xae0] sm:$0xff]
    %v604 = vld [vmem:[#allocation5 + $0xae8] sm:$0xff]
    %v605 = vld [vmem:[#allocation5 + $0xaf0] sm:$0xff]
    %v606 = vld [vmem:[#allocation5 + $0xaf8] sm:$0xff]
    %v607 = vld [vmem:[#allocation5 + $0xb00] sm:$0xff]
    %v608 = vld [vmem:[#allocation5 + $0xb08] sm:$0xff]
    %v609 = vld [vmem:[#allocation5 + $0xb10] sm:$0xff]
    %v610 = vld [vmem:[#allocation5 + $0xb18] sm:$0xff]
    %v611 = vld [vmem:[#allocation5 + $0xb20] sm:$0xff]
    %v612 = vld [vmem:[#allocation5 + $0xb28] sm:$0xff]
    %v613 = vld [vmem:[#allocation5 + $0xb30] sm:$0xff]
    %v614 = vld [vmem:[#allocation5 + $0xb38] sm:$0xff]
    %v615 = vld [vmem:[#allocation5 + $0xb40] sm:$0xff]
    %v616 = vld [vmem:[#allocation5 + $0xb48] sm:$0xff]
    %v617 = vld [vmem:[#allocation5 + $0xb50] sm:$0xff]
    %v618 = vld [vmem:[#allocation5 + $0xb58] sm:$0xff]
    %v619 = vld [vmem:[#allocation5 + $0xb60] sm:$0xff]
    %v620 = vld [vmem:[#allocation5 + $0xb68] sm:$0xff]
    %v621 = vld [vmem:[#allocation5 + $0xb70] sm:$0xff]
    %v622 = vld [vmem:[#allocation5 + $0xb78] sm:$0xff]
    %v623 = vld [vmem:[#allocation5 + $0xb80] sm:$0xff]
    %v624 = vld [vmem:[#allocation5 + $0xb88] sm:$0xff]
    %v625 = vld [vmem:[#allocation5 + $0xb90] sm:$0xff]
    %v626 = vld [vmem:[#allocation5 + $0xb98] sm:$0xff]
    %v627 = vld [vmem:[#allocation5 + $0xba0] sm:$0xff]
    %v628 = vld [vmem:[#allocation5 + $0xba8] sm:$0xff]
    %v629 = vld [vmem:[#allocation5 + $0xbb0] sm:$0xff]
    %v630 = vld [vmem:[#allocation5 + $0xbb8] sm:$0xff]
    %v631 = vld [vmem:[#allocation5 + $0xbc0] sm:$0xff]
    %v632 = vld [vmem:[#allocation5 + $0xbc8] sm:$0xff]
    %v633 = vld [vmem:[#allocation5 + $0xbd0] sm:$0xff]
    %v634 = vld [vmem:[#allocation5 + $0xbd8] sm:$0xff]
    %v635 = vld [vmem:[#allocation5 + $0xbe0] sm:$0xff]
    %v636 = vld [vmem:[#allocation5 + $0xbe8] sm:$0xff]
    %v637 = vld [vmem:[#allocation5 + $0xbf0] sm:$0xff]
    %v638 = vld [vmem:[#allocation5 + $0xbf8] sm:$0xff]
    %v639 = vld [vmem:[#allocation5 + $0xc00] sm:$0xff]
    %v640 = vld [vmem:[#allocation5 + $0xc08] sm:$0xff]
    %v641 = vld [vmem:[#allocation5 + $0xc10] sm:$0xff]
    %v642 = vld [vmem:[#allocation5 + $0xc18] sm:$0xff]
    %v643 = vld [vmem:[#allocation5 + $0xc20] sm:$0xff]
    %v644 = vld [vmem:[#allocation5 + $0xc28] sm:$0xff]
    %v645 = vld [vmem:[#allocation5 + $0xc30] sm:$0xff]
    %v646 = vld [vmem:[#allocation5 + $0xc38] sm:$0xff]
    %v647 = vld [vmem:[#allocation5 + $0xc40] sm:$0xff]
    %v648 = vld [vmem:[#allocation5 + $0xc48] sm:$0xff]
    %v649 = vld [vmem:[#allocation5 + $0xc50] sm:$0xff]
    %v650 = vld [vmem:[#allocation5 + $0xc58] sm:$0xff]
    %v651 = vld [vmem:[#allocation5 + $0xc60] sm:$0xff]
    %v652 = vld [vmem:[#allocation5 + $0xc68] sm:$0xff]
    %v653 = vld [vmem:[#allocation5 + $0xc70] sm:$0xff]
    %v654 = vld [vmem:[#allocation5 + $0xc78] sm:$0xff]
    %v655 = vld [vmem:[#allocation5 + $0xc80] sm:$0xff]
    %v656 = vld [vmem:[#allocation5 + $0xc88] sm:$0xff]
    %v657 = vld [vmem:[#allocation5 + $0xc90] sm:$0xff]
    %v658 = vld [vmem:[#allocation5 + $0xc98] sm:$0xff]
    %v659 = vld [vmem:[#allocation5 + $0xca0] sm:$0xff]
    %v660 = vld [vmem:[#allocation5 + $0xca8] sm:$0xff]
    %v661 = vld [vmem:[#allocation5 + $0xcb0] sm:$0xff]
    %v662 = vld [vmem:[#allocation5 + $0xcb8] sm:$0xff]
    %v663 = vld [vmem:[#allocation5 + $0xcc0] sm:$0xff]
    %v664 = vld [vmem:[#allocation5 + $0xcc8] sm:$0xff]
    %v665 = vld [vmem:[#allocation5 + $0xcd0] sm:$0xff]
    %v666 = vld [vmem:[#allocation5 + $0xcd8] sm:$0xff]
    %v667 = vld [vmem:[#allocation5 + $0xce0] sm:$0xff]
    %v668 = vld [vmem:[#allocation5 + $0xce8] sm:$0xff]
    %v669 = vld [vmem:[#allocation5 + $0xcf0] sm:$0xff]
    %v670 = vld [vmem:[#allocation5 + $0xcf8] sm:$0xff]
    %v671 = vld [vmem:[#allocation5 + $0xd00] sm:$0xff]
    %v672 = vld [vmem:[#allocation5 + $0xd08] sm:$0xff]
    %v673 = vld [vmem:[#allocation5 + $0xd10] sm:$0xff]
    %v674 = vld [vmem:[#allocation5 + $0xd18] sm:$0xff]
    %v675 = vld [vmem:[#allocation5 + $0xd20] sm:$0xff]
    %v676 = vld [vmem:[#allocation5 + $0xd28] sm:$0xff]
    %v677 = vld [vmem:[#allocation5 + $0xd30] sm:$0xff]
    %v678 = vld [vmem:[#allocation5 + $0xd38] sm:$0xff]
    %v679 = vld [vmem:[#allocation5 + $0xd40] sm:$0xff]
    %v680 = vld [vmem:[#allocation5 + $0xd48] sm:$0xff]
    %v681 = vld [vmem:[#allocation5 + $0xd50] sm:$0xff]
    %v682 = vld [vmem:[#allocation5 + $0xd58] sm:$0xff]
    %v683 = vld [vmem:[#allocation5 + $0xd60] sm:$0xff]
    %v684 = vld [vmem:[#allocation5 + $0xd68] sm:$0xff]
    %v685 = vld [vmem:[#allocation5 + $0xd70] sm:$0xff]
    %v686 = vld [vmem:[#allocation5 + $0xd78] sm:$0xff]
    %v687 = vld [vmem:[#allocation5 + $0xd80] sm:$0xff]
    %v688 = vld [vmem:[#allocation5 + $0xd88] sm:$0xff]
    %v689 = vld [vmem:[#allocation5 + $0xd90] sm:$0xff]
    %v690 = vld [vmem:[#allocation5 + $0xd98] sm:$0xff]
    %v691 = vld [vmem:[#allocation5 + $0xda0] sm:$0xff]
    %v692 = vld [vmem:[#allocation5 + $0xda8] sm:$0xff]
    %v693 = vld [vmem:[#allocation5 + $0xdb0] sm:$0xff]
    %v694 = vld [vmem:[#allocation5 + $0xdb8] sm:$0xff]
    %v695 = vld [vmem:[#allocation5 + $0xdc0] sm:$0xff]
    %v696 = vld [vmem:[#allocation5 + $0xdc8] sm:$0xff]
    %v697 = vld [vmem:[#allocation5 + $0xdd0] sm:$0xff]
    %v698 = vld [vmem:[#allocation5 + $0xdd8] sm:$0xff]
    %v699 = vld [vmem:[#allocation5 + $0xde0] sm:$0xff]
    %v700 = vld [vmem:[#allocation5 + $0xde8] sm:$0xff]
    %v701 = vld [vmem:[#allocation5 + $0xdf0] sm:$0xff]
    %v702 = vld [vmem:[#allocation5 + $0xdf8] sm:$0xff]
    %v703 = vld [vmem:[#allocation5 + $0xe00] sm:$0xff]
    %v704 = vld [vmem:[#allocation5 + $0xe08] sm:$0xff]
    %v705 = vld [vmem:[#allocation5 + $0xe10] sm:$0xff]
    %v706 = vld [vmem:[#allocation5 + $0xe18] sm:$0xff]
    %v707 = vld [vmem:[#allocation5 + $0xe20] sm:$0xff]
    %v708 = vld [vmem:[#allocation5 + $0xe28] sm:$0xff]
    %v709 = vld [vmem:[#allocation5 + $0xe30] sm:$0xff]
    %v710 = vld [vmem:[#allocation5 + $0xe38] sm:$0xff]
    %v711 = vld [vmem:[#allocation5 + $0xe40] sm:$0xff]
    %v712 = vld [vmem:[#allocation5 + $0xe48] sm:$0xff]
    %v713 = vld [vmem:[#allocation5 + $0xe50] sm:$0xff]
    %v714 = vld [vmem:[#allocation5 + $0xe58] sm:$0xff]
    %v715 = vld [vmem:[#allocation5 + $0xe60] sm:$0xff]
    %v716 = vld [vmem:[#allocation5 + $0xe68] sm:$0xff]
    %v717 = vld [vmem:[#allocation5 + $0xe70] sm:$0xff]
    %v718 = vld [vmem:[#allocation5 + $0xe78] sm:$0xff]
    %v719 = vld [vmem:[#allocation5 + $0xe80] sm:$0xff]
    %v720 = vld [vmem:[#allocation5 + $0xe88] sm:$0xff]
    %v721 = vld [vmem:[#allocation5 + $0xe90] sm:$0xff]
    %v722 = vld [vmem:[#allocation5 + $0xe98] sm:$0xff]
    %v723 = vld [vmem:[#allocation5 + $0xea0] sm:$0xff]
    %v724 = vld [vmem:[#allocation5 + $0xea8] sm:$0xff]
    %v725 = vld [vmem:[#allocation5 + $0xeb0] sm:$0xff]
    %v726 = vld [vmem:[#allocation5 + $0xeb8] sm:$0xff]
    %v727 = vld [vmem:[#allocation5 + $0xec0] sm:$0xff]
    %v728 = vld [vmem:[#allocation5 + $0xec8] sm:$0xff]
    %v729 = vld [vmem:[#allocation5 + $0xed0] sm:$0xff]
    %v730 = vld [vmem:[#allocation5 + $0xed8] sm:$0xff]
    %v731 = vld [vmem:[#allocation5 + $0xee0] sm:$0xff]
    %v732 = vld [vmem:[#allocation5 + $0xee8] sm:$0xff]
    %v733 = vld [vmem:[#allocation5 + $0xef0] sm:$0xff]
    %v734 = vld [vmem:[#allocation5 + $0xef8] sm:$0xff]
    %v735 = vld [vmem:[#allocation5 + $0xf00] sm:$0xff]
    %v736 = vld [vmem:[#allocation5 + $0xf08] sm:$0xff]
    %v737 = vld [vmem:[#allocation5 + $0xf10] sm:$0xff]
    %v738 = vld [vmem:[#allocation5 + $0xf18] sm:$0xff]
    %v739 = vld [vmem:[#allocation5 + $0xf20] sm:$0xff]
    %v740 = vld [vmem:[#allocation5 + $0xf28] sm:$0xff]
    %v741 = vld [vmem:[#allocation5 + $0xf30] sm:$0xff]
    %v742 = vld [vmem:[#allocation5 + $0xf38] sm:$0xff]
    %v743 = vld [vmem:[#allocation5 + $0xf40] sm:$0xff]
    %v744 = vld [vmem:[#allocation5 + $0xf48] sm:$0xff]
    %v745 = vld [vmem:[#allocation5 + $0xf50] sm:$0xff]
    %v746 = vld [vmem:[#allocation5 + $0xf58] sm:$0xff]
    %v747 = vld [vmem:[#allocation5 + $0xf60] sm:$0xff]
    %v748 = vld [vmem:[#allocation5 + $0xf68] sm:$0xff]
    %v749 = vld [vmem:[#allocation5 + $0xf70] sm:$0xff]
    %v750 = vld [vmem:[#allocation5 + $0xf78] sm:$0xff]
    %v751 = vld [vmem:[#allocation5 + $0xf80] sm:$0xff]
    %v752 = vld [vmem:[#allocation5 + $0xf88] sm:$0xff]
    %v753 = vld [vmem:[#allocation5 + $0xf90] sm:$0xff]
    %v754 = vld [vmem:[#allocation5 + $0xf98] sm:$0xff]
    %v755 = vld [vmem:[#allocation5 + $0xfa0] sm:$0xff]
    %v756 = vld [vmem:[#allocation5 + $0xfa8] sm:$0xff]
    %v757 = vld [vmem:[#allocation5 + $0xfb0] sm:$0xff]
    %v758 = vld [vmem:[#allocation5 + $0xfb8] sm:$0xff]
    %v759 = vld [vmem:[#allocation5 + $0xfc0] sm:$0xff]
    %v760 = vld [vmem:[#allocation5 + $0xfc8] sm:$0xff]
    %v761 = vld [vmem:[#allocation5 + $0xfd0] sm:$0xff]
    %v762 = vld [vmem:[#allocation5 + $0xfd8] sm:$0xff]
    %v763 = vld [vmem:[#allocation5 + $0xfe0] sm:$0xff]
    %v764 = vld [vmem:[#allocation5 + $0xfe8] sm:$0xff]
    %v765 = vld [vmem:[#allocation5 + $0xff0] sm:$0xff]
    %v766 = vld [vmem:[#allocation5 + $0xff8] sm:$0xff]
    %v767 = vld [vmem:[#allocation5 + $0x1000] sm:$0xff]
    %v768 = vld [vmem:[#allocation5 + $0x1008] sm:$0xff]
    %v769 = vld [vmem:[#allocation5 + $0x1010] sm:$0xff]
    %v770 = vld [vmem:[#allocation5 + $0x1018] sm:$0xff]
    %v771 = vld [vmem:[#allocation7] sm:$0xf]
    %v773 = vlaneseq
    %v774 = vshrl.u32 %v773, 7
    %v775 = vsub.s32 0, %v774
    %v776 = vrot.slane %v771, %v775
    %v777 = vlaneseq
    %v778 = vshrl.u32 %v777, 7
    %v779 = vsub.s32 1, %v778
    %v780 = vrot.slane %v771, %v779
    %v781 = vlaneseq
    %v782 = vshrl.u32 %v781, 7
    %v783 = vsub.s32 2, %v782
    %v784 = vrot.slane %v771, %v783
    %v785 = vlaneseq
    %v786 = vshrl.u32 %v785, 7
    %v787 = vsub.s32 3, %v786
    %v788 = vrot.slane %v771, %v787
    %v796 = vcombine.high %v252, %v252
    %v798 = vunpack.c.l.s4 1983009808
    %v799 = vunpack.c.0.s8 %v798
    %v800 = vlaneseq
    %v801 = vshrl.u32 %v800, 7
    %v802 = vsub.s32 %v799, %v801
    %v803 = vrot.slane %v252, %v802
    %v805 = vunpack.c.l.s4 1983009808
    %v806 = vunpack.c.0.s8 %v805
    %v807 = vlaneseq
    %v808 = vshrl.u32 %v807, 7
    %v809 = vsub.s32 %v806, %v808
    %v810 = vrot.slane %v796, %v809
    %v811 = vcombine.high %v803, %v803
    %v812 = vcombine.high %v810, %v810
    %v813 = vcombine.high %v253, %v253
    %v815 = vunpack.c.l.s4 1983009808
    %v816 = vunpack.c.0.s8 %v815
    %v817 = vlaneseq
    %v818 = vshrl.u32 %v817, 7
    %v819 = vsub.s32 %v816, %v818
    %v820 = vrot.slane %v253, %v819
    %v822 = vunpack.c.l.s4 1983009808
    %v823 = vunpack.c.0.s8 %v822
    %v824 = vlaneseq
    %v825 = vshrl.u32 %v824, 7
    %v826 = vsub.s32 %v823, %v825
    %v827 = vrot.slane %v813, %v826
    %v828 = vcombine.high %v820, %v820
    %v829 = vcombine.high %v827, %v827
    %v831 = vunpack.c.l.s4 1983009808
    %v832 = vunpack.c.0.s8 %v831
    %v833 = vlaneseq
    %v834 = vshrl.u32 %v833, 7
    %v835 = vsub.s32 %v832, %v834
    %v836 = vrot.slane %v254, %v835
    %vm845 = vcmask 64512
    %v846 = vsel %vm845, %v836, 0
    %848 = vmatprep.subr.mxu0 %v256
    %849 = vmatpush1.msra.mxu0 %v255
    %850 = vmatprep.subr.mxu0 %v260
    %851 = vmatpush1.msra.mxu0 %v259
    %852 = vmatprep.subr.mxu0 %v264
    %853 = vmatpush1.msra.mxu0 %v263
    %854 = vmatprep.subr.mxu0 %v268
    %855 = vmatpush1.msra.mxu0 %v267
    %856 = vmatprep.subr.mxu0 %v272
    %857 = vmatpush1.msra.mxu0 %v271
    %858 = vmatprep.subr.mxu0 %v276
    %859 = vmatpush1.msra.mxu0 %v275
    %860 = vmatprep.subr.mxu0 %v280
    %861 = vmatpush1.msra.mxu0 %v279
    %862 = vmatprep.subr.mxu0 %v284
    %863 = vmatpush1.msra.mxu0 %v283
    %864 = vmatprep.subr.mxu0 %v288
    %865 = vmatpush1.msra.mxu0 %v287
    %866 = vmatprep.subr.mxu0 %v292
    %867 = vmatpush1.msra.mxu0 %v291
    %868 = vmatprep.subr.mxu0 %v296
    %869 = vmatpush1.msra.mxu0 %v295
    %870 = vmatprep.subr.mxu0 %v300
    %871 = vmatpush1.msra.mxu0 %v299
    %872 = vmatprep.subr.mxu0 %v304
    %873 = vmatpush1.msra.mxu0 %v303
    %874 = vmatprep.subr.mxu0 %v308
    %875 = vmatpush1.msra.mxu0 %v307
    %876 = vmatprep.subr.mxu0 %v312
    %877 = vmatpush1.msra.mxu0 %v311
    %878 = vmatprep.subr.mxu0 %v316
    %879 = vmatpush1.msra.mxu0 %v315
    %880 = vmatprep.subr.mxu0 %v320
    %881 = vmatpush1.msra.mxu0 %v319
    %882 = vmatprep.subr.mxu0 %v324
    %883 = vmatpush1.msra.mxu0 %v323
    %884 = vmatprep.subr.mxu0 %v328
    %885 = vmatpush1.msra.mxu0 %v327
    %886 = vmatprep.subr.mxu0 %v332
    %887 = vmatpush1.msra.mxu0 %v331
    %888 = vmatprep.subr.mxu0 %v336
    %889 = vmatpush1.msra.mxu0 %v335
    %890 = vmatprep.subr.mxu0 %v340
    %891 = vmatpush1.msra.mxu0 %v339
    %892 = vmatprep.subr.mxu0 %v344
    %893 = vmatpush1.msra.mxu0 %v343
    %894 = vmatprep.subr.mxu0 %v348
    %895 = vmatpush1.msra.mxu0 %v347
    %896 = vmatprep.subr.mxu0 %v352
    %897 = vmatpush1.msra.mxu0 %v351
    %898 = vmatprep.subr.mxu0 %v356
    %899 = vmatpush1.msra.mxu0 %v355
    %900 = vmatprep.subr.mxu0 %v360
    %901 = vmatpush1.msra.mxu0 %v359
    %902 = vmatprep.subr.mxu0 %v364
    %903 = vmatpush1.msra.mxu0 %v363
    %904 = vmatprep.subr.mxu0 %v368
    %905 = vmatpush1.msra.mxu0 %v367
    %906 = vmatprep.subr.mxu0 %v372
    %907 = vmatpush1.msra.mxu0 %v371
    %908 = vmatprep.subr.mxu0 %v376
    %909 = vmatpush1.msra.mxu0 %v375
    %910 = vmatprep.subr.mxu0 %v380
    %911 = vmatpush1.msra.mxu0 %v379
    %912 = vmatprep.mubr.f32.mxu0 %v811
    %913 = vmatmul.mubr.f32.gmra.mrb[0].mxu0 %v803
    %v914 = vpop.f32.mrb[0].mxu0
    %v915 = vadd.f32 %v776, %v914
    %v916 = vpop.f32.mrb[0].mxu0
    %v917 = vadd.f32 %v780, %v916
    %918 = vdwg.mxu0
    %919 = vmatprep.subr.mxu0 %v384
    %920 = vmatpush1.msra.mxu0 %v383
    %921 = vmatprep.subr.mxu0 %v388
    %922 = vmatpush1.msra.mxu0 %v387
    %923 = vmatprep.subr.mxu0 %v392
    %924 = vmatpush1.msra.mxu0 %v391
    %925 = vmatprep.subr.mxu0 %v396
    %926 = vmatpush1.msra.mxu0 %v395
    %927 = vmatprep.subr.mxu0 %v400
    %928 = vmatpush1.msra.mxu0 %v399
    %929 = vmatprep.subr.mxu0 %v404
    %930 = vmatpush1.msra.mxu0 %v403
    %931 = vmatprep.subr.mxu0 %v408
    %932 = vmatpush1.msra.mxu0 %v407
    %933 = vmatprep.subr.mxu0 %v412
    %934 = vmatpush1.msra.mxu0 %v411
    %935 = vmatprep.subr.mxu0 %v416
    %936 = vmatpush1.msra.mxu0 %v415
    %937 = vmatprep.subr.mxu0 %v420
    %938 = vmatpush1.msra.mxu0 %v419
    %939 = vmatprep.subr.mxu0 %v424
    %940 = vmatpush1.msra.mxu0 %v423
    %941 = vmatprep.subr.mxu0 %v428
    %942 = vmatpush1.msra.mxu0 %v427
    %943 = vmatprep.subr.mxu0 %v432
    %944 = vmatpush1.msra.mxu0 %v431
    %945 = vmatprep.subr.mxu0 %v436
    %946 = vmatpush1.msra.mxu0 %v435
    %947 = vmatprep.subr.mxu0 %v440
    %948 = vmatpush1.msra.mxu0 %v439
    %949 = vmatprep.subr.mxu0 %v444
    %950 = vmatpush1.msra.mxu0 %v443
    %951 = vmatprep.subr.mxu0 %v448
    %952 = vmatpush1.msra.mxu0 %v447
    %953 = vmatprep.subr.mxu0 %v452
    %954 = vmatpush1.msra.mxu0 %v451
    %955 = vmatprep.subr.mxu0 %v456
    %956 = vmatpush1.msra.mxu0 %v455
    %957 = vmatprep.subr.mxu0 %v460
    %958 = vmatpush1.msra.mxu0 %v459
    %959 = vmatprep.subr.mxu0 %v464
    %960 = vmatpush1.msra.mxu0 %v463
    %961 = vmatprep.subr.mxu0 %v468
    %962 = vmatpush1.msra.mxu0 %v467
    %963 = vmatprep.subr.mxu0 %v472
    %964 = vmatpush1.msra.mxu0 %v471
    %965 = vmatprep.subr.mxu0 %v476
    %966 = vmatpush1.msra.mxu0 %v475
    %967 = vmatprep.subr.mxu0 %v480
    %968 = vmatpush1.msra.mxu0 %v479
    %969 = vmatprep.subr.mxu0 %v484
    %970 = vmatpush1.msra.mxu0 %v483
    %971 = vmatprep.subr.mxu0 %v488
    %972 = vmatpush1.msra.mxu0 %v487
    %973 = vmatprep.subr.mxu0 %v492
    %974 = vmatpush1.msra.mxu0 %v491
    %975 = vmatprep.subr.mxu0 %v496
    %976 = vmatpush1.msra.mxu0 %v495
    %977 = vmatprep.subr.mxu0 %v500
    %978 = vmatpush1.msra.mxu0 %v499
    %979 = vmatprep.subr.mxu0 %v504
    %980 = vmatpush1.msra.mxu0 %v503
    %981 = vmatprep.subr.mxu0 %v508
    %982 = vmatpush1.msra.mxu0 %v507
    %983 = vmatprep.mubr.f32.mxu0 %v812
    %984 = vmatmul.mubr.f32.gmra.mrb[0].mxu0 %v810
    %v985 = vpop.f32.mrb[0].mxu0
    %v986 = vadd.f32 %v915, %v985
    %v987 = vpop.f32.mrb[0].mxu0
    %v988 = vadd.f32 %v917, %v987
    %989 = vdwg.mxu0
    %990 = vmatprep.subr.mxu0 %v512
    %991 = vmatpush1.msra.mxu0 %v511
    %992 = vmatprep.subr.mxu0 %v516
    %993 = vmatpush1.msra.mxu0 %v515
    %994 = vmatprep.subr.mxu0 %v520
    %995 = vmatpush1.msra.mxu0 %v519
    %996 = vmatprep.subr.mxu0 %v524
    %997 = vmatpush1.msra.mxu0 %v523
    %998 = vmatprep.subr.mxu0 %v528
    %999 = vmatpush1.msra.mxu0 %v527
    %1000 = vmatprep.subr.mxu0 %v532
    %1001 = vmatpush1.msra.mxu0 %v531
    %1002 = vmatprep.subr.mxu0 %v536
    %1003 = vmatpush1.msra.mxu0 %v535
    %1004 = vmatprep.subr.mxu0 %v540
    %1005 = vmatpush1.msra.mxu0 %v539
    %1006 = vmatprep.subr.mxu0 %v544
    %1007 = vmatpush1.msra.mxu0 %v543
    %1008 = vmatprep.subr.mxu0 %v548
    %1009 = vmatpush1.msra.mxu0 %v547
    %1010 = vmatprep.subr.mxu0 %v552
    %1011 = vmatpush1.msra.mxu0 %v551
    %1012 = vmatprep.subr.mxu0 %v556
    %1013 = vmatpush1.msra.mxu0 %v555
    %1014 = vmatprep.subr.mxu0 %v560
    %1015 = vmatpush1.msra.mxu0 %v559
    %1016 = vmatprep.subr.mxu0 %v564
    %1017 = vmatpush1.msra.mxu0 %v563
    %1018 = vmatprep.subr.mxu0 %v568
    %1019 = vmatpush1.msra.mxu0 %v567
    %1020 = vmatprep.subr.mxu0 %v572
    %1021 = vmatpush1.msra.mxu0 %v571
    %1022 = vmatprep.subr.mxu0 %v576
    %1023 = vmatpush1.msra.mxu0 %v575
    %1024 = vmatprep.subr.mxu0 %v580
    %1025 = vmatpush1.msra.mxu0 %v579
    %1026 = vmatprep.subr.mxu0 %v584
    %1027 = vmatpush1.msra.mxu0 %v583
    %1028 = vmatprep.subr.mxu0 %v588
    %1029 = vmatpush1.msra.mxu0 %v587
    %1030 = vmatprep.subr.mxu0 %v592
    %1031 = vmatpush1.msra.mxu0 %v591
    %1032 = vmatprep.subr.mxu0 %v596
    %1033 = vmatpush1.msra.mxu0 %v595
    %1034 = vmatprep.subr.mxu0 %v600
    %1035 = vmatpush1.msra.mxu0 %v599
    %1036 = vmatprep.subr.mxu0 %v604
    %1037 = vmatpush1.msra.mxu0 %v603
    %1038 = vmatprep.subr.mxu0 %v608
    %1039 = vmatpush1.msra.mxu0 %v607
    %1040 = vmatprep.subr.mxu0 %v612
    %1041 = vmatpush1.msra.mxu0 %v611
    %1042 = vmatprep.subr.mxu0 %v616
    %1043 = vmatpush1.msra.mxu0 %v615
    %1044 = vmatprep.subr.mxu0 %v620
    %1045 = vmatpush1.msra.mxu0 %v619
    %1046 = vmatprep.subr.mxu0 %v624
    %1047 = vmatpush1.msra.mxu0 %v623
    %1048 = vmatprep.subr.mxu0 %v628
    %1049 = vmatpush1.msra.mxu0 %v627
    %1050 = vmatprep.subr.mxu0 %v632
    %1051 = vmatpush1.msra.mxu0 %v631
    %1052 = vmatprep.subr.mxu0 %v636
    %1053 = vmatpush1.msra.mxu0 %v635
    %1054 = vmatprep.mubr.f32.mxu0 %v828
    %1055 = vmatmul.mubr.f32.gmra.mrb[0].mxu0 %v820
    %v1056 = vpop.f32.mrb[0].mxu0
    %v1057 = vadd.f32 %v986, %v1056
    %v1058 = vpop.f32.mrb[0].mxu0
    %v1059 = vadd.f32 %v988, %v1058
    %1060 = vdwg.mxu0
    %1061 = vmatprep.subr.mxu0 %v640
    %1062 = vmatpush1.msra.mxu0 %v639
    %1063 = vmatprep.subr.mxu0 %v644
    %1064 = vmatpush1.msra.mxu0 %v643
    %1065 = vmatprep.subr.mxu0 %v648
    %1066 = vmatpush1.msra.mxu0 %v647
    %1067 = vmatprep.subr.mxu0 %v652
    %1068 = vmatpush1.msra.mxu0 %v651
    %1069 = vmatprep.subr.mxu0 %v656
    %1070 = vmatpush1.msra.mxu0 %v655
    %1071 = vmatprep.subr.mxu0 %v660
    %1072 = vmatpush1.msra.mxu0 %v659
    %1073 = vmatprep.subr.mxu0 %v664
    %1074 = vmatpush1.msra.mxu0 %v663
    %1075 = vmatprep.subr.mxu0 %v668
    %1076 = vmatpush1.msra.mxu0 %v667
    %1077 = vmatprep.subr.mxu0 %v672
    %1078 = vmatpush1.msra.mxu0 %v671
    %1079 = vmatprep.subr.mxu0 %v676
    %1080 = vmatpush1.msra.mxu0 %v675
    %1081 = vmatprep.subr.mxu0 %v680
    %1082 = vmatpush1.msra.mxu0 %v679
    %1083 = vmatprep.subr.mxu0 %v684
    %1084 = vmatpush1.msra.mxu0 %v683
    %1085 = vmatprep.subr.mxu0 %v688
    %1086 = vmatpush1.msra.mxu0 %v687
    %1087 = vmatprep.subr.mxu0 %v692
    %1088 = vmatpush1.msra.mxu0 %v691
    %1089 = vmatprep.subr.mxu0 %v696
    %1090 = vmatpush1.msra.mxu0 %v695
    %1091 = vmatprep.subr.mxu0 %v700
    %1092 = vmatpush1.msra.mxu0 %v699
    %1093 = vmatprep.subr.mxu0 %v704
    %1094 = vmatpush1.msra.mxu0 %v703
    %1095 = vmatprep.subr.mxu0 %v708
    %1096 = vmatpush1.msra.mxu0 %v707
    %1097 = vmatprep.subr.mxu0 %v712
    %1098 = vmatpush1.msra.mxu0 %v711
    %1099 = vmatprep.subr.mxu0 %v716
    %1100 = vmatpush1.msra.mxu0 %v715
    %1101 = vmatprep.subr.mxu0 %v720
    %1102 = vmatpush1.msra.mxu0 %v719
    %1103 = vmatprep.subr.mxu0 %v724
    %1104 = vmatpush1.msra.mxu0 %v723
    %1105 = vmatprep.subr.mxu0 %v728
    %1106 = vmatpush1.msra.mxu0 %v727
    %1107 = vmatprep.subr.mxu0 %v732
    %1108 = vmatpush1.msra.mxu0 %v731
    %1109 = vmatprep.subr.mxu0 %v736
    %1110 = vmatpush1.msra.mxu0 %v735
    %1111 = vmatprep.subr.mxu0 %v740
    %1112 = vmatpush1.msra.mxu0 %v739
    %1113 = vmatprep.subr.mxu0 %v744
    %1114 = vmatpush1.msra.mxu0 %v743
    %1115 = vmatprep.subr.mxu0 %v748
    %1116 = vmatpush1.msra.mxu0 %v747
    %1117 = vmatprep.subr.mxu0 %v752
    %1118 = vmatpush1.msra.mxu0 %v751
    %1119 = vmatprep.subr.mxu0 %v756
    %1120 = vmatpush1.msra.mxu0 %v755
    %1121 = vmatprep.subr.mxu0 %v760
    %1122 = vmatpush1.msra.mxu0 %v759
    %1123 = vmatprep.subr.mxu0 %v764
    %1124 = vmatpush1.msra.mxu0 %v763
    %1125 = vmatprep.mubr.f32.mxu0 %v829
    %1126 = vmatmul.mubr.f32.gmra.mrb[0].mxu0 %v827
    %v1127 = vpop.f32.mrb[0].mxu0
    %v1128 = vadd.f32 %v1057, %v1127
    %v1129 = vpop.f32.mrb[0].mxu0
    %v1130 = vadd.f32 %v1059, %v1129
    %1131 = vdwg.mxu0
    %1132 = vmatprep.subr.mxu0 %v768
    %1133 = vmatpush1.msra.mxu0 %v767
    %1134 = vmatprep.subr.mxu0 0.0
    %1135 = vmatpush1.msra.mxu0 0.0
    %1136 = vmatprep.subr.mxu0 0.0
    %1137 = vmatpush1.msra.mxu0 0.0
    %1138 = vmatprep.subr.mxu0 0.0
    %1139 = vmatpush1.msra.mxu0 0.0
    %1140 = vmatprep.subr.mxu0 0.0
    %1141 = vmatpush1.msra.mxu0 0.0
    %1142 = vmatprep.subr.mxu0 0.0
    %1143 = vmatpush1.msra.mxu0 0.0
    %1144 = vmatprep.subr.mxu0 0.0
    %1145 = vmatpush1.msra.mxu0 0.0
    %1146 = vmatprep.subr.mxu0 0.0
    %1147 = vmatpush1.msra.mxu0 0.0
    %1148 = vmatprep.subr.mxu0 0.0
    %1149 = vmatpush1.msra.mxu0 0.0
    %1150 = vmatprep.subr.mxu0 0.0
    %1151 = vmatpush1.msra.mxu0 0.0
    %1152 = vmatprep.subr.mxu0 0.0
    %1153 = vmatpush1.msra.mxu0 0.0
    %1154 = vmatprep.subr.mxu0 0.0
    %1155 = vmatpush1.msra.mxu0 0.0
    %1156 = vmatprep.subr.mxu0 0.0
    %1157 = vmatpush1.msra.mxu0 0.0
    %1158 = vmatprep.subr.mxu0 0.0
    %1159 = vmatpush1.msra.mxu0 0.0
    %1160 = vmatprep.subr.mxu0 0.0
    %1161 = vmatpush1.msra.mxu0 0.0
    %1162 = vmatprep.subr.mxu0 0.0
    %1163 = vmatpush1.msra.mxu0 0.0
    %1164 = vmatprep.subr.mxu0 0.0
    %1165 = vmatpush1.msra.mxu0 0.0
    %1166 = vmatprep.subr.mxu0 0.0
    %1167 = vmatpush1.msra.mxu0 0.0
    %1168 = vmatprep.subr.mxu0 0.0
    %1169 = vmatpush1.msra.mxu0 0.0
    %1170 = vmatprep.subr.mxu0 0.0
    %1171 = vmatpush1.msra.mxu0 0.0
    %1172 = vmatprep.subr.mxu0 0.0
    %1173 = vmatpush1.msra.mxu0 0.0
    %1174 = vmatprep.subr.mxu0 0.0
    %1175 = vmatpush1.msra.mxu0 0.0
    %1176 = vmatprep.subr.mxu0 0.0
    %1177 = vmatpush1.msra.mxu0 0.0
    %1178 = vmatprep.subr.mxu0 0.0
    %1179 = vmatpush1.msra.mxu0 0.0
    %1180 = vmatprep.subr.mxu0 0.0
    %1181 = vmatpush1.msra.mxu0 0.0
    %1182 = vmatprep.subr.mxu0 0.0
    %1183 = vmatpush1.msra.mxu0 0.0
    %1184 = vmatprep.subr.mxu0 0.0
    %1185 = vmatpush1.msra.mxu0 0.0
    %1186 = vmatprep.subr.mxu0 0.0
    %1187 = vmatpush1.msra.mxu0 0.0
    %1188 = vmatprep.subr.mxu0 0.0
    %1189 = vmatpush1.msra.mxu0 0.0
    %1190 = vmatprep.subr.mxu0 0.0
    %1191 = vmatpush1.msra.mxu0 0.0
    %1192 = vmatprep.subr.mxu0 0.0
    %1193 = vmatpush1.msra.mxu0 0.0
    %1194 = vmatprep.subr.mxu0 0.0
    %1195 = vmatpush1.msra.mxu0 0.0
    %1196 = vmatprep.mubr.f32.mxu0 0.0
    %1197 = vmatmul.mubr.f32.gmra.mrb[0].mxu0 %v846
    %v1198 = vpop.f32.mrb[0].mxu0
    %v1199 = vadd.f32 %v1128, %v1198
    %v1200 = vpop.f32.mrb[0].mxu0
    %v1201 = vadd.f32 %v1130, %v1200
    %1202 = vdwg.mxu0
    %1203 = vmatprep.subr.mxu0 %v258
    %1204 = vmatpush1.msra.mxu0 %v257
    %1205 = vmatprep.subr.mxu0 %v262
    %1206 = vmatpush1.msra.mxu0 %v261
    %1207 = vmatprep.subr.mxu0 %v266
    %1208 = vmatpush1.msra.mxu0 %v265
    %1209 = vmatprep.subr.mxu0 %v270
    %1210 = vmatpush1.msra.mxu0 %v269
    %1211 = vmatprep.subr.mxu0 %v274
    %1212 = vmatpush1.msra.mxu0 %v273
    %1213 = vmatprep.subr.mxu0 %v278
    %1214 = vmatpush1.msra.mxu0 %v277
    %1215 = vmatprep.subr.mxu0 %v282
    %1216 = vmatpush1.msra.mxu0 %v281
    %1217 = vmatprep.subr.mxu0 %v286
    %1218 = vmatpush1.msra.mxu0 %v285
    %1219 = vmatprep.subr.mxu0 %v290
    %1220 = vmatpush1.msra.mxu0 %v289
    %1221 = vmatprep.subr.mxu0 %v294
    %1222 = vmatpush1.msra.mxu0 %v293
    %1223 = vmatprep.subr.mxu0 %v298
    %1224 = vmatpush1.msra.mxu0 %v297
    %1225 = vmatprep.subr.mxu0 %v302
    %1226 = vmatpush1.msra.mxu0 %v301
    %1227 = vmatprep.subr.mxu0 %v306
    %1228 = vmatpush1.msra.mxu0 %v305
    %1229 = vmatprep.subr.mxu0 %v310
    %1230 = vmatpush1.msra.mxu0 %v309
    %1231 = vmatprep.subr.mxu0 %v314
    %1232 = vmatpush1.msra.mxu0 %v313
    %1233 = vmatprep.subr.mxu0 %v318
    %1234 = vmatpush1.msra.mxu0 %v317
    %1235 = vmatprep.subr.mxu0 %v322
    %1236 = vmatpush1.msra.mxu0 %v321
    %1237 = vmatprep.subr.mxu0 %v326
    %1238 = vmatpush1.msra.mxu0 %v325
    %1239 = vmatprep.subr.mxu0 %v330
    %1240 = vmatpush1.msra.mxu0 %v329
    %1241 = vmatprep.subr.mxu0 %v334
    %1242 = vmatpush1.msra.mxu0 %v333
    %1243 = vmatprep.subr.mxu0 %v338
    %1244 = vmatpush1.msra.mxu0 %v337
    %1245 = vmatprep.subr.mxu0 %v342
    %1246 = vmatpush1.msra.mxu0 %v341
    %1247 = vmatprep.subr.mxu0 %v346
    %1248 = vmatpush1.msra.mxu0 %v345
    %1249 = vmatprep.subr.mxu0 %v350
    %1250 = vmatpush1.msra.mxu0 %v349
    %1251 = vmatprep.subr.mxu0 %v354
    %1252 = vmatpush1.msra.mxu0 %v353
    %1253 = vmatprep.subr.mxu0 %v358
    %1254 = vmatpush1.msra.mxu0 %v357
    %1255 = vmatprep.subr.mxu0 %v362
    %1256 = vmatpush1.msra.mxu0 %v361
    %1257 = vmatprep.subr.mxu0 %v366
    %1258 = vmatpush1.msra.mxu0 %v365
    %1259 = vmatprep.subr.mxu0 %v370
    %1260 = vmatpush1.msra.mxu0 %v369
    %1261 = vmatprep.subr.mxu0 %v374
    %1262 = vmatpush1.msra.mxu0 %v373
    %1263 = vmatprep.subr.mxu0 %v378
    %1264 = vmatpush1.msra.mxu0 %v377
    %1265 = vmatprep.subr.mxu0 %v382
    %1266 = vmatpush1.msra.mxu0 %v381
    %1267 = vmatprep.mubr.f32.mxu0 %v811
    %1268 = vmatmul.mubr.f32.gmra.mrb[0].mxu0 %v803
    %v1269 = vpop.f32.mrb[0].mxu0
    %v1270 = vadd.f32 %v784, %v1269
    %v1271 = vpop.f32.mrb[0].mxu0
    %v1272 = vadd.f32 %v788, %v1271
    %1273 = vdwg.mxu0
    %1274 = vmatprep.subr.mxu0 %v386
    %1275 = vmatpush1.msra.mxu0 %v385
    %1276 = vmatprep.subr.mxu0 %v390
    %1277 = vmatpush1.msra.mxu0 %v389
    %1278 = vmatprep.subr.mxu0 %v394
    %1279 = vmatpush1.msra.mxu0 %v393
    %1280 = vmatprep.subr.mxu0 %v398
    %1281 = vmatpush1.msra.mxu0 %v397
    %1282 = vmatprep.subr.mxu0 %v402
    %1283 = vmatpush1.msra.mxu0 %v401
    %1284 = vmatprep.subr.mxu0 %v406
    %1285 = vmatpush1.msra.mxu0 %v405
    %1286 = vmatprep.subr.mxu0 %v410
    %1287 = vmatpush1.msra.mxu0 %v409
    %1288 = vmatprep.subr.mxu0 %v414
    %1289 = vmatpush1.msra.mxu0 %v413
    %1290 = vmatprep.subr.mxu0 %v418
    %1291 = vmatpush1.msra.mxu0 %v417
    %1292 = vmatprep.subr.mxu0 %v422
    %1293 = vmatpush1.msra.mxu0 %v421
    %1294 = vmatprep.subr.mxu0 %v426
    %1295 = vmatpush1.msra.mxu0 %v425
    %1296 = vmatprep.subr.mxu0 %v430
    %1297 = vmatpush1.msra.mxu0 %v429
    %1298 = vmatprep.subr.mxu0 %v434
    %1299 = vmatpush1.msra.mxu0 %v433
    %1300 = vmatprep.subr.mxu0 %v438
    %1301 = vmatpush1.msra.mxu0 %v437
    %1302 = vmatprep.subr.mxu0 %v442
    %1303 = vmatpush1.msra.mxu0 %v441
    %1304 = vmatprep.subr.mxu0 %v446
    %1305 = vmatpush1.msra.mxu0 %v445
    %1306 = vmatprep.subr.mxu0 %v450
    %1307 = vmatpush1.msra.mxu0 %v449
    %1308 = vmatprep.subr.mxu0 %v454
    %1309 = vmatpush1.msra.mxu0 %v453
    %1310 = vmatprep.subr.mxu0 %v458
    %1311 = vmatpush1.msra.mxu0 %v457
    %1312 = vmatprep.subr.mxu0 %v462
    %1313 = vmatpush1.msra.mxu0 %v461
    %1314 = vmatprep.subr.mxu0 %v466
    %1315 = vmatpush1.msra.mxu0 %v465
    %1316 = vmatprep.subr.mxu0 %v470
    %1317 = vmatpush1.msra.mxu0 %v469
    %1318 = vmatprep.subr.mxu0 %v474
    %1319 = vmatpush1.msra.mxu0 %v473
    %1320 = vmatprep.subr.mxu0 %v478
    %1321 = vmatpush1.msra.mxu0 %v477
    %1322 = vmatprep.subr.mxu0 %v482
    %1323 = vmatpush1.msra.mxu0 %v481
    %1324 = vmatprep.subr.mxu0 %v486
    %1325 = vmatpush1.msra.mxu0 %v485
    %1326 = vmatprep.subr.mxu0 %v490
    %1327 = vmatpush1.msra.mxu0 %v489
    %1328 = vmatprep.subr.mxu0 %v494
    %1329 = vmatpush1.msra.mxu0 %v493
    %1330 = vmatprep.subr.mxu0 %v498
    %1331 = vmatpush1.msra.mxu0 %v497
    %1332 = vmatprep.subr.mxu0 %v502
    %1333 = vmatpush1.msra.mxu0 %v501
    %1334 = vmatprep.subr.mxu0 %v506
    %1335 = vmatpush1.msra.mxu0 %v505
    %1336 = vmatprep.subr.mxu0 %v510
    %1337 = vmatpush1.msra.mxu0 %v509
    %1338 = vmatprep.mubr.f32.mxu0 %v812
    %1339 = vmatmul.mubr.f32.gmra.mrb[0].mxu0 %v810
    %v1340 = vpop.f32.mrb[0].mxu0
    %v1341 = vadd.f32 %v1270, %v1340
    %v1342 = vpop.f32.mrb[0].mxu0
    %v1343 = vadd.f32 %v1272, %v1342
    %1344 = vdwg.mxu0
    %1345 = vmatprep.subr.mxu0 %v514
    %1346 = vmatpush1.msra.mxu0 %v513
    %1347 = vmatprep.subr.mxu0 %v518
    %1348 = vmatpush1.msra.mxu0 %v517
    %1349 = vmatprep.subr.mxu0 %v522
    %1350 = vmatpush1.msra.mxu0 %v521
    %1351 = vmatprep.subr.mxu0 %v526
    %1352 = vmatpush1.msra.mxu0 %v525
    %1353 = vmatprep.subr.mxu0 %v530
    %1354 = vmatpush1.msra.mxu0 %v529
    %1355 = vmatprep.subr.mxu0 %v534
    %1356 = vmatpush1.msra.mxu0 %v533
    %1357 = vmatprep.subr.mxu0 %v538
    %1358 = vmatpush1.msra.mxu0 %v537
    %1359 = vmatprep.subr.mxu0 %v542
    %1360 = vmatpush1.msra.mxu0 %v541
    %1361 = vmatprep.subr.mxu0 %v546
    %1362 = vmatpush1.msra.mxu0 %v545
    %1363 = vmatprep.subr.mxu0 %v550
    %1364 = vmatpush1.msra.mxu0 %v549
    %1365 = vmatprep.subr.mxu0 %v554
    %1366 = vmatpush1.msra.mxu0 %v553
    %1367 = vmatprep.subr.mxu0 %v558
    %1368 = vmatpush1.msra.mxu0 %v557
    %1369 = vmatprep.subr.mxu0 %v562
    %1370 = vmatpush1.msra.mxu0 %v561
    %1371 = vmatprep.subr.mxu0 %v566
    %1372 = vmatpush1.msra.mxu0 %v565
    %1373 = vmatprep.subr.mxu0 %v570
    %1374 = vmatpush1.msra.mxu0 %v569
    %1375 = vmatprep.subr.mxu0 %v574
    %1376 = vmatpush1.msra.mxu0 %v573
    %1377 = vmatprep.subr.mxu0 %v578
    %1378 = vmatpush1.msra.mxu0 %v577
    %1379 = vmatprep.subr.mxu0 %v582
    %1380 = vmatpush1.msra.mxu0 %v581
    %1381 = vmatprep.subr.mxu0 %v586
    %1382 = vmatpush1.msra.mxu0 %v585
    %1383 = vmatprep.subr.mxu0 %v590
    %1384 = vmatpush1.msra.mxu0 %v589
    %1385 = vmatprep.subr.mxu0 %v594
    %1386 = vmatpush1.msra.mxu0 %v593
    %1387 = vmatprep.subr.mxu0 %v598
    %1388 = vmatpush1.msra.mxu0 %v597
    %1389 = vmatprep.subr.mxu0 %v602
    %1390 = vmatpush1.msra.mxu0 %v601
    %1391 = vmatprep.subr.mxu0 %v606
    %1392 = vmatpush1.msra.mxu0 %v605
    %1393 = vmatprep.subr.mxu0 %v610
    %1394 = vmatpush1.msra.mxu0 %v609
    %1395 = vmatprep.subr.mxu0 %v614
    %1396 = vmatpush1.msra.mxu0 %v613
    %1397 = vmatprep.subr.mxu0 %v618
    %1398 = vmatpush1.msra.mxu0 %v617
    %1399 = vmatprep.subr.mxu0 %v622
    %1400 = vmatpush1.msra.mxu0 %v621
    %1401 = vmatprep.subr.mxu0 %v626
    %1402 = vmatpush1.msra.mxu0 %v625
    %1403 = vmatprep.subr.mxu0 %v630
    %1404 = vmatpush1.msra.mxu0 %v629
    %1405 = vmatprep.subr.mxu0 %v634
    %1406 = vmatpush1.msra.mxu0 %v633
    %1407 = vmatprep.subr.mxu0 %v638
    %1408 = vmatpush1.msra.mxu0 %v637
    %1409 = vmatprep.mubr.f32.mxu0 %v828
    %1410 = vmatmul.mubr.f32.gmra.mrb[0].mxu0 %v820
    %v1411 = vpop.f32.mrb[0].mxu0
    %v1412 = vadd.f32 %v1341, %v1411
    %v1413 = vpop.f32.mrb[0].mxu0
    %v1414 = vadd.f32 %v1343, %v1413
    %1415 = vdwg.mxu0
    %1416 = vmatprep.subr.mxu0 %v642
    %1417 = vmatpush1.msra.mxu0 %v641
    %1418 = vmatprep.subr.mxu0 %v646
    %1419 = vmatpush1.msra.mxu0 %v645
    %1420 = vmatprep.subr.mxu0 %v650
    %1421 = vmatpush1.msra.mxu0 %v649
    %1422 = vmatprep.subr.mxu0 %v654
    %1423 = vmatpush1.msra.mxu0 %v653
    %1424 = vmatprep.subr.mxu0 %v658
    %1425 = vmatpush1.msra.mxu0 %v657
    %1426 = vmatprep.subr.mxu0 %v662
    %1427 = vmatpush1.msra.mxu0 %v661
    %1428 = vmatprep.subr.mxu0 %v666
    %1429 = vmatpush1.msra.mxu0 %v665
    %1430 = vmatprep.subr.mxu0 %v670
    %1431 = vmatpush1.msra.mxu0 %v669
    %1432 = vmatprep.subr.mxu0 %v674
    %1433 = vmatpush1.msra.mxu0 %v673
    %1434 = vmatprep.subr.mxu0 %v678
    %1435 = vmatpush1.msra.mxu0 %v677
    %1436 = vmatprep.subr.mxu0 %v682
    %1437 = vmatpush1.msra.mxu0 %v681
    %1438 = vmatprep.subr.mxu0 %v686
    %1439 = vmatpush1.msra.mxu0 %v685
    %1440 = vmatprep.subr.mxu0 %v690
    %1441 = vmatpush1.msra.mxu0 %v689
    %1442 = vmatprep.subr.mxu0 %v694
    %1443 = vmatpush1.msra.mxu0 %v693
    %1444 = vmatprep.subr.mxu0 %v698
    %1445 = vmatpush1.msra.mxu0 %v697
    %1446 = vmatprep.subr.mxu0 %v702
    %1447 = vmatpush1.msra.mxu0 %v701
    %1448 = vmatprep.subr.mxu0 %v706
    %1449 = vmatpush1.msra.mxu0 %v705
    %1450 = vmatprep.subr.mxu0 %v710
    %1451 = vmatpush1.msra.mxu0 %v709
    %1452 = vmatprep.subr.mxu0 %v714
    %1453 = vmatpush1.msra.mxu0 %v713
    %1454 = vmatprep.subr.mxu0 %v718
    %1455 = vmatpush1.msra.mxu0 %v717
    %1456 = vmatprep.subr.mxu0 %v722
    %1457 = vmatpush1.msra.mxu0 %v721
    %1458 = vmatprep.subr.mxu0 %v726
    %1459 = vmatpush1.msra.mxu0 %v725
    %1460 = vmatprep.subr.mxu0 %v730
    %1461 = vmatpush1.msra.mxu0 %v729
    %1462 = vmatprep.subr.mxu0 %v734
    %1463 = vmatpush1.msra.mxu0 %v733
    %1464 = vmatprep.subr.mxu0 %v738
    %1465 = vmatpush1.msra.mxu0 %v737
    %1466 = vmatprep.subr.mxu0 %v742
    %1467 = vmatpush1.msra.mxu0 %v741
    %1468 = vmatprep.subr.mxu0 %v746
    %1469 = vmatpush1.msra.mxu0 %v745
    %1470 = vmatprep.subr.mxu0 %v750
    %1471 = vmatpush1.msra.mxu0 %v749
    %1472 = vmatprep.subr.mxu0 %v754
    %1473 = vmatpush1.msra.mxu0 %v753
    %1474 = vmatprep.subr.mxu0 %v758
    %1475 = vmatpush1.msra.mxu0 %v757
    %1476 = vmatprep.subr.mxu0 %v762
    %1477 = vmatpush1.msra.mxu0 %v761
    %1478 = vmatprep.subr.mxu0 %v766
    %1479 = vmatpush1.msra.mxu0 %v765
    %1480 = vmatprep.mubr.f32.mxu0 %v829
    %1481 = vmatmul.mubr.f32.gmra.mrb[0].mxu0 %v827
    %v1482 = vpop.f32.mrb[0].mxu0
    %v1483 = vadd.f32 %v1412, %v1482
    %v1484 = vpop.f32.mrb[0].mxu0
    %v1485 = vadd.f32 %v1414, %v1484
    %1486 = vdwg.mxu0
    %1487 = vmatprep.subr.mxu0 %v770
    %1488 = vmatpush1.msra.mxu0 %v769
    %1489 = vmatprep.subr.mxu0 0.0
    %1490 = vmatpush1.msra.mxu0 0.0
    %1491 = vmatprep.subr.mxu0 0.0
    %1492 = vmatpush1.msra.mxu0 0.0
    %1493 = vmatprep.subr.mxu0 0.0
    %1494 = vmatpush1.msra.mxu0 0.0
    %1495 = vmatprep.subr.mxu0 0.0
    %1496 = vmatpush1.msra.mxu0 0.0
    %1497 = vmatprep.subr.mxu0 0.0
    %1498 = vmatpush1.msra.mxu0 0.0
    %1499 = vmatprep.subr.mxu0 0.0
    %1500 = vmatpush1.msra.mxu0 0.0
    %1501 = vmatprep.subr.mxu0 0.0
    %1502 = vmatpush1.msra.mxu0 0.0
    %1503 = vmatprep.subr.mxu0 0.0
    %1504 = vmatpush1.msra.mxu0 0.0
    %1505 = vmatprep.subr.mxu0 0.0
    %1506 = vmatpush1.msra.mxu0 0.0
    %1507 = vmatprep.subr.mxu0 0.0
    %1508 = vmatpush1.msra.mxu0 0.0
    %1509 = vmatprep.subr.mxu0 0.0
    %1510 = vmatpush1.msra.mxu0 0.0
    %1511 = vmatprep.subr.mxu0 0.0
    %1512 = vmatpush1.msra.mxu0 0.0
    %1513 = vmatprep.subr.mxu0 0.0
    %1514 = vmatpush1.msra.mxu0 0.0
    %1515 = vmatprep.subr.mxu0 0.0
    %1516 = vmatpush1.msra.mxu0 0.0
    %1517 = vmatprep.subr.mxu0 0.0
    %1518 = vmatpush1.msra.mxu0 0.0
    %1519 = vmatprep.subr.mxu0 0.0
    %1520 = vmatpush1.msra.mxu0 0.0
    %1521 = vmatprep.subr.mxu0 0.0
    %1522 = vmatpush1.msra.mxu0 0.0
    %1523 = vmatprep.subr.mxu0 0.0
    %1524 = vmatpush1.msra.mxu0 0.0
    %1525 = vmatprep.subr.mxu0 0.0
    %1526 = vmatpush1.msra.mxu0 0.0
    %1527 = vmatprep.subr.mxu0 0.0
    %1528 = vmatpush1.msra.mxu0 0.0
    %1529 = vmatprep.subr.mxu0 0.0
    %1530 = vmatpush1.msra.mxu0 0.0
    %1531 = vmatprep.subr.mxu0 0.0
    %1532 = vmatpush1.msra.mxu0 0.0
    %1533 = vmatprep.subr.mxu0 0.0
    %1534 = vmatpush1.msra.mxu0 0.0
    %1535 = vmatprep.subr.mxu0 0.0
    %1536 = vmatpush1.msra.mxu0 0.0
    %1537 = vmatprep.subr.mxu0 0.0
    %1538 = vmatpush1.msra.mxu0 0.0
    %1539 = vmatprep.subr.mxu0 0.0
    %1540 = vmatpush1.msra.mxu0 0.0
    %1541 = vmatprep.subr.mxu0 0.0
    %1542 = vmatpush1.msra.mxu0 0.0
    %1543 = vmatprep.subr.mxu0 0.0
    %1544 = vmatpush1.msra.mxu0 0.0
    %1545 = vmatprep.subr.mxu0 0.0
    %1546 = vmatpush1.msra.mxu0 0.0
    %1547 = vmatprep.subr.mxu0 0.0
    %1548 = vmatpush1.msra.mxu0 0.0
    %1549 = vmatprep.subr.mxu0 0.0
    %1550 = vmatpush1.msra.mxu0 0.0
    %1551 = vmatprep.mubr.f32.mxu0 0.0
    %1552 = vmatmul.mubr.f32.gmra.mrb[0].mxu0 %v846
    %v1553 = vpop.f32.mrb[0].mxu0
    %v1554 = vadd.f32 %v1483, %v1553
    %v1555 = vpop.f32.mrb[0].mxu0
    %v1556 = vadd.f32 %v1485, %v1555
    %1557 = vdwg.mxu0
    %v1558 = vmax.f32 %v1199, 0.0
    %v1559 = vmax.f32 %v1201, 0.0
    %v1560 = vmax.f32 %v1554, 0.0
    %v1561 = vmax.f32 %v1556, 0.0
    %v1563 = vrot.slane %v1559, 6
    %v1566 = vrot.slane %v1560, 4
    %v1569 = vrot.slane %v1561, 2
    %vm1571 = vcmask 1041408
    %v1572 = vsel %vm1571, %v1558, %v1563
    %vm1573 = vcmask 1043456
    %v1574 = vsel %vm1573, %v1572, %v1566
    %vm1575 = vcmask 1045504
    %v1576 = vsel %vm1575, %v1574, %v1569
    %v1577 = vld [vmem:[#allocation8] sm:$0xff]
    %v1578 = vld [vmem:[#allocation8 + $0x8] sm:$0xff]
    %v1579 = vld [vmem:[#allocation8 + $0x10] sm:$0xff]
    %v1580 = vld [vmem:[#allocation8 + $0x18] sm:$0xff]
    %v1581 = vld [vmem:[#allocation8 + $0x20] sm:$0xff]
    %v1582 = vld [vmem:[#allocation8 + $0x28] sm:$0xff]
    %v1583 = vld [vmem:[#allocation8 + $0x30] sm:$0xff]
    %v1584 = vld [vmem:[#allocation8 + $0x38] sm:$0xff]
    %v1585 = vld [vmem:[#allocation8 + $0x40] sm:$0xff]
    %v1586 = vld [vmem:[#allocation8 + $0x48] sm:$0xff]
    %v1587 = vld [vmem:[#allocation8 + $0x50] sm:$0xff]
    %v1588 = vld [vmem:[#allocation8 + $0x58] sm:$0xff]
    %v1589 = vld [vmem:[#allocation8 + $0x60] sm:$0xff]
    %v1590 = vld [vmem:[#allocation8 + $0x68] sm:$0xff]
    %v1591 = vld [vmem:[#allocation8 + $0x70] sm:$0xff]
    %v1592 = vld [vmem:[#allocation8 + $0x78] sm:$0xff]
    %v1593 = vld [vmem:[#allocation8 + $0x80] sm:$0xff]
    %v1594 = vld [vmem:[#allocation8 + $0x88] sm:$0xff]
    %v1595 = vld [vmem:[#allocation8 + $0x90] sm:$0xff]
    %v1596 = vld [vmem:[#allocation8 + $0x98] sm:$0xff]
    %v1597 = vld [vmem:[#allocation8 + $0xa0] sm:$0xff]
    %v1598 = vld [vmem:[#allocation8 + $0xa8] sm:$0xff]
    %v1599 = vld [vmem:[#allocation8 + $0xb0] sm:$0xff]
    %v1600 = vld [vmem:[#allocation8 + $0xb8] sm:$0xff]
    %v1601 = vld [vmem:[#allocation8 + $0xc0] sm:$0xff]
    %v1602 = vld [vmem:[#allocation8 + $0xc8] sm:$0xff]
    %v1603 = vld [vmem:[#allocation8 + $0xd0] sm:$0xff]
    %v1604 = vld [vmem:[#allocation8 + $0xd8] sm:$0xff]
    %v1605 = vld [vmem:[#allocation8 + $0xe0] sm:$0xff]
    %v1606 = vld [vmem:[#allocation8 + $0xe8] sm:$0xff]
    %v1607 = vld [vmem:[#allocation8 + $0xf0] sm:$0xff]
    %v1608 = vld [vmem:[#allocation8 + $0xf8] sm:$0xff]
    %v1609 = vld [vmem:[#allocation8 + $0x100] sm:$0xff]
    %v1610 = vld [vmem:[#allocation8 + $0x108] sm:$0xff]
    %v1611 = vld [vmem:[#allocation8 + $0x110] sm:$0xff]
    %v1612 = vld [vmem:[#allocation8 + $0x118] sm:$0xff]
    %v1613 = vld [vmem:[#allocation8 + $0x120] sm:$0xff]
    %v1614 = vld [vmem:[#allocation8 + $0x128] sm:$0xff]
    %v1615 = vld [vmem:[#allocation8 + $0x130] sm:$0xff]
    %v1616 = vld [vmem:[#allocation8 + $0x138] sm:$0xff]
    %v1617 = vld [vmem:[#allocation8 + $0x140] sm:$0xff]
    %v1618 = vld [vmem:[#allocation8 + $0x148] sm:$0xff]
    %v1619 = vld [vmem:[#allocation8 + $0x150] sm:$0xff]
    %v1620 = vld [vmem:[#allocation8 + $0x158] sm:$0xff]
    %v1621 = vld [vmem:[#allocation8 + $0x160] sm:$0xff]
    %v1622 = vld [vmem:[#allocation8 + $0x168] sm:$0xff]
    %v1623 = vld [vmem:[#allocation8 + $0x170] sm:$0xff]
    %v1624 = vld [vmem:[#allocation8 + $0x178] sm:$0xff]
    %v1625 = vld [vmem:[#allocation10] sm:$0x7]
    %v1627 = vlaneseq
    %v1628 = vshrl.u32 %v1627, 7
    %v1629 = vsub.s32 0, %v1628
    %v1630 = vrot.slane %v1625, %v1629
    %v1631 = vlaneseq
    %v1632 = vshrl.u32 %v1631, 7
    %v1633 = vsub.s32 1, %v1632
    %v1634 = vrot.slane %v1625, %v1633
    %v1635 = vlaneseq
    %v1636 = vshrl.u32 %v1635, 7
    %v1637 = vsub.s32 2, %v1636
    %v1638 = vrot.slane %v1625, %v1637
    %1642 = vmatprep.subr.mxu0 %v1578
    %1643 = vmatpush1.msra.mxu0 %v1577
    %1644 = vmatprep.subr.mxu0 %v1581
    %1645 = vmatpush1.msra.mxu0 %v1580
    %1646 = vmatprep.subr.mxu0 %v1584
    %1647 = vmatpush1.msra.mxu0 %v1583
    %1648 = vmatprep.subr.mxu0 %v1587
    %1649 = vmatpush1.msra.mxu0 %v1586
    %1650 = vmatprep.subr.mxu0 %v1590
    %1651 = vmatpush1.msra.mxu0 %v1589
    %1652 = vmatprep.subr.mxu0 %v1593
    %1653 = vmatpush1.msra.mxu0 %v1592
    %1654 = vmatprep.subr.mxu0 %v1596
    %1655 = vmatpush1.msra.mxu0 %v1595
    %1656 = vmatprep.subr.mxu0 %v1599
    %1657 = vmatpush1.msra.mxu0 %v1598
    %1658 = vmatprep.subr.mxu0 %v1602
    %1659 = vmatpush1.msra.mxu0 %v1601
    %1660 = vmatprep.subr.mxu0 %v1605
    %1661 = vmatpush1.msra.mxu0 %v1604
    %1662 = vmatprep.subr.mxu0 %v1608
    %1663 = vmatpush1.msra.mxu0 %v1607
    %1664 = vmatprep.subr.mxu0 %v1611
    %1665 = vmatpush1.msra.mxu0 %v1610
    %1666 = vmatprep.subr.mxu0 %v1614
    %1667 = vmatpush1.msra.mxu0 %v1613
    %1668 = vmatprep.subr.mxu0 %v1617
    %1669 = vmatpush1.msra.mxu0 %v1616
    %1670 = vmatprep.subr.mxu0 %v1620
    %1671 = vmatpush1.msra.mxu0 %v1619
    %1672 = vmatprep.subr.mxu0 %v1623
    %1673 = vmatpush1.msra.mxu0 %v1622
    %1674 = vmatprep.subr.mxu0 0.0
    %1675 = vmatpush1.msra.mxu0 0.0
    %1676 = vmatprep.subr.mxu0 0.0
    %1677 = vmatpush1.msra.mxu0 0.0
    %1678 = vmatprep.subr.mxu0 0.0
    %1679 = vmatpush1.msra.mxu0 0.0
    %1680 = vmatprep.subr.mxu0 0.0
    %1681 = vmatpush1.msra.mxu0 0.0
    %1682 = vmatprep.subr.mxu0 0.0
    %1683 = vmatpush1.msra.mxu0 0.0
    %1684 = vmatprep.subr.mxu0 0.0
    %1685 = vmatpush1.msra.mxu0 0.0
    %1686 = vmatprep.subr.mxu0 0.0
    %1687 = vmatpush1.msra.mxu0 0.0
    %1688 = vmatprep.subr.mxu0 0.0
    %1689 = vmatpush1.msra.mxu0 0.0
    %1690 = vmatprep.subr.mxu0 0.0
    %1691 = vmatpush1.msra.mxu0 0.0
    %1692 = vmatprep.subr.mxu0 0.0
    %1693 = vmatpush1.msra.mxu0 0.0
    %1694 = vmatprep.subr.mxu0 0.0
    %1695 = vmatpush1.msra.mxu0 0.0
    %1696 = vmatprep.subr.mxu0 0.0
    %1697 = vmatpush1.msra.mxu0 0.0
    %1698 = vmatprep.subr.mxu0 0.0
    %1699 = vmatpush1.msra.mxu0 0.0
    %1700 = vmatprep.subr.mxu0 0.0
    %1701 = vmatpush1.msra.mxu0 0.0
    %1702 = vmatprep.subr.mxu0 0.0
    %1703 = vmatpush1.msra.mxu0 0.0
    %1704 = vmatprep.subr.mxu0 0.0
    %1705 = vmatpush1.msra.mxu0 0.0
    %1706 = vmatprep.mubr.f32.mxu0 0.0
    %1707 = vmatmul.mubr.f32.gmra.mrb[0].mxu0 %v1576
    %v1708 = vpop.f32.mrb[0].mxu0
    %v1709 = vadd.f32 %v1630, %v1708
    %v1710 = vpop.f32.mrb[0].mxu0
    %v1711 = vadd.f32 %v1634, %v1710
    %1712 = vdwg.mxu0
    %1713 = vmatprep.subr.mxu0 0.0
    %1714 = vmatpush1.msra.mxu0 %v1579
    %1715 = vmatprep.subr.mxu0 0.0
    %1716 = vmatpush1.msra.mxu0 %v1582
    %1717 = vmatprep.subr.mxu0 0.0
    %1718 = vmatpush1.msra.mxu0 %v1585
    %1719 = vmatprep.subr.mxu0 0.0
    %1720 = vmatpush1.msra.mxu0 %v1588
    %1721 = vmatprep.subr.mxu0 0.0
    %1722 = vmatpush1.msra.mxu0 %v1591
    %1723 = vmatprep.subr.mxu0 0.0
    %1724 = vmatpush1.msra.mxu0 %v1594
    %1725 = vmatprep.subr.mxu0 0.0
    %1726 = vmatpush1.msra.mxu0 %v1597
    %1727 = vmatprep.subr.mxu0 0.0
    %1728 = vmatpush1.msra.mxu0 %v1600
    %1729 = vmatprep.subr.mxu0 0.0
    %1730 = vmatpush1.msra.mxu0 %v1603
    %1731 = vmatprep.subr.mxu0 0.0
    %1732 = vmatpush1.msra.mxu0 %v1606
    %1733 = vmatprep.subr.mxu0 0.0
    %1734 = vmatpush1.msra.mxu0 %v1609
    %1735 = vmatprep.subr.mxu0 0.0
    %1736 = vmatpush1.msra.mxu0 %v1612
    %1737 = vmatprep.subr.mxu0 0.0
    %1738 = vmatpush1.msra.mxu0 %v1615
    %1739 = vmatprep.subr.mxu0 0.0
    %1740 = vmatpush1.msra.mxu0 %v1618
    %1741 = vmatprep.subr.mxu0 0.0
    %1742 = vmatpush1.msra.mxu0 %v1621
    %1743 = vmatprep.subr.mxu0 0.0
    %1744 = vmatpush1.msra.mxu0 %v1624
    %1745 = vmatprep.subr.mxu0 0.0
    %1746 = vmatpush1.msra.mxu0 0.0
    %1747 = vmatprep.subr.mxu0 0.0
    %1748 = vmatpush1.msra.mxu0 0.0
    %1749 = vmatprep.subr.mxu0 0.0
    %1750 = vmatpush1.msra.mxu0 0.0
    %1751 = vmatprep.subr.mxu0 0.0
    %1752 = vmatpush1.msra.mxu0 0.0
    %1753 = vmatprep.subr.mxu0 0.0
    %1754 = vmatpush1.msra.mxu0 0.0
    %1755 = vmatprep.subr.mxu0 0.0
    %1756 = vmatpush1.msra.mxu0 0.0
    %1757 = vmatprep.subr.mxu0 0.0
    %1758 = vmatpush1.msra.mxu0 0.0
    %1759 = vmatprep.subr.mxu0 0.0
    %1760 = vmatpush1.msra.mxu0 0.0
    %1761 = vmatprep.subr.mxu0 0.0
    %1762 = vmatpush1.msra.mxu0 0.0
    %1763 = vmatprep.subr.mxu0 0.0
    %1764 = vmatpush1.msra.mxu0 0.0
    %1765 = vmatprep.subr.mxu0 0.0
    %1766 = vmatpush1.msra.mxu0 0.0
    %1767 = vmatprep.subr.mxu0 0.0
    %1768 = vmatpush1.msra.mxu0 0.0
    %1769 = vmatprep.subr.mxu0 0.0
    %1770 = vmatpush1.msra.mxu0 0.0
    %1771 = vmatprep.subr.mxu0 0.0
    %1772 = vmatpush1.msra.mxu0 0.0
    %1773 = vmatprep.subr.mxu0 0.0
    %1774 = vmatpush1.msra.mxu0 0.0
    %1775 = vmatprep.subr.mxu0 0.0
    %1776 = vmatpush1.msra.mxu0 0.0
    %1777 = vmatprep.mubr.f32.mxu0 0.0
    %1778 = vmatmul.mubr.f32.gmra.mrb[0].mxu0 %v1576
    %v1779 = vpop.f32.mrb[0].mxu0
    %v1780 = vadd.f32 %v1638, %v1779
    %v1781 = vpop.f32.mrb[0].mxu0
    %1782 = vdwg.mxu0
    %v1783 = vlaneseq
    %v1784 = vshrl.u32 %v1783, 7
    %v1785 = vlaneseq
    %v1786 = vand.u32 %v1785, 127
    %vm1787 = vcmp.lt.s32.totalorder %v1784, 0
    %v1788 = vsub.s32 0, %v1784
    %v1789 = vsel %vm1787, %v1788, %v1784
    %v1790 = vshrl.u32 %v1789, 1
    %v1791 = vand.u32 %v1789, 1
    %v1792 = vsub.s32 0, %v1791
    %v1793 = vsel %vm1787, %v1792, %v1791
    %vm1794 = vcmp.ne.s32.totalorder %v1793, 0
    %vm1795 = vcmp.lt.s32.totalorder %v1793, 0
    %vm1796 = vmand %vm1795, %vm1794
    %v1797 = vadd.s32 %v1793, 2
    %v1798 = vsel %vm1796, %v1797, %v1793
    %vm1799 = vcmp.lt.s32.totalorder %v1786, 0
    %v1800 = vsub.s32 0, %v1786
    %v1801 = vsel %vm1799, %v1800, %v1786
    %v1802 = vshrl.u32 %v1801, 1
    %v1803 = vand.u32 %v1801, 1
    %v1804 = vsub.s32 0, %v1803
    %v1805 = vsel %vm1799, %v1804, %v1803
    %vm1806 = vcmp.ne.s32.totalorder %v1805, 0
    %vm1807 = vcmp.lt.s32.totalorder %v1805, 0
    %vm1808 = vmand %vm1807, %vm1806
    %v1809 = vadd.s32 %v1805, 2
    %v1810 = vsel %vm1808, %v1809, %v1805
    %vm1811 = vcmp.eq.s32.totalorder %v1798, %v1810
    %vm1812 = vcmp.ge.s32.totalorder %v1786, 0
    %vm1813 = vcmp.lt.s32.totalorder %v1786, 64
    %vm1814 = vmand %vm1812, %vm1813
    %v1815 = vsel %vm1814, 1.0, 0.0
    %v1816 = vmul.f32 %v1709, %v1815
    %1817 = vmatprep.subr.mxu0 0.0
    %1818 = vmatpush1.xpose.msra.mxu0 %v1711
    %1819 = vmatprep.subr.mxu0 0.0
    %1820 = vmatpush1.xpose.msra.mxu0 0.0
    %1821 = vmatprep.subr.mxu0 0.0
    %1822 = vmatpush1.xpose.msra.mxu0 0.0
    %1823 = vmatprep.subr.mxu0 0.0
    %1824 = vmatpush1.xpose.msra.mxu0 0.0
    %1825 = vmatprep.subr.mxu0 0.0
    %1826 = vmatpush1.xpose.msra.mxu0 0.0
    %1827 = vmatprep.subr.mxu0 0.0
    %1828 = vmatpush1.xpose.msra.mxu0 0.0
    %1829 = vmatprep.subr.mxu0 0.0
    %1830 = vmatpush1.xpose.msra.mxu0 0.0
    %1831 = vmatprep.subr.mxu0 0.0
    %1832 = vmatpush1.xpose.msra.mxu0 0.0
    %1833 = vmatprep.subr.mxu0 0.0
    %1834 = vmatpush1.xpose.msra.mxu0 0.0
    %1835 = vmatprep.subr.mxu0 0.0
    %1836 = vmatpush1.xpose.msra.mxu0 0.0
    %1837 = vmatprep.subr.mxu0 0.0
    %1838 = vmatpush1.xpose.msra.mxu0 0.0
    %1839 = vmatprep.subr.mxu0 0.0
    %1840 = vmatpush1.xpose.msra.mxu0 0.0
    %1841 = vmatprep.subr.mxu0 0.0
    %1842 = vmatpush1.xpose.msra.mxu0 0.0
    %1843 = vmatprep.subr.mxu0 0.0
    %1844 = vmatpush1.xpose.msra.mxu0 0.0
    %1845 = vmatprep.subr.mxu0 0.0
    %1846 = vmatpush1.xpose.msra.mxu0 0.0
    %1847 = vmatprep.subr.mxu0 0.0
    %1848 = vmatpush1.xpose.msra.mxu0 0.0
    %1849 = vmatprep.subr.mxu0 0.0
    %1850 = vmatpush1.xpose.msra.mxu0 0.0
    %1851 = vmatprep.subr.mxu0 0.0
    %1852 = vmatpush1.xpose.msra.mxu0 0.0
    %1853 = vmatprep.subr.mxu0 0.0
    %1854 = vmatpush1.xpose.msra.mxu0 0.0
    %1855 = vmatprep.subr.mxu0 0.0
    %1856 = vmatpush1.xpose.msra.mxu0 0.0
    %1857 = vmatprep.subr.mxu0 0.0
    %1858 = vmatpush1.xpose.msra.mxu0 0.0
    %1859 = vmatprep.subr.mxu0 0.0
    %1860 = vmatpush1.xpose.msra.mxu0 0.0
    %1861 = vmatprep.subr.mxu0 0.0
    %1862 = vmatpush1.xpose.msra.mxu0 0.0
    %1863 = vmatprep.subr.mxu0 0.0
    %1864 = vmatpush1.xpose.msra.mxu0 0.0
    %1865 = vmatprep.subr.mxu0 0.0
    %1866 = vmatpush1.xpose.msra.mxu0 0.0
    %1867 = vmatprep.subr.mxu0 0.0
    %1868 = vmatpush1.xpose.msra.mxu0 0.0
    %1869 = vmatprep.subr.mxu0 0.0
    %1870 = vmatpush1.xpose.msra.mxu0 0.0
    %1871 = vmatprep.subr.mxu0 0.0
    %1872 = vmatpush1.xpose.msra.mxu0 0.0
    %1873 = vmatprep.subr.mxu0 0.0
    %1874 = vmatpush1.xpose.msra.mxu0 0.0
    %1875 = vmatprep.subr.mxu0 0.0
    %1876 = vmatpush1.xpose.msra.mxu0 0.0
    %1877 = vmatprep.subr.mxu0 0.0
    %1878 = vmatpush1.xpose.msra.mxu0 0.0
    %1879 = vmatprep.subr.mxu0 0.0
    %1880 = vmatpush1.xpose.msra.mxu0 0.0
    %1881 = vmatprep.mubr.f32.mxu0 0.0
    %1882 = vmatmul.mubr.f32.gmra.mrb[0].mxu0 %v1816
    %v1883 = vpop.f32.mrb[0].mxu0
    %v1884 = vadd.f32 0.0, %v1883
    %v1885 = vpop.f32.mrb[0].mxu0
    %1886 = vdwg.mxu0
    %v1887 = vmul.f32 %v1884, 0.125
    %v1888 = vsel %vm1811, %v1887, -1e+30
    %v1889 = vsel %vm845, %v1888, -inf
    %1890 = vmax.xlane.f32.xlu0 %v1889
    %v1891 = vpop.xlane.xlu0 %1890
    %v1892 = vsub.f32 %v1888, %v1891
    %v1893 = vmul.f32 %v1892, 1.442695
    %v1894 = vpow.pop %v1893
    %v1895 = vsel %vm845, %v1894, 0.0
    %1896 = vadd.xlane.f32.xlu0 %v1895
    %v1897 = vpop.xlane.xlu0 %1896
    %v1898 = vrcp.pop %v1897
    %v1899 = vmul.f32 %v1894, %v1898
    %v1900 = vmul.f32 %v1780, %v1815
    %vm1901 = vcmp.ge.s32.totalorder %v1786, 64
    %vm1902 = vcmp.lt.s32.totalorder %v1786, 128
    %vm1903 = vmand %vm1901, %vm1902
    %v1904 = vsel %vm1903, 1.0, 0.0
    %v1905 = vmul.f32 %v1709, %v1904
    %1906 = vmatprep.subr.mxu0 0.0
    %1907 = vmatpush1.xpose.msra.mxu0 %v1711
    %1908 = vmatprep.subr.mxu0 0.0
    %1909 = vmatpush1.xpose.msra.mxu0 0.0
    %1910 = vmatprep.subr.mxu0 0.0
    %1911 = vmatpush1.xpose.msra.mxu0 0.0
    %1912 = vmatprep.subr.mxu0 0.0
    %1913 = vmatpush1.xpose.msra.mxu0 0.0
    %1914 = vmatprep.subr.mxu0 0.0
    %1915 = vmatpush1.xpose.msra.mxu0 0.0
    %1916 = vmatprep.subr.mxu0 0.0
    %1917 = vmatpush1.xpose.msra.mxu0 0.0
    %1918 = vmatprep.subr.mxu0 0.0
    %1919 = vmatpush1.xpose.msra.mxu0 0.0
    %1920 = vmatprep.subr.mxu0 0.0
    %1921 = vmatpush1.xpose.msra.mxu0 0.0
    %1922 = vmatprep.subr.mxu0 0.0
    %1923 = vmatpush1.xpose.msra.mxu0 0.0
    %1924 = vmatprep.subr.mxu0 0.0
    %1925 = vmatpush1.xpose.msra.mxu0 0.0
    %1926 = vmatprep.subr.mxu0 0.0
    %1927 = vmatpush1.xpose.msra.mxu0 0.0
    %1928 = vmatprep.subr.mxu0 0.0
    %1929 = vmatpush1.xpose.msra.mxu0 0.0
    %1930 = vmatprep.subr.mxu0 0.0
    %1931 = vmatpush1.xpose.msra.mxu0 0.0
    %1932 = vmatprep.subr.mxu0 0.0
    %1933 = vmatpush1.xpose.msra.mxu0 0.0
    %1934 = vmatprep.subr.mxu0 0.0
    %1935 = vmatpush1.xpose.msra.mxu0 0.0
    %1936 = vmatprep.subr.mxu0 0.0
    %1937 = vmatpush1.xpose.msra.mxu0 0.0
    %1938 = vmatprep.subr.mxu0 0.0
    %1939 = vmatpush1.xpose.msra.mxu0 0.0
    %1940 = vmatprep.subr.mxu0 0.0
    %1941 = vmatpush1.xpose.msra.mxu0 0.0
    %1942 = vmatprep.subr.mxu0 0.0
    %1943 = vmatpush1.xpose.msra.mxu0 0.0
    %1944 = vmatprep.subr.mxu0 0.0
    %1945 = vmatpush1.xpose.msra.mxu0 0.0
    %1946 = vmatprep.subr.mxu0 0.0
    %1947 = vmatpush1.xpose.msra.mxu0 0.0
    %1948 = vmatprep.subr.mxu0 0.0
    %1949 = vmatpush1.xpose.msra.mxu0 0.0
    %1950 = vmatprep.subr.mxu0 0.0
    %1951 = vmatpush1.xpose.msra.mxu0 0.0
    %1952 = vmatprep.subr.mxu0 0.0
    %1953 = vmatpush1.xpose.msra.mxu0 0.0
    %1954 = vmatprep.subr.mxu0 0.0
    %1955 = vmatpush1.xpose.msra.mxu0 0.0
    %1956 = vmatprep.subr.mxu0 0.0
    %1957 = vmatpush1.xpose.msra.mxu0 0.0
    %1958 = vmatprep.subr.mxu0 0.0
    %1959 = vmatpush1.xpose.msra.mxu0 0.0
    %1960 = vmatprep.subr.mxu0 0.0
    %1961 = vmatpush1.xpose.msra.mxu0 0.0
    %1962 = vmatprep.subr.mxu0 0.0
    %1963 = vmatpush1.xpose.msra.mxu0 0.0
    %1964 = vmatprep.subr.mxu0 0.0
    %1965 = vmatpush1.xpose.msra.mxu0 0.0
    %1966 = vmatprep.subr.mxu0 0.0
    %1967 = vmatpush1.xpose.msra.mxu0 0.0
    %1968 = vmatprep.subr.mxu0 0.0
    %1969 = vmatpush1.xpose.msra.mxu0 0.0
    %1970 = vmatprep.mubr.f32.mxu0 0.0
    %1971 = vmatmul.mubr.f32.gmra.mrb[0].mxu0 %v1905
    %v1972 = vpop.f32.mrb[0].mxu0
    %v1973 = vadd.f32 0.0, %v1972
    %v1974 = vpop.f32.mrb[0].mxu0
    %1975 = vdwg.mxu0
    %v1976 = vmul.f32 %v1973, 0.125
    %v1977 = vsel %vm1811, %v1976, -1e+30
    %v1978 = vsel %vm845, %v1977, -inf
    %1979 = vmax.xlane.f32.xlu0 %v1978
    %v1980 = vpop.xlane.xlu0 %1979
    %v1981 = vsub.f32 %v1977, %v1980
    %v1982 = vmul.f32 %v1981, 1.442695
    %v1983 = vpow.pop %v1982
    %v1984 = vsel %vm845, %v1983, 0.0
    %1985 = vadd.xlane.f32.xlu0 %v1984
    %v1986 = vpop.xlane.xlu0 %1985
    %v1987 = vrcp.pop %v1986
    %v1988 = vmul.f32 %v1983, %v1987
    %v1989 = vmul.f32 %v1780, %v1904
    %v1991 = vsel %vm845, %v1988, 0
    %1993 = vmatprep.subr.mxu0 0.0
    %1994 = vmatpush1.msra.mxu0 %v1989
    %1995 = vmatprep.subr.mxu0 0.0
    %1996 = vmatpush1.msra.mxu0 0.0
    %1997 = vmatprep.subr.mxu0 0.0
    %1998 = vmatpush1.msra.mxu0 0.0
    %1999 = vmatprep.subr.mxu0 0.0
    %2000 = vmatpush1.msra.mxu0 0.0
    %2001 = vmatprep.subr.mxu0 0.0
    %2002 = vmatpush1.msra.mxu0 0.0
    %2003 = vmatprep.subr.mxu0 0.0
    %2004 = vmatpush1.msra.mxu0 0.0
    %2005 = vmatprep.subr.mxu0 0.0
    %2006 = vmatpush1.msra.mxu0 0.0
    %2007 = vmatprep.subr.mxu0 0.0
    %2008 = vmatpush1.msra.mxu0 0.0
    %2009 = vmatprep.subr.mxu0 0.0
    %2010 = vmatpush1.msra.mxu0 0.0
    %2011 = vmatprep.subr.mxu0 0.0
    %2012 = vmatpush1.msra.mxu0 0.0
    %2013 = vmatprep.subr.mxu0 0.0
    %2014 = vmatpush1.msra.mxu0 0.0
    %2015 = vmatprep.subr.mxu0 0.0
    %2016 = vmatpush1.msra.mxu0 0.0
    %2017 = vmatprep.subr.mxu0 0.0
    %2018 = vmatpush1.msra.mxu0 0.0
    %2019 = vmatprep.subr.mxu0 0.0
    %2020 = vmatpush1.msra.mxu0 0.0
    %2021 = vmatprep.subr.mxu0 0.0
    %2022 = vmatpush1.msra.mxu0 0.0
    %2023 = vmatprep.subr.mxu0 0.0
    %2024 = vmatpush1.msra.mxu0 0.0
    %2025 = vmatprep.subr.mxu0 0.0
    %2026 = vmatpush1.msra.mxu0 0.0
    %2027 = vmatprep.subr.mxu0 0.0
    %2028 = vmatpush1.msra.mxu0 0.0
    %2029 = vmatprep.subr.mxu0 0.0
    %2030 = vmatpush1.msra.mxu0 0.0
    %2031 = vmatprep.subr.mxu0 0.0
    %2032 = vmatpush1.msra.mxu0 0.0
    %2033 = vmatprep.subr.mxu0 0.0
    %2034 = vmatpush1.msra.mxu0 0.0
    %2035 = vmatprep.subr.mxu0 0.0
    %2036 = vmatpush1.msra.mxu0 0.0
    %2037 = vmatprep.subr.mxu0 0.0
    %2038 = vmatpush1.msra.mxu0 0.0
    %2039 = vmatprep.subr.mxu0 0.0
    %2040 = vmatpush1.msra.mxu0 0.0
    %2041 = vmatprep.subr.mxu0 0.0
    %2042 = vmatpush1.msra.mxu0 0.0
    %2043 = vmatprep.subr.mxu0 0.0
    %2044 = vmatpush1.msra.mxu0 0.0
    %2045 = vmatprep.subr.mxu0 0.0
    %2046 = vmatpush1.msra.mxu0 0.0
    %2047 = vmatprep.subr.mxu0 0.0
    %2048 = vmatpush1.msra.mxu0 0.0
    %2049 = vmatprep.subr.mxu0 0.0
    %2050 = vmatpush1.msra.mxu0 0.0
    %2051 = vmatprep.subr.mxu0 0.0
    %2052 = vmatpush1.msra.mxu0 0.0
    %2053 = vmatprep.subr.mxu0 0.0
    %2054 = vmatpush1.msra.mxu0 0.0
    %2055 = vmatprep.subr.mxu0 0.0
    %2056 = vmatpush1.msra.mxu0 0.0
    %2057 = vmatprep.mubr.f32.mxu0 0.0
    %2058 = vmatmul.mubr.f32.gmra.mrb[0].mxu0 %v1991
    %v2059 = vpop.f32.mrb[0].mxu0
    %v2060 = vadd.f32 0.0, %v2059
    %v2061 = vpop.f32.mrb[0].mxu0
    %2062 = vdwg.mxu0
    %v2064 = vsel %vm845, %v1899, 0
    %2066 = vmatprep.subr.mxu0 0.0
    %2067 = vmatpush1.msra.mxu0 %v1900
    %2068 = vmatprep.subr.mxu0 0.0
    %2069 = vmatpush1.msra.mxu0 0.0
    %2070 = vmatprep.subr.mxu0 0.0
    %2071 = vmatpush1.msra.mxu0 0.0
    %2072 = vmatprep.subr.mxu0 0.0
    %2073 = vmatpush1.msra.mxu0 0.0
    %2074 = vmatprep.subr.mxu0 0.0
    %2075 = vmatpush1.msra.mxu0 0.0
    %2076 = vmatprep.subr.mxu0 0.0
    %2077 = vmatpush1.msra.mxu0 0.0
    %2078 = vmatprep.subr.mxu0 0.0
    %2079 = vmatpush1.msra.mxu0 0.0
    %2080 = vmatprep.subr.mxu0 0.0
    %2081 = vmatpush1.msra.mxu0 0.0
    %2082 = vmatprep.subr.mxu0 0.0
    %2083 = vmatpush1.msra.mxu0 0.0
    %2084 = vmatprep.subr.mxu0 0.0
    %2085 = vmatpush1.msra.mxu0 0.0
    %2086 = vmatprep.subr.mxu0 0.0
    %2087 = vmatpush1.msra.mxu0 0.0
    %2088 = vmatprep.subr.mxu0 0.0
    %2089 = vmatpush1.msra.mxu0 0.0
    %2090 = vmatprep.subr.mxu0 0.0
    %2091 = vmatpush1.msra.mxu0 0.0
    %2092 = vmatprep.subr.mxu0 0.0
    %2093 = vmatpush1.msra.mxu0 0.0
    %2094 = vmatprep.subr.mxu0 0.0
    %2095 = vmatpush1.msra.mxu0 0.0
    %2096 = vmatprep.subr.mxu0 0.0
    %2097 = vmatpush1.msra.mxu0 0.0
    %2098 = vmatprep.subr.mxu0 0.0
    %2099 = vmatpush1.msra.mxu0 0.0
    %2100 = vmatprep.subr.mxu0 0.0
    %2101 = vmatpush1.msra.mxu0 0.0
    %2102 = vmatprep.subr.mxu0 0.0
    %2103 = vmatpush1.msra.mxu0 0.0
    %2104 = vmatprep.subr.mxu0 0.0
    %2105 = vmatpush1.msra.mxu0 0.0
    %2106 = vmatprep.subr.mxu0 0.0
    %2107 = vmatpush1.msra.mxu0 0.0
    %2108 = vmatprep.subr.mxu0 0.0
    %2109 = vmatpush1.msra.mxu0 0.0
    %2110 = vmatprep.subr.mxu0 0.0
    %2111 = vmatpush1.msra.mxu0 0.0
    %2112 = vmatprep.subr.mxu0 0.0
    %2113 = vmatpush1.msra.mxu0 0.0
    %2114 = vmatprep.subr.mxu0 0.0
    %2115 = vmatpush1.msra.mxu0 0.0
    %2116 = vmatprep.subr.mxu0 0.0
    %2117 = vmatpush1.msra.mxu0 0.0
    %2118 = vmatprep.subr.mxu0 0.0
    %2119 = vmatpush1.msra.mxu0 0.0
    %2120 = vmatprep.subr.mxu0 0.0
    %2121 = vmatpush1.msra.mxu0 0.0
    %2122 = vmatprep.subr.mxu0 0.0
    %2123 = vmatpush1.msra.mxu0 0.0
    %2124 = vmatprep.subr.mxu0 0.0
    %2125 = vmatpush1.msra.mxu0 0.0
    %2126 = vmatprep.subr.mxu0 0.0
    %2127 = vmatpush1.msra.mxu0 0.0
    %2128 = vmatprep.subr.mxu0 0.0
    %2129 = vmatpush1.msra.mxu0 0.0
    %2130 = vmatprep.mubr.f32.mxu0 0.0
    %2131 = vmatmul.mubr.f32.gmra.mrb[0].mxu0 %v2064
    %v2132 = vpop.f32.mrb[0].mxu0
    %v2133 = vadd.f32 %v2060, %v2132
    %v2134 = vpop.f32.mrb[0].mxu0
    %2135 = vdwg.mxu0
    %v2136 = vld [vmem:[#allocation11] sm:$0xff]
    %v2137 = vld [vmem:[#allocation11 + $0x8] sm:$0xff]
    %v2138 = vld [vmem:[#allocation11 + $0x10] sm:$0xff]
    %v2139 = vld [vmem:[#allocation11 + $0x18] sm:$0xff]
    %v2140 = vld [vmem:[#allocation11 + $0x20] sm:$0xff]
    %v2141 = vld [vmem:[#allocation11 + $0x28] sm:$0xff]
    %v2142 = vld [vmem:[#allocation11 + $0x30] sm:$0xff]
    %v2143 = vld [vmem:[#allocation11 + $0x38] sm:$0xff]
    %v2144 = vld [vmem:[#allocation11 + $0x40] sm:$0xff]
    %v2145 = vld [vmem:[#allocation11 + $0x48] sm:$0xff]
    %v2146 = vld [vmem:[#allocation11 + $0x50] sm:$0xff]
    %v2147 = vld [vmem:[#allocation11 + $0x58] sm:$0xff]
    %v2148 = vld [vmem:[#allocation11 + $0x60] sm:$0xff]
    %v2149 = vld [vmem:[#allocation11 + $0x68] sm:$0xff]
    %v2150 = vld [vmem:[#allocation11 + $0x70] sm:$0xff]
    %v2151 = vld [vmem:[#allocation11 + $0x78] sm:$0xff]
    %v2152 = vld [vmem:[#allocation13] sm:$0x1]
    %v2154 = vlaneseq
    %v2155 = vshrl.u32 %v2154, 7
    %v2156 = vsub.s32 0, %v2155
    %v2157 = vrot.slane %v2152, %v2156
    %2159 = vmatprep.subr.mxu0 0.0
    %2160 = vmatpush1.msra.mxu0 %v2136
    %2161 = vmatprep.subr.mxu0 0.0
    %2162 = vmatpush1.msra.mxu0 %v2137
    %2163 = vmatprep.subr.mxu0 0.0
    %2164 = vmatpush1.msra.mxu0 %v2138
    %2165 = vmatprep.subr.mxu0 0.0
    %2166 = vmatpush1.msra.mxu0 %v2139
    %2167 = vmatprep.subr.mxu0 0.0
    %2168 = vmatpush1.msra.mxu0 %v2140
    %2169 = vmatprep.subr.mxu0 0.0
    %2170 = vmatpush1.msra.mxu0 %v2141
    %2171 = vmatprep.subr.mxu0 0.0
    %2172 = vmatpush1.msra.mxu0 %v2142
    %2173 = vmatprep.subr.mxu0 0.0
    %2174 = vmatpush1.msra.mxu0 %v2143
    %2175 = vmatprep.subr.mxu0 0.0
    %2176 = vmatpush1.msra.mxu0 %v2144
    %2177 = vmatprep.subr.mxu0 0.0
    %2178 = vmatpush1.msra.mxu0 %v2145
    %2179 = vmatprep.subr.mxu0 0.0
    %2180 = vmatpush1.msra.mxu0 %v2146
    %2181 = vmatprep.subr.mxu0 0.0
    %2182 = vmatpush1.msra.mxu0 %v2147
    %2183 = vmatprep.subr.mxu0 0.0
    %2184 = vmatpush1.msra.mxu0 %v2148
    %2185 = vmatprep.subr.mxu0 0.0
    %2186 = vmatpush1.msra.mxu0 %v2149
    %2187 = vmatprep.subr.mxu0 0.0
    %2188 = vmatpush1.msra.mxu0 %v2150
    %2189 = vmatprep.subr.mxu0 0.0
    %2190 = vmatpush1.msra.mxu0 %v2151
    %2191 = vmatprep.subr.mxu0 0.0
    %2192 = vmatpush1.msra.mxu0 0.0
    %2193 = vmatprep.subr.mxu0 0.0
    %2194 = vmatpush1.msra.mxu0 0.0
    %2195 = vmatprep.subr.mxu0 0.0
    %2196 = vmatpush1.msra.mxu0 0.0
    %2197 = vmatprep.subr.mxu0 0.0
    %2198 = vmatpush1.msra.mxu0 0.0
    %2199 = vmatprep.subr.mxu0 0.0
    %2200 = vmatpush1.msra.mxu0 0.0
    %2201 = vmatprep.subr.mxu0 0.0
    %2202 = vmatpush1.msra.mxu0 0.0
    %2203 = vmatprep.subr.mxu0 0.0
    %2204 = vmatpush1.msra.mxu0 0.0
    %2205 = vmatprep.subr.mxu0 0.0
    %2206 = vmatpush1.msra.mxu0 0.0
    %2207 = vmatprep.subr.mxu0 0.0
    %2208 = vmatpush1.msra.mxu0 0.0
    %2209 = vmatprep.subr.mxu0 0.0
    %2210 = vmatpush1.msra.mxu0 0.0
    %2211 = vmatprep.subr.mxu0 0.0
    %2212 = vmatpush1.msra.mxu0 0.0
    %2213 = vmatprep.subr.mxu0 0.0
    %2214 = vmatpush1.msra.mxu0 0.0
    %2215 = vmatprep.subr.mxu0 0.0
    %2216 = vmatpush1.msra.mxu0 0.0
    %2217 = vmatprep.subr.mxu0 0.0
    %2218 = vmatpush1.msra.mxu0 0.0
    %2219 = vmatprep.subr.mxu0 0.0
    %2220 = vmatpush1.msra.mxu0 0.0
    %2221 = vmatprep.subr.mxu0 0.0
    %2222 = vmatpush1.msra.mxu0 0.0
    %2223 = vmatprep.mubr.f32.mxu0 0.0
    %2224 = vmatmul.mubr.f32.gmra.mrb[0].mxu0 %v2133
    %v2225 = vpop.f32.mrb[0].mxu0
    %v2226 = vadd.f32 %v2157, %v2225
    %v2227 = vpop.f32.mrb[0].mxu0
    %2228 = vdwg.mxu0
    %v2229 = vadd.f32 %v1576, %v2226
    %v2230 = vld [vmem:[#allocation14] sm:$0x1]
    %v2231 = vld [vmem:[#allocation16] sm:$0x1]
    %2232 = vadd.xlane.f32.xlu0 %v2229
    %v2233 = vpop.xlane.xlu0 %2232
    %v2234 = vrcp.pop 128.0
    %v2235 = vmul.f32 %v2233, %v2234
    %v2236 = vsub.f32 %v2229, %v2235
    %v2237 = vmul.f32 %v2236, %v2236
    %2238 = vadd.xlane.f32.xlu0 %v2237
    %v2239 = vpop.xlane.xlu0 %2238
    %v2240 = vmul.f32 %v2239, %v2234
    %v2241 = vadd.f32 %v2240, 1e-05
    %v2242 = vrsqrt.pop %v2241
    %v2243 = vmul.f32 %v2236, %v2242
    %v2245 = vlaneseq
    %v2246 = vshrl.u32 %v2245, 7
    %v2247 = vsub.s32 0, %v2246
    %v2248 = vrot.slane %v2230, %v2247
    %v2250 = vmul.f32 %v2243, %v2248
    %v2252 = vlaneseq
    %v2253 = vshrl.u32 %v2252, 7
    %v2254 = vsub.s32 0, %v2253
    %v2255 = vrot.slane %v2231, %v2254
    %v2257 = vadd.f32 %v2250, %v2255
    %v2258 = vld [vmem:[#allocation17] sm:$0xff]
    %v2259 = vld [vmem:[#allocation17 + $0x8] sm:$0xff]
    %v2260 = vld [vmem:[#allocation17 + $0x10] sm:$0xff]
    %v2261 = vld [vmem:[#allocation17 + $0x18] sm:$0xff]
    %v2262 = vld [vmem:[#allocation17 + $0x20] sm:$0xff]
    %v2263 = vld [vmem:[#allocation17 + $0x28] sm:$0xff]
    %v2264 = vld [vmem:[#allocation17 + $0x30] sm:$0xff]
    %v2265 = vld [vmem:[#allocation17 + $0x38] sm:$0xff]
    %v2266 = vld [vmem:[#allocation17 + $0x40] sm:$0xff]
    %v2267 = vld [vmem:[#allocation17 + $0x48] sm:$0xff]
    %v2268 = vld [vmem:[#allocation17 + $0x50] sm:$0xff]
    %v2269 = vld [vmem:[#allocation17 + $0x58] sm:$0xff]
    %v2270 = vld [vmem:[#allocation17 + $0x60] sm:$0xff]
    %v2271 = vld [vmem:[#allocation17 + $0x68] sm:$0xff]
    %v2272 = vld [vmem:[#allocation17 + $0x70] sm:$0xff]
    %v2273 = vld [vmem:[#allocation17 + $0x78] sm:$0xff]
    %v2274 = vld [vmem:[#allocation19] sm:$0x1]
    %v2276 = vlaneseq
    %v2277 = vshrl.u32 %v2276, 7
    %v2278 = vsub.s32 0, %v2277
    %v2279 = vrot.slane %v2274, %v2278
    %2281 = vmatprep.subr.mxu0 0.0
    %2282 = vmatpush1.msra.mxu0 %v2258
    %2283 = vmatprep.subr.mxu0 0.0
    %2284 = vmatpush1.msra.mxu0 %v2259
    %2285 = vmatprep.subr.mxu0 0.0
    %2286 = vmatpush1.msra.mxu0 %v2260
    %2287 = vmatprep.subr.mxu0 0.0
    %2288 = vmatpush1.msra.mxu0 %v2261
    %2289 = vmatprep.subr.mxu0 0.0
    %2290 = vmatpush1.msra.mxu0 %v2262
    %2291 = vmatprep.subr.mxu0 0.0
    %2292 = vmatpush1.msra.mxu0 %v2263
    %2293 = vmatprep.subr.mxu0 0.0
    %2294 = vmatpush1.msra.mxu0 %v2264
    %2295 = vmatprep.subr.mxu0 0.0
    %2296 = vmatpush1.msra.mxu0 %v2265
    %2297 = vmatprep.subr.mxu0 0.0
    %2298 = vmatpush1.msra.mxu0 %v2266
    %2299 = vmatprep.subr.mxu0 0.0
    %2300 = vmatpush1.msra.mxu0 %v2267
    %2301 = vmatprep.subr.mxu0 0.0
    %2302 = vmatpush1.msra.mxu0 %v2268
    %2303 = vmatprep.subr.mxu0 0.0
    %2304 = vmatpush1.msra.mxu0 %v2269
    %2305 = vmatprep.subr.mxu0 0.0
    %2306 = vmatpush1.msra.mxu0 %v2270
    %2307 = vmatprep.subr.mxu0 0.0
    %2308 = vmatpush1.msra.mxu0 %v2271
    %2309 = vmatprep.subr.mxu0 0.0
    %2310 = vmatpush1.msra.mxu0 %v2272
    %2311 = vmatprep.subr.mxu0 0.0
    %2312 = vmatpush1.msra.mxu0 %v2273
    %2313 = vmatprep.subr.mxu0 0.0
    %2314 = vmatpush1.msra.mxu0 0.0
    %2315 = vmatprep.subr.mxu0 0.0
    %2316 = vmatpush1.msra.mxu0 0.0
    %2317 = vmatprep.subr.mxu0 0.0
    %2318 = vmatpush1.msra.mxu0 0.0
    %2319 = vmatprep.subr.mxu0 0.0
    %2320 = vmatpush1.msra.mxu0 0.0
    %2321 = vmatprep.subr.mxu0 0.0
    %2322 = vmatpush1.msra.mxu0 0.0
    %2323 = vmatprep.subr.mxu0 0.0
    %2324 = vmatpush1.msra.mxu0 0.0
    %2325 = vmatprep.subr.mxu0 0.0
    %2326 = vmatpush1.msra.mxu0 0.0
    %2327 = vmatprep.subr.mxu0 0.0
    %2328 = vmatpush1.msra.mxu0 0.0
    %2329 = vmatprep.subr.mxu0 0.0
    %2330 = vmatpush1.msra.mxu0 0.0
    %2331 = vmatprep.subr.mxu0 0.0
    %2332 = vmatpush1.msra.mxu0 0.0
    %2333 = vmatprep.subr.mxu0 0.0
    %2334 = vmatpush1.msra.mxu0 0.0
    %2335 = vmatprep.subr.mxu0 0.0
    %2336 = vmatpush1.msra.mxu0 0.0
    %2337 = vmatprep.subr.mxu0 0.0
    %2338 = vmatpush1.msra.mxu0 0.0
    %2339 = vmatprep.subr.mxu0 0.0
    %2340 = vmatpush1.msra.mxu0 0.0
    %2341 = vmatprep.subr.mxu0 0.0
    %2342 = vmatpush1.msra.mxu0 0.0
    %2343 = vmatprep.subr.mxu0 0.0
    %2344 = vmatpush1.msra.mxu0 0.0
    %2345 = vmatprep.mubr.f32.mxu0 0.0
    %2346 = vmatmul.mubr.f32.gmra.mrb[0].mxu0 %v2257
    %v2347 = vpop.f32.mrb[0].mxu0
    %v2348 = vadd.f32 %v2279, %v2347
    %v2349 = vpop.f32.mrb[0].mxu0
    %2350 = vdwg.mxu0
    %v2351 = vmax.f32 %v2348, 0.0
    %v2352 = vld [vmem:[#allocation20] sm:$0xff]
    %v2353 = vld [vmem:[#allocation20 + $0x8] sm:$0xff]
    %v2354 = vld [vmem:[#allocation20 + $0x10] sm:$0xff]
    %v2355 = vld [vmem:[#allocation20 + $0x18] sm:$0xff]
    %v2356 = vld [vmem:[#allocation20 + $0x20] sm:$0xff]
    %v2357 = vld [vmem:[#allocation20 + $0x28] sm:$0xff]
    %v2358 = vld [vmem:[#allocation20 + $0x30] sm:$0xff]
    %v2359 = vld [vmem:[#allocation20 + $0x38] sm:$0xff]
    %v2360 = vld [vmem:[#allocation20 + $0x40] sm:$0xff]
    %v2361 = vld [vmem:[#allocation20 + $0x48] sm:$0xff]
    %v2362 = vld [vmem:[#allocation20 + $0x50] sm:$0xff]
    %v2363 = vld [vmem:[#allocation20 + $0x58] sm:$0xff]
    %v2364 = vld [vmem:[#allocation20 + $0x60] sm:$0xff]
    %v2365 = vld [vmem:[#allocation20 + $0x68] sm:$0xff]
    %v2366 = vld [vmem:[#allocation20 + $0x70] sm:$0xff]
    %v2367 = vld [vmem:[#allocation20 + $0x78] sm:$0xff]
    %v2368 = vld [vmem:[#allocation22] sm:$0x1]
    %v2370 = vlaneseq
    %v2371 = vshrl.u32 %v2370, 7
    %v2372 = vsub.s32 0, %v2371
    %v2373 = vrot.slane %v2368, %v2372
    %2375 = vmatprep.subr.mxu0 0.0
    %2376 = vmatpush1.msra.mxu0 %v2352
    %2377 = vmatprep.subr.mxu0 0.0
    %2378 = vmatpush1.msra.mxu0 %v2353
    %2379 = vmatprep.subr.mxu0 0.0
    %2380 = vmatpush1.msra.mxu0 %v2354
    %2381 = vmatprep.subr.mxu0 0.0
    %2382 = vmatpush1.msra.mxu0 %v2355
    %2383 = vmatprep.subr.mxu0 0.0
    %2384 = vmatpush1.msra.mxu0 %v2356
    %2385 = vmatprep.subr.mxu0 0.0
    %2386 = vmatpush1.msra.mxu0 %v2357
    %2387 = vmatprep.subr.mxu0 0.0
    %2388 = vmatpush1.msra.mxu0 %v2358
    %2389 = vmatprep.subr.mxu0 0.0
    %2390 = vmatpush1.msra.mxu0 %v2359
    %2391 = vmatprep.subr.mxu0 0.0
    %2392 = vmatpush1.msra.mxu0 %v2360
    %2393 = vmatprep.subr.mxu0 0.0
    %2394 = vmatpush1.msra.mxu0 %v2361
    %2395 = vmatprep.subr.mxu0 0.0
    %2396 = vmatpush1.msra.mxu0 %v2362
    %2397 = vmatprep.subr.mxu0 0.0
    %2398 = vmatpush1.msra.mxu0 %v2363
    %2399 = vmatprep.subr.mxu0 0.0
    %2400 = vmatpush1.msra.mxu0 %v2364
    %2401 = vmatprep.subr.mxu0 0.0
    %2402 = vmatpush1.msra.mxu0 %v2365
    %2403 = vmatprep.subr.mxu0 0.0
    %2404 = vmatpush1.msra.mxu0 %v2366
    %2405 = vmatprep.subr.mxu0 0.0
    %2406 = vmatpush1.msra.mxu0 %v2367
    %2407 = vmatprep.subr.mxu0 0.0
    %2408 = vmatpush1.msra.mxu0 0.0
    %2409 = vmatprep.subr.mxu0 0.0
    %2410 = vmatpush1.msra.mxu0 0.0
    %2411 = vmatprep.subr.mxu0 0.0
    %2412 = vmatpush1.msra.mxu0 0.0
    %2413 = vmatprep.subr.mxu0 0.0
    %2414 = vmatpush1.msra.mxu0 0.0
    %2415 = vmatprep.subr.mxu0 0.0
    %2416 = vmatpush1.msra.mxu0 0.0
    %2417 = vmatprep.subr.mxu0 0.0
    %2418 = vmatpush1.msra.mxu0 0.0
    %2419 = vmatprep.subr.mxu0 0.0
    %2420 = vmatpush1.msra.mxu0 0.0
    %2421 = vmatprep.subr.mxu0 0.0
    %2422 = vmatpush1.msra.mxu0 0.0
    %2423 = vmatprep.subr.mxu0 0.0
    %2424 = vmatpush1.msra.mxu0 0.0
    %2425 = vmatprep.subr.mxu0 0.0
    %2426 = vmatpush1.msra.mxu0 0.0
    %2427 = vmatprep.subr.mxu0 0.0
    %2428 = vmatpush1.msra.mxu0 0.0
    %2429 = vmatprep.subr.mxu0 0.0
    %2430 = vmatpush1.msra.mxu0 0.0
    %2431 = vmatprep.subr.mxu0 0.0
    %2432 = vmatpush1.msra.mxu0 0.0
    %2433 = vmatprep.subr.mxu0 0.0
    %2434 = vmatpush1.msra.mxu0 0.0
    %2435 = vmatprep.subr.mxu0 0.0
    %2436 = vmatpush1.msra.mxu0 0.0
    %2437 = vmatprep.subr.mxu0 0.0
    %2438 = vmatpush1.msra.mxu0 0.0
    %2439 = vmatprep.mubr.f32.mxu0 0.0
    %2440 = vmatmul.mubr.f32.gmra.mrb[0].mxu0 %v2351
    %v2441 = vpop.f32.mrb[0].mxu0
    %v2442 = vadd.f32 %v2373, %v2441
    %v2443 = vpop.f32.mrb[0].mxu0
    %2444 = vdwg.mxu0
    %v2445 = vadd.f32 %v2257, %v2442
    %v2446 = vld [vmem:[#allocation23] sm:$0x1]
    %v2447 = vld [vmem:[#allocation25] sm:$0x1]
    %2448 = vadd.xlane.f32.xlu0 %v2445
    %v2449 = vpop.xlane.xlu0 %2448
    %v2450 = vmul.f32 %v2449, %v2234
    %v2451 = vsub.f32 %v2445, %v2450
    %v2452 = vmul.f32 %v2451, %v2451
    %2453 = vadd.xlane.f32.xlu0 %v2452
    %v2454 = vpop.xlane.xlu0 %2453
    %v2455 = vmul.f32 %v2454, %v2234
    %v2456 = vadd.f32 %v2455, 1e-05
    %v2457 = vrsqrt.pop %v2456
    %v2458 = vmul.f32 %v2451, %v2457
    %v2460 = vlaneseq
    %v2461 = vshrl.u32 %v2460, 7
    %v2462 = vsub.s32 0, %v2461
    %v2463 = vrot.slane %v2446, %v2462
    %v2465 = vmul.f32 %v2458, %v2463
    %v2467 = vlaneseq
    %v2468 = vshrl.u32 %v2467, 7
    %v2469 = vsub.s32 0, %v2468
    %v2470 = vrot.slane %v2447, %v2469
    %v2472 = vadd.f32 %v2465, %v2470
    %v2473 = vld [vmem:[%s15] sm:$0xff]
    %v2474 = vld [vmem:[%s15 + $0x8] sm:$0xff]
    %v2475 = vld [vmem:[%s15 + $0x10] sm:$0xff]
    %v2476 = vld [vmem:[%s15 + $0x18] sm:$0xff]
    %v2477 = vld [vmem:[%s15 + $0x20] sm:$0xff]
    %v2478 = vld [vmem:[%s15 + $0x28] sm:$0xff]
    %v2479 = vld [vmem:[%s15 + $0x30] sm:$0xff]
    %v2480 = vld [vmem:[%s15 + $0x38] sm:$0xff]
    %v2481 = vld [vmem:[%s15 + $0x40] sm:$0xff]
    %v2482 = vld [vmem:[%s15 + $0x48] sm:$0xff]
    %v2483 = vld [vmem:[%s15 + $0x50] sm:$0xff]
    %v2484 = vld [vmem:[%s15 + $0x58] sm:$0xff]
    %v2485 = vld [vmem:[%s15 + $0x60] sm:$0xff]
    %v2486 = vld [vmem:[%s15 + $0x68] sm:$0xff]
    %v2487 = vld [vmem:[%s15 + $0x70] sm:$0xff]
    %v2488 = vld [vmem:[%s15 + $0x78] sm:$0xff]
    %s2489 = scalar_lea.vmem %s15, 128
    %v2490 = vld [vmem:[%s2489] sm:$0xff]
    %v2491 = vld [vmem:[%s2489 + $0x8] sm:$0xff]
    %v2492 = vld [vmem:[%s2489 + $0x10] sm:$0xff]
    %v2493 = vld [vmem:[%s2489 + $0x18] sm:$0xff]
    %v2494 = vld [vmem:[%s2489 + $0x20] sm:$0xff]
    %v2495 = vld [vmem:[%s2489 + $0x28] sm:$0xff]
    %v2496 = vld [vmem:[%s2489 + $0x30] sm:$0xff]
    %v2497 = vld [vmem:[%s2489 + $0x38] sm:$0xff]
    %v2498 = vld [vmem:[%s2489 + $0x40] sm:$0xff]
    %v2499 = vld [vmem:[%s2489 + $0x48] sm:$0xff]
    %v2500 = vld [vmem:[%s2489 + $0x50] sm:$0xff]
    %v2501 = vld [vmem:[%s2489 + $0x58] sm:$0xff]
    %v2502 = vld [vmem:[%s2489 + $0x60] sm:$0xff]
    %v2503 = vld [vmem:[%s2489 + $0x68] sm:$0xff]
    %v2504 = vld [vmem:[%s2489 + $0x70] sm:$0xff]
    %v2505 = vld [vmem:[%s2489 + $0x78] sm:$0xff]
    %v2507 = vrot.slane %v2472, 2
    %2509 = vmatprep.subr.mxu0 0.0
    %2510 = vmatpush1.msra.mxu0 %v2490
    %2511 = vmatprep.subr.mxu0 0.0
    %2512 = vmatpush1.msra.mxu0 %v2491
    %2513 = vmatprep.subr.mxu0 0.0
    %2514 = vmatpush1.msra.mxu0 %v2492
    %2515 = vmatprep.subr.mxu0 0.0
    %2516 = vmatpush1.msra.mxu0 %v2493
    %2517 = vmatprep.subr.mxu0 0.0
    %2518 = vmatpush1.msra.mxu0 %v2494
    %2519 = vmatprep.subr.mxu0 0.0
    %2520 = vmatpush1.msra.mxu0 %v2495
    %2521 = vmatprep.subr.mxu0 0.0
    %2522 = vmatpush1.msra.mxu0 %v2496
    %2523 = vmatprep.subr.mxu0 0.0
    %2524 = vmatpush1.msra.mxu0 %v2497
    %2525 = vmatprep.subr.mxu0 0.0
    %2526 = vmatpush1.msra.mxu0 %v2498
    %2527 = vmatprep.subr.mxu0 0.0
    %2528 = vmatpush1.msra.mxu0 %v2499
    %2529 = vmatprep.subr.mxu0 0.0
    %2530 = vmatpush1.msra.mxu0 %v2500
    %2531 = vmatprep.subr.mxu0 0.0
    %2532 = vmatpush1.msra.mxu0 %v2501
    %2533 = vmatprep.subr.mxu0 0.0
    %2534 = vmatpush1.msra.mxu0 %v2502
    %2535 = vmatprep.subr.mxu0 0.0
    %2536 = vmatpush1.msra.mxu0 %v2503
    %2537 = vmatprep.subr.mxu0 0.0
    %2538 = vmatpush1.msra.mxu0 %v2504
    %2539 = vmatprep.subr.mxu0 0.0
    %2540 = vmatpush1.msra.mxu0 %v2505
    %2541 = vmatprep.subr.mxu0 0.0
    %2542 = vmatpush1.msra.mxu0 0.0
    %2543 = vmatprep.subr.mxu0 0.0
    %2544 = vmatpush1.msra.mxu0 0.0
    %2545 = vmatprep.subr.mxu0 0.0
    %2546 = vmatpush1.msra.mxu0 0.0
    %2547 = vmatprep.subr.mxu0 0.0
    %2548 = vmatpush1.msra.mxu0 0.0
    %2549 = vmatprep.subr.mxu0 0.0
    %2550 = vmatpush1.msra.mxu0 0.0
    %2551 = vmatprep.subr.mxu0 0.0
    %2552 = vmatpush1.msra.mxu0 0.0
    %2553 = vmatprep.subr.mxu0 0.0
    %2554 = vmatpush1.msra.mxu0 0.0
    %2555 = vmatprep.subr.mxu0 0.0
    %2556 = vmatpush1.msra.mxu0 0.0
    %2557 = vmatprep.subr.mxu0 0.0
    %2558 = vmatpush1.msra.mxu0 0.0
    %2559 = vmatprep.subr.mxu0 0.0
    %2560 = vmatpush1.msra.mxu0 0.0
    %2561 = vmatprep.subr.mxu0 0.0
    %2562 = vmatpush1.msra.mxu0 0.0
    %2563 = vmatprep.subr.mxu0 0.0
    %2564 = vmatpush1.msra.mxu0 0.0
    %2565 = vmatprep.subr.mxu0 0.0
    %2566 = vmatpush1.msra.mxu0 0.0
    %2567 = vmatprep.subr.mxu0 0.0
    %2568 = vmatpush1.msra.mxu0 0.0
    %2569 = vmatprep.subr.mxu0 0.0
    %2570 = vmatpush1.msra.mxu0 0.0
    %2571 = vmatprep.subr.mxu0 0.0
    %2572 = vmatpush1.msra.mxu0 0.0
    %2573 = vmatprep.mubr.f32.mxu0 0.0
    %2574 = vmatmul.mubr.f32.gmra.mrb[0].mxu0 %v2507
    %v2575 = vpop.f32.mrb[0].mxu0
    %v2576 = vadd.f32 0.0, %v2575
    %v2577 = vpop.f32.mrb[0].mxu0
    %2578 = vdwg.mxu0
    %2579 = vmatprep.subr.mxu0 0.0
    %2580 = vmatpush1.msra.mxu0 %v2473
    %2581 = vmatprep.subr.mxu0 0.0
    %2582 = vmatpush1.msra.mxu0 %v2474
    %2583 = vmatprep.subr.mxu0 0.0
    %2584 = vmatpush1.msra.mxu0 %v2475
    %2585 = vmatprep.subr.mxu0 0.0
    %2586 = vmatpush1.msra.mxu0 %v2476
    %2587 = vmatprep.subr.mxu0 0.0
    %2588 = vmatpush1.msra.mxu0 %v2477
    %2589 = vmatprep.subr.mxu0 0.0
    %2590 = vmatpush1.msra.mxu0 %v2478
    %2591 = vmatprep.subr.mxu0 0.0
    %2592 = vmatpush1.msra.mxu0 %v2479
    %2593 = vmatprep.subr.mxu0 0.0
    %2594 = vmatpush1.msra.mxu0 %v2480
    %2595 = vmatprep.subr.mxu0 0.0
    %2596 = vmatpush1.msra.mxu0 %v2481
    %2597 = vmatprep.subr.mxu0 0.0
    %2598 = vmatpush1.msra.mxu0 %v2482
    %2599 = vmatprep.subr.mxu0 0.0
    %2600 = vmatpush1.msra.mxu0 %v2483
    %2601 = vmatprep.subr.mxu0 0.0
    %2602 = vmatpush1.msra.mxu0 %v2484
    %2603 = vmatprep.subr.mxu0 0.0
    %2604 = vmatpush1.msra.mxu0 %v2485
    %2605 = vmatprep.subr.mxu0 0.0
    %2606 = vmatpush1.msra.mxu0 %v2486
    %2607 = vmatprep.subr.mxu0 0.0
    %2608 = vmatpush1.msra.mxu0 %v2487
    %2609 = vmatprep.subr.mxu0 0.0
    %2610 = vmatpush1.msra.mxu0 %v2488
    %2611 = vmatprep.subr.mxu0 0.0
    %2612 = vmatpush1.msra.mxu0 0.0
    %2613 = vmatprep.subr.mxu0 0.0
    %2614 = vmatpush1.msra.mxu0 0.0
    %2615 = vmatprep.subr.mxu0 0.0
    %2616 = vmatpush1.msra.mxu0 0.0
    %2617 = vmatprep.subr.mxu0 0.0
    %2618 = vmatpush1.msra.mxu0 0.0
    %2619 = vmatprep.subr.mxu0 0.0
    %2620 = vmatpush1.msra.mxu0 0.0
    %2621 = vmatprep.subr.mxu0 0.0
    %2622 = vmatpush1.msra.mxu0 0.0
    %2623 = vmatprep.subr.mxu0 0.0
    %2624 = vmatpush1.msra.mxu0 0.0
    %2625 = vmatprep.subr.mxu0 0.0
    %2626 = vmatpush1.msra.mxu0 0.0
    %2627 = vmatprep.subr.mxu0 0.0
    %2628 = vmatpush1.msra.mxu0 0.0
    %2629 = vmatprep.subr.mxu0 0.0
    %2630 = vmatpush1.msra.mxu0 0.0
    %2631 = vmatprep.subr.mxu0 0.0
    %2632 = vmatpush1.msra.mxu0 0.0
    %2633 = vmatprep.subr.mxu0 0.0
    %2634 = vmatpush1.msra.mxu0 0.0
    %2635 = vmatprep.subr.mxu0 0.0
    %2636 = vmatpush1.msra.mxu0 0.0
    %2637 = vmatprep.subr.mxu0 0.0
    %2638 = vmatpush1.msra.mxu0 0.0
    %2639 = vmatprep.subr.mxu0 0.0
    %2640 = vmatpush1.msra.mxu0 0.0
    %2641 = vmatprep.subr.mxu0 0.0
    %2642 = vmatpush1.msra.mxu0 0.0
    %2643 = vmatprep.mubr.f32.mxu0 0.0
    %2644 = vmatmul.mubr.f32.gmra.mrb[0].mxu0 %v2472
    %v2645 = vpop.f32.mrb[0].mxu0
    %v2646 = vadd.f32 %v2576, %v2645
    %v2647 = vpop.f32.mrb[0].mxu0
    %2648 = vdwg.mxu0
    %s2649 = scalar_lea.vmem %s15, 256
    %v2650 = vld [vmem:[%s2649] sm:$0xff]
    %v2651 = vld [vmem:[%s2649 + $0x8] sm:$0xff]
    %v2652 = vld [vmem:[%s2649 + $0x10] sm:$0xff]
    %v2653 = vld [vmem:[%s2649 + $0x18] sm:$0xff]
    %v2654 = vld [vmem:[%s2649 + $0x20] sm:$0xff]
    %v2655 = vld [vmem:[%s2649 + $0x28] sm:$0xff]
    %v2656 = vld [vmem:[%s2649 + $0x30] sm:$0xff]
    %v2657 = vld [vmem:[%s2649 + $0x38] sm:$0xff]
    %v2658 = vld [vmem:[%s2649 + $0x40] sm:$0xff]
    %v2659 = vld [vmem:[%s2649 + $0x48] sm:$0xff]
    %v2660 = vld [vmem:[%s2649 + $0x50] sm:$0xff]
    %v2661 = vld [vmem:[%s2649 + $0x58] sm:$0xff]
    %v2662 = vld [vmem:[%s2649 + $0x60] sm:$0xff]
    %v2663 = vld [vmem:[%s2649 + $0x68] sm:$0xff]
    %v2664 = vld [vmem:[%s2649 + $0x70] sm:$0xff]
    %v2665 = vld [vmem:[%s2649 + $0x78] sm:$0xff]
    %v2666 = vrot.slane %v2472, 4
    %2668 = vmatprep.subr.mxu0 0.0
    %2669 = vmatpush1.msra.mxu0 %v2650
    %2670 = vmatprep.subr.mxu0 0.0
    %2671 = vmatpush1.msra.mxu0 %v2651
    %2672 = vmatprep.subr.mxu0 0.0
    %2673 = vmatpush1.msra.mxu0 %v2652
    %2674 = vmatprep.subr.mxu0 0.0
    %2675 = vmatpush1.msra.mxu0 %v2653
    %2676 = vmatprep.subr.mxu0 0.0
    %2677 = vmatpush1.msra.mxu0 %v2654
    %2678 = vmatprep.subr.mxu0 0.0
    %2679 = vmatpush1.msra.mxu0 %v2655
    %2680 = vmatprep.subr.mxu0 0.0
    %2681 = vmatpush1.msra.mxu0 %v2656
    %2682 = vmatprep.subr.mxu0 0.0
    %2683 = vmatpush1.msra.mxu0 %v2657
    %2684 = vmatprep.subr.mxu0 0.0
    %2685 = vmatpush1.msra.mxu0 %v2658
    %2686 = vmatprep.subr.mxu0 0.0
    %2687 = vmatpush1.msra.mxu0 %v2659
    %2688 = vmatprep.subr.mxu0 0.0
    %2689 = vmatpush1.msra.mxu0 %v2660
    %2690 = vmatprep.subr.mxu0 0.0
    %2691 = vmatpush1.msra.mxu0 %v2661
    %2692 = vmatprep.subr.mxu0 0.0
    %2693 = vmatpush1.msra.mxu0 %v2662
    %2694 = vmatprep.subr.mxu0 0.0
    %2695 = vmatpush1.msra.mxu0 %v2663
    %2696 = vmatprep.subr.mxu0 0.0
    %2697 = vmatpush1.msra.mxu0 %v2664
    %2698 = vmatprep.subr.mxu0 0.0
    %2699 = vmatpush1.msra.mxu0 %v2665
    %2700 = vmatprep.subr.mxu0 0.0
    %2701 = vmatpush1.msra.mxu0 0.0
    %2702 = vmatprep.subr.mxu0 0.0
    %2703 = vmatpush1.msra.mxu0 0.0
    %2704 = vmatprep.subr.mxu0 0.0
    %2705 = vmatpush1.msra.mxu0 0.0
    %2706 = vmatprep.subr.mxu0 0.0
    %2707 = vmatpush1.msra.mxu0 0.0
    %2708 = vmatprep.subr.mxu0 0.0
    %2709 = vmatpush1.msra.mxu0 0.0
    %2710 = vmatprep.subr.mxu0 0.0
    %2711 = vmatpush1.msra.mxu0 0.0
    %2712 = vmatprep.subr.mxu0 0.0
    %2713 = vmatpush1.msra.mxu0 0.0
    %2714 = vmatprep.subr.mxu0 0.0
    %2715 = vmatpush1.msra.mxu0 0.0
    %2716 = vmatprep.subr.mxu0 0.0
    %2717 = vmatpush1.msra.mxu0 0.0
    %2718 = vmatprep.subr.mxu0 0.0
    %2719 = vmatpush1.msra.mxu0 0.0
    %2720 = vmatprep.subr.mxu0 0.0
    %2721 = vmatpush1.msra.mxu0 0.0
    %2722 = vmatprep.subr.mxu0 0.0
    %2723 = vmatpush1.msra.mxu0 0.0
    %2724 = vmatprep.subr.mxu0 0.0
    %2725 = vmatpush1.msra.mxu0 0.0
    %2726 = vmatprep.subr.mxu0 0.0
    %2727 = vmatpush1.msra.mxu0 0.0
    %2728 = vmatprep.subr.mxu0 0.0
    %2729 = vmatpush1.msra.mxu0 0.0
    %2730 = vmatprep.subr.mxu0 0.0
    %2731 = vmatpush1.msra.mxu0 0.0
    %2732 = vmatprep.mubr.f32.mxu0 0.0
    %2733 = vmatmul.mubr.f32.gmra.mrb[0].mxu0 %v2666
    %v2734 = vpop.f32.mrb[0].mxu0
    %v2735 = vadd.f32 0.0, %v2734
    %v2736 = vpop.f32.mrb[0].mxu0
    %2737 = vdwg.mxu0
    %v2738 = vadd.f32 %v2646, %v2735
    %s2739 = scalar_lea.vmem %s15, 384
    %v2740 = vld [vmem:[%s2739] sm:$0xff]
    %v2741 = vld [vmem:[%s2739 + $0x8] sm:$0xff]
    %v2742 = vld [vmem:[%s2739 + $0x10] sm:$0xff]
    %v2743 = vld [vmem:[%s2739 + $0x18] sm:$0xff]
    %v2744 = vld [vmem:[%s2739 + $0x20] sm:$0xff]
    %v2745 = vld [vmem:[%s2739 + $0x28] sm:$0xff]
    %v2746 = vld [vmem:[%s2739 + $0x30] sm:$0xff]
    %v2747 = vld [vmem:[%s2739 + $0x38] sm:$0xff]
    %v2748 = vld [vmem:[%s2739 + $0x40] sm:$0xff]
    %v2749 = vld [vmem:[%s2739 + $0x48] sm:$0xff]
    %v2750 = vld [vmem:[%s2739 + $0x50] sm:$0xff]
    %v2751 = vld [vmem:[%s2739 + $0x58] sm:$0xff]
    %v2752 = vld [vmem:[%s2739 + $0x60] sm:$0xff]
    %v2753 = vld [vmem:[%s2739 + $0x68] sm:$0xff]
    %v2754 = vld [vmem:[%s2739 + $0x70] sm:$0xff]
    %v2755 = vld [vmem:[%s2739 + $0x78] sm:$0xff]
    %v2756 = vrot.slane %v2472, 6
    %2758 = vmatprep.subr.mxu0 0.0
    %2759 = vmatpush1.msra.mxu0 %v2740
    %2760 = vmatprep.subr.mxu0 0.0
    %2761 = vmatpush1.msra.mxu0 %v2741
    %2762 = vmatprep.subr.mxu0 0.0
    %2763 = vmatpush1.msra.mxu0 %v2742
    %2764 = vmatprep.subr.mxu0 0.0
    %2765 = vmatpush1.msra.mxu0 %v2743
    %2766 = vmatprep.subr.mxu0 0.0
    %2767 = vmatpush1.msra.mxu0 %v2744
    %2768 = vmatprep.subr.mxu0 0.0
    %2769 = vmatpush1.msra.mxu0 %v2745
    %2770 = vmatprep.subr.mxu0 0.0
    %2771 = vmatpush1.msra.mxu0 %v2746
    %2772 = vmatprep.subr.mxu0 0.0
    %2773 = vmatpush1.msra.mxu0 %v2747
    %2774 = vmatprep.subr.mxu0 0.0
    %2775 = vmatpush1.msra.mxu0 %v2748
    %2776 = vmatprep.subr.mxu0 0.0
    %2777 = vmatpush1.msra.mxu0 %v2749
    %2778 = vmatprep.subr.mxu0 0.0
    %2779 = vmatpush1.msra.mxu0 %v2750
    %2780 = vmatprep.subr.mxu0 0.0
    %2781 = vmatpush1.msra.mxu0 %v2751
    %2782 = vmatprep.subr.mxu0 0.0
    %2783 = vmatpush1.msra.mxu0 %v2752
    %2784 = vmatprep.subr.mxu0 0.0
    %2785 = vmatpush1.msra.mxu0 %v2753
    %2786 = vmatprep.subr.mxu0 0.0
    %2787 = vmatpush1.msra.mxu0 %v2754
    %2788 = vmatprep.subr.mxu0 0.0
    %2789 = vmatpush1.msra.mxu0 %v2755
    %2790 = vmatprep.subr.mxu0 0.0
    %2791 = vmatpush1.msra.mxu0 0.0
    %2792 = vmatprep.subr.mxu0 0.0
    %2793 = vmatpush1.msra.mxu0 0.0
    %2794 = vmatprep.subr.mxu0 0.0
    %2795 = vmatpush1.msra.mxu0 0.0
    %2796 = vmatprep.subr.mxu0 0.0
    %2797 = vmatpush1.msra.mxu0 0.0
    %2798 = vmatprep.subr.mxu0 0.0
    %2799 = vmatpush1.msra.mxu0 0.0
    %2800 = vmatprep.subr.mxu0 0.0
    %2801 = vmatpush1.msra.mxu0 0.0
    %2802 = vmatprep.subr.mxu0 0.0
    %2803 = vmatpush1.msra.mxu0 0.0
    %2804 = vmatprep.subr.mxu0 0.0
    %2805 = vmatpush1.msra.mxu0 0.0
    %2806 = vmatprep.subr.mxu0 0.0
    %2807 = vmatpush1.msra.mxu0 0.0
    %2808 = vmatprep.subr.mxu0 0.0
    %2809 = vmatpush1.msra.mxu0 0.0
    %2810 = vmatprep.subr.mxu0 0.0
    %2811 = vmatpush1.msra.mxu0 0.0
    %2812 = vmatprep.subr.mxu0 0.0
    %2813 = vmatpush1.msra.mxu0 0.0
    %2814 = vmatprep.subr.mxu0 0.0
    %2815 = vmatpush1.msra.mxu0 0.0
    %2816 = vmatprep.subr.mxu0 0.0
    %2817 = vmatpush1.msra.mxu0 0.0
    %2818 = vmatprep.subr.mxu0 0.0
    %2819 = vmatpush1.msra.mxu0 0.0
    %2820 = vmatprep.subr.mxu0 0.0
    %2821 = vmatpush1.msra.mxu0 0.0
    %2822 = vmatprep.mubr.f32.mxu0 0.0
    %2823 = vmatmul.mubr.f32.gmra.mrb[0].mxu0 %v2756
    %v2824 = vpop.f32.mrb[0].mxu0
    %v2825 = vadd.f32 0.0, %v2824
    %v2826 = vpop.f32.mrb[0].mxu0
    %2827 = vdwg.mxu0
    %v2828 = vadd.f32 %v2738, %v2825
    %v2829 = vld [vmem:[#allocation26] sm:$0x1]
    %v2831 = vlaneseq
    %v2832 = vshrl.u32 %v2831, 7
    %v2833 = vsub.s32 0, %v2832
    %v2834 = vrot.slane %v2829, %v2833
    %v2836 = vadd.f32 %v2828, %v2834
    %vm2837 = vcmask 33792
    %2838 = vst.msk [vmem:[#allocation28] sm:$0x3] %vm2837, %v2836
    // Predicated region
    $region134: #{tpu_custom_call.1} parent=1 // pred_check
      _
    $region135: #{tpu_custom_call.1} parent=1 // pred_check_branch
      %2840 = sbr.rel (0) target = $region137
    $region136: #{tpu_custom_call.1} parent=1 // pred_region
      %s2842 = ssub.s32 32, 32
      %2843 = vsyncadd [#allocation4], %s2842
      %s2845 = sshll.u32 [#allocation28], 4
      %s2846 = int_to_ptr.vmem [resolvable:$true] %s2845
      %2848 = dma.vmem_to_hbm [thread:$0]  %s2846, 32, %s17, [#allocation4]
    $region137: #{tpu_custom_call.1} parent=1 // pred_fallthru
      _
    // Predicated region
    $region138: #{tpu_custom_call.1} parent=1 // pred_check
      _
    $region139: #{tpu_custom_call.1} parent=1 // pred_check_branch
      %2850 = sbr.rel (0) target = $region141
    $region140: #{tpu_custom_call.1} parent=1 // pred_region
      %2851 = dma.done [#allocation4], 32
    $region141: #{tpu_custom_call.1} parent=1 // pred_fallthru
      _
    %2852 = vsyncpa [#allocation3], 1
    %2853 = vsyncpa [#allocation6], 1
    %2854 = vsyncpa [#allocation9], 1
    %2855 = vsyncpa [#allocation12], 1
    %2856 = vsyncpa [#allocation15], 1
    %2857 = vsyncpa [#allocation18], 1
    %2858 = vsyncpa [#allocation21], 1
    %2859 = vsyncpa [#allocation24], 1
    %2860 = vsyncpa [#allocation27], 1
    %2861 = vsyncpa [#allocation4], 1

</llo_original>
